<compile_context>
chip_gen: v7x
topology: tpu7x:2x2x1
jax: 0.10.0
libtpu: 0.0.40
codegen_flags: <defaults>
</compile_context>

<pallas_src>
import numpy as np
import jax
import jax.numpy as jnp
from jax.experimental import pallas as pl
from jax.experimental.pallas import tpu as pltpu


_LANE = 128
_VMEM_LIMIT = 32 * 1024 * 1024  # safe on v5e/v6e/v7x; above v5e's 16 MiB default


def _pad_to(x, m):
    return ((x + m - 1) // m) * m


# ----------------------------- Pallas kernels ------------------------------

def _make_conv1_kernel(H, W, c_splits, cout_pad):
    """Fused channel-concat 3x3 'same' conv on one image per grid step.
    Builds a VMEM im2col (H*W, 9*sum(c)) from the pre-padded inputs and runs a
    single MXU dot against the pre-flattened weight.  Also accumulates the
    per-channel sum / sum-of-squares (BatchNorm batch statistics) per core."""
    n_in = len(c_splits)

    def kernel(*refs):
        x_refs = refs[:n_in]
        w_ref = refs[n_in]                               # (9*sum(c), cout_pad) bf16
        y_ref, sum_ref, sq_ref = refs[n_in + 1:n_in + 4]
        col_ref = refs[n_in + 4]                         # VMEM (H*W, 9*sum(c)) bf16

        # im2col: 9 shifted copies per input; every column is rewritten each
        # step, so no zero-init of the scratch is needed.
        base = 0
        for x_ref, c in zip(x_refs, c_splits):
            x = x_ref[0]                                 # (H+2, W+2, c) bf16
            for dy in range(3):
                for dx in range(3):
                    t = dy * 3 + dx
                    col_ref[:, base + t * c:base + t * c + c] = (
                        x[dy:dy + H, dx:dx + W, :].reshape(H * W, c))
            base += 9 * c

        acc = jnp.dot(col_ref[...], w_ref[...],
                      preferred_element_type=jnp.float32)    # (H*W, cout_pad) f32
        y_ref[...] = acc.reshape(1, H * W, cout_pad)

        # Per-core BN-stat accumulators (resident across the inner batch axis).
        @pl.when(pl.program_id(1) == 0)
        def _():
            sum_ref[...] = jnp.zeros_like(sum_ref)
            sq_ref[...] = jnp.zeros_like(sq_ref)

        sum_ref[...] += jnp.sum(acc, axis=0).reshape(1, 1, cout_pad)
        sq_ref[...] += jnp.sum(acc * acc, axis=0).reshape(1, 1, cout_pad)

    return kernel


def _make_conv2_kernel(H, W, cin_pad, cout_pad):
    """BN(scale/shift)+ReLU of the previous conv fused into this conv's input
    path, then a 3x3 'same' conv as one im2col dot.  The 1-px halo lives in a
    zeroed VMEM scratch so the padded border stays exactly 0."""
    def kernel(y1_ref, sc_ref, sh_ref, w_ref, y_ref, sum_ref, sq_ref,
               apad_ref, col_ref):
        @pl.when(pl.program_id(1) == 0)
        def _():
            apad_ref[...] = jnp.zeros_like(apad_ref)     # zero halo, once per core
            sum_ref[...] = jnp.zeros_like(sum_ref)
            sq_ref[...] = jnp.zeros_like(sq_ref)

        # Fused BatchNorm affine + ReLU of the previous conv output (f32).
        a = jnp.maximum(y1_ref[0] * sc_ref[...] + sh_ref[...], 0.0)
        apad_ref[1:H + 1, 1:W + 1, :] = (
            a.astype(jnp.bfloat16).reshape(H, W, cin_pad))

        # im2col: per-tap slices are full-lane (cin_pad is a lane multiple).
        for dy in range(3):
            for dx in range(3):
                t = dy * 3 + dx
                col_ref[:, t * cin_pad:(t + 1) * cin_pad] = (
                    apad_ref[dy:dy + H, dx:dx + W, :].reshape(H * W, cin_pad))

        acc = jnp.dot(col_ref[...], w_ref[...],
                      preferred_element_type=jnp.float32)
        y_ref[...] = acc.reshape(1, H * W, cout_pad)

        sum_ref[...] += jnp.sum(acc, axis=0).reshape(1, 1, cout_pad)
        sq_ref[...] += jnp.sum(acc * acc, axis=0).reshape(1, 1, cout_pad)

    return kernel


def _bn_relu_kernel(x_ref, scale_ref, shift_ref, o_ref):
    # fused BatchNorm affine + ReLU:  max(x*scale + shift, 0)
    o_ref[...] = jnp.maximum(x_ref[...] * scale_ref[...] + shift_ref[...], 0.0)


# ------------------------------ Pallas wrappers ------------------------------

def _batch_grid(n):
    # Outer "parallel" axis of size 2 unlocks v7x megacore; harmless on 1-TC chips.
    g = 2 if (n % 2 == 0 and n >= 2) else 1
    return g, n // g


def conv1_bn_stats(x_pads, w_flat, cout_pad):
    """x_pads: list of (N, H+2, W+2, Ci) bf16 (already halo+alignment padded).
    w_flat: (9*sum(Ci), cout_pad) bf16.  Returns raw conv y (N, H*W, cout_pad)
    f32 and per-channel sum / sum-of-squares, each (cout_pad,) f32."""
    n, hp, wp, _ = x_pads[0].shape
    h, w = hp - 2, wp - 2
    c_splits = [int(x.shape[-1]) for x in x_pads]
    ktot = 9 * sum(c_splits)
    g, npg = _batch_grid(n)

    in_specs = [pl.BlockSpec((1, hp, wp, c),
                             lambda gi, bi: (gi * npg + bi, 0, 0, 0))
                for c in c_splits]
    in_specs.append(pl.BlockSpec((ktot, cout_pad), lambda gi, bi: (0, 0)))

    # TODO(synk): for production feature maps, tile H with a 1-row halo
    # (grid=(G, N//G, H//th)) so blocks stay well under v7x's 64 MiB VMEM and
    # v5e's scoped default; whole-image blocks are fine at these demo sizes.
    y, s, q = pl.pallas_call(
        _make_conv1_kernel(h, w, c_splits, cout_pad),
        out_shape=(jax.ShapeDtypeStruct((n, h * w, cout_pad), jnp.float32),
                   jax.ShapeDtypeStruct((g, 8, cout_pad), jnp.float32),
                   jax.ShapeDtypeStruct((g, 8, cout_pad), jnp.float32)),
        grid=(g, npg),
        in_specs=in_specs,
        out_specs=(pl.BlockSpec((1, h * w, cout_pad),
                                lambda gi, bi: (gi * npg + bi, 0, 0)),
                   pl.BlockSpec((1, 8, cout_pad), lambda gi, bi: (gi, 0, 0)),
                   pl.BlockSpec((1, 8, cout_pad), lambda gi, bi: (gi, 0, 0))),
        scratch_shapes=[pltpu.VMEM((h * w, ktot), jnp.bfloat16)],
        compiler_params=pltpu.CompilerParams(
            dimension_semantics=("parallel", "arbitrary"),
            vmem_limit_bytes=_VMEM_LIMIT),
    )(*x_pads, w_flat)
    return y, s[:, 0, :].sum(axis=0), q[:, 0, :].sum(axis=0)


def conv2_bn_stats(y1, scale1, shift1, w_flat, h, w, cin_pad, cout_pad):
    """BN+ReLU of y1 fused in, then conv3x3; returns raw conv y2 + BN stats."""
    n = y1.shape[0]
    g, npg = _batch_grid(n)
    y, s, q = pl.pallas_call(
        _make_conv2_kernel(h, w, cin_pad, cout_pad),
        out_shape=(jax.ShapeDtypeStruct((n, h * w, cout_pad), jnp.float32),
                   jax.ShapeDtypeStruct((g, 8, cout_pad), jnp.float32),
                   jax.ShapeDtypeStruct((g, 8, cout_pad), jnp.float32)),
        grid=(g, npg),
        in_specs=[pl.BlockSpec((1, h * w, cin_pad),
                               lambda gi, bi: (gi * npg + bi, 0, 0)),
                  pl.BlockSpec((1, cin_pad), lambda gi, bi: (0, 0)),
                  pl.BlockSpec((1, cin_pad), lambda gi, bi: (0, 0)),
                  pl.BlockSpec((9 * cin_pad, cout_pad), lambda gi, bi: (0, 0))],
        out_specs=(pl.BlockSpec((1, h * w, cout_pad),
                                lambda gi, bi: (gi * npg + bi, 0, 0)),
                   pl.BlockSpec((1, 8, cout_pad), lambda gi, bi: (gi, 0, 0)),
                   pl.BlockSpec((1, 8, cout_pad), lambda gi, bi: (gi, 0, 0))),
        scratch_shapes=[pltpu.VMEM((h + 2, w + 2, cin_pad), jnp.bfloat16),
                        pltpu.VMEM((h * w, 9 * cin_pad), jnp.bfloat16)],
        compiler_params=pltpu.CompilerParams(
            dimension_semantics=("parallel", "arbitrary"),
            vmem_limit_bytes=_VMEM_LIMIT),
    )(y1, scale1, shift1, w_flat)
    return y, s[:, 0, :].sum(axis=0), q[:, 0, :].sum(axis=0)


def bn_relu_rows(y2d, scale_row, shift_row, target_bytes=4 << 20):
    """max(y*scale+shift, 0) on a lane-dense (rows, Cpad) view, with
    byte-capped row tiles (keeps double-buffering alive at any size)."""
    m, k = y2d.shape
    cap = max(8, ((target_bytes // (k * 4)) // 8) * 8)
    if m <= cap:
        tm, mp = m, m
    else:
        tm = cap
        mp = _pad_to(m, tm)
        if mp != m:
            y2d = jnp.pad(y2d, ((0, mp - m), (0, 0)))
    out = pl.pallas_call(
        _bn_relu_kernel,
        out_shape=jax.ShapeDtypeStruct((mp, k), jnp.float32),
        grid=(mp // tm,),
        in_specs=[pl.BlockSpec((tm, k), lambda i: (i, 0)),
                  pl.BlockSpec((1, k), lambda i: (0, 0)),
                  pl.BlockSpec((1, k), lambda i: (0, 0))],
        out_specs=pl.BlockSpec((tm, k), lambda i: (i, 0)),
        compiler_params=pltpu.CompilerParams(
            dimension_semantics=("parallel",),
            vmem_limit_bytes=_VMEM_LIMIT),
    )(y2d, scale_row, shift_row)
    return out[:m] if mp != m else out


# ------------------------------- JAX glue -----------------------------------

def _prep_w1(w_oihw, c_splits, cout_pad):
    """OIHW -> (9*sum(Ci), cout_pad) bf16, blocked per concat input so the
    channel-concat is fused into conv1.  Row order within a block:
    (ky*3+kx)*Ci + ci (matches the kernel's im2col column layout)."""
    cout = w_oihw.shape[0]
    blocks, off = [], 0
    for c in c_splits:
        wb = jnp.transpose(w_oihw[:, off:off + c], (2, 3, 1, 0))   # (3,3,c,cout)
        blocks.append(wb.reshape(9 * c, cout))
        off += c
    wf = jnp.concatenate(blocks, axis=0)
    wf = jnp.pad(wf, ((0, 0), (0, cout_pad - cout)))
    return wf.astype(jnp.bfloat16)


def _prep_w2(w_oihw, cin_pad, cout_pad):
    """OIHW -> (9*cin_pad, cout_pad) bf16; rows (ky*3+kx)*cin_pad + ci."""
    cout, cin = w_oihw.shape[0], w_oihw.shape[1]
    wb = jnp.transpose(w_oihw, (2, 3, 1, 0))                       # (3,3,cin,cout)
    wb = jnp.pad(wb, ((0, 0), (0, 0), (0, cin_pad - cin), (0, cout_pad - cout)))
    return wb.reshape(9 * cin_pad, cout_pad).astype(jnp.bfloat16)


def _interp_matrix_1d_padded(size_in, size_out, pad_lo, pad_hi):
    """align_corners=True linear-interp matrix with zero pad rows folded in,
    so upsample + skip-alignment pad + conv halo pad is one matmul (static)."""
    if size_in == 1 or size_out == 1:
        core = np.zeros((size_out, size_in), np.float32)
        core[:, 0] = 1.0
    else:
        src = np.arange(size_out, dtype=np.float64) * (size_in - 1) / (size_out - 1)
        i0 = np.clip(np.floor(src).astype(np.int64), 0, size_in - 1)
        i1 = np.clip(i0 + 1, 0, size_in - 1)
        f = src - i0
        core = np.zeros((size_out, size_in), np.float64)
        core[np.arange(size_out), i0] += 1.0 - f
        core[np.arange(size_out), i1] += f
        core = core.astype(np.float32)
    m = np.zeros((pad_lo + size_out + pad_hi, size_in), np.float32)
    m[pad_lo:pad_lo + size_out] = core
    return jnp.asarray(m)


def _bn_scale_shift(ch_sum, ch_sumsq, gamma_pad, beta_pad, count, eps=1e-5):
    """BatchNorm2d training-mode scale/shift from fused per-channel sums.
    NOTE: E[x^2]-E[x]^2 in f32; for very large counts use a compensated sum."""
    mean = ch_sum / count
    var = jnp.maximum(ch_sumsq / count - mean * mean, 0.0)          # biased var
    scale = gamma_pad / jnp.sqrt(var + eps)
    shift = beta_pad - mean * scale
    return scale.reshape(1, -1), shift.reshape(1, -1)


def up_forward(x1_nchw, x2_nchw, params, eps=1e-5):
    """Forward of Up(in_channels, out_channels, bilinear=True). NCHW in/out."""
    x1 = jnp.transpose(x1_nchw, (0, 2, 3, 1)).astype(jnp.float32)
    x2 = jnp.transpose(x2_nchw, (0, 2, 3, 1)).astype(jnp.float32)
    n, h, w, c2 = x2.shape
    _, h1, w1, c1 = x1.shape
    diff_y, diff_x = h - 2 * h1, w - 2 * w1

    # Bilinear 2x upsample (align_corners=True), gather-free, with the
    # skip-alignment pad AND the 3x3 halo pad folded into the interp matrices.
    # TODO(synk): fold these two small matmuls into the conv1 kernel so the
    # upsampled x1 never round-trips HBM at all.
    mh = _interp_matrix_1d_padded(h1, 2 * h1, 1 + diff_y // 2, 1 + diff_y - diff_y // 2)
    mw = _interp_matrix_1d_padded(w1, 2 * w1, 1 + diff_x // 2, 1 + diff_x - diff_x // 2)
    x1p = jnp.einsum("oh,nhwc->nowc", mh, x1)
    x1p = jnp.einsum("pw,nowc->nopc", mw, x1p).astype(jnp.bfloat16)
    x2p = jnp.pad(x2, ((0, 0), (1, 1), (1, 1), (0, 0))).astype(jnp.bfloat16)

    cmid = params["w1"].shape[0]
    cout = params["w2"].shape[0]
    cmid_pad = _pad_to(cmid, _LANE)
    cout_pad = _pad_to(cout, _LANE)
    count = n * h * w

    # conv1: cat([x2, x1], ch) -> conv3x3(no bias) -> BN batch stats
    w1f = _prep_w1(params["w1"], [c2, c1], cmid_pad)
    y1, s1, q1 = conv1_bn_stats([x2p, x1p], w1f, cmid_pad)
    g1 = jnp.pad(params["g1"], (0, cmid_pad - cmid))
    b1 = jnp.pad(params["b1"], (0, cmid_pad - cmid))
    scale1, shift1 = _bn_scale_shift(s1, q1, g1, b1, count, eps)

    # conv2: BN+ReLU of y1 fused into the input path -> conv3x3 -> BN stats
    w2f = _prep_w2(params["w2"], cmid_pad, cout_pad)
    y2, s2, q2 = conv2_bn_stats(y1, scale1, shift1, w2f, h, w, cmid_pad, cout_pad)
    g2 = jnp.pad(params["g2"], (0, cout_pad - cout))
    b2 = jnp.pad(params["b2"], (0, cout_pad - cout))
    scale2, shift2 = _bn_scale_shift(s2, q2, g2, b2, count, eps)

    # final BN affine + ReLU (lane-dense); strip channel padding at the end.
    a2 = bn_relu_rows(y2.reshape(n * h * w, cout_pad), scale2, shift2)
    a2 = a2.reshape(n, h, w, cout_pad)[..., :cout]
    return jnp.transpose(a2, (0, 3, 1, 2))                          # back to NCHW


# --------------------------- pure-JAX reference ------------------------------

def _ref_bilinear_upsample(x_nhwc):
    n, h, w, c = x_nhwc.shape
    ho, wo = 2 * h, 2 * w

    def idx_frac(size_in, size_out):
        if size_in == 1 or size_out == 1:
            i = jnp.zeros((size_out,), jnp.int32)
            return i, i, jnp.zeros((size_out,), jnp.float32)
        src = jnp.arange(size_out, dtype=jnp.float32) * (size_in - 1) / (size_out - 1)
        i0 = jnp.clip(jnp.floor(src).astype(jnp.int32), 0, size_in - 1)
        i1 = jnp.clip(i0 + 1, 0, size_in - 1)
        return i0, i1, src - i0.astype(jnp.float32)

    h0, h1, fh = idx_frac(h, ho)
    w0, w1, fw = idx_frac(w, wo)
    xh = (x_nhwc[:, h0] * (1.0 - fh)[None, :, None, None]
          + x_nhwc[:, h1] * fh[None, :, None, None])
    return (xh[:, :, w0] * (1.0 - fw)[None, None, :, None]
            + xh[:, :, w1] * fw[None, None, :, None])


def _ref_conv_bn_relu(x_nhwc, w_oihw, gamma, beta, eps=1e-5):
    y = jax.lax.conv_general_dilated(
        x_nhwc, jnp.transpose(w_oihw, (2, 3, 1, 0)),
        window_strides=(1, 1), padding="SAME",
        dimension_numbers=("NHWC", "HWIO", "NHWC"))
    mean = jnp.mean(y, axis=(0, 1, 2))
    var = jnp.mean((y - mean) ** 2, axis=(0, 1, 2))
    y = (y - mean) / jnp.sqrt(var + eps) * gamma + beta
    return jnp.maximum(y, 0.0)


def _ref_up_forward(x1_nchw, x2_nchw, params):
    x1 = jnp.transpose(x1_nchw, (0, 2, 3, 1)).astype(jnp.float32)
    x2 = jnp.transpose(x2_nchw, (0, 2, 3, 1)).astype(jnp.float32)
    x1 = _ref_bilinear_upsample(x1)
    diff_y = x2.shape[1] - x1.shape[1]
    diff_x = x2.shape[2] - x1.shape[2]
    x1 = jnp.pad(x1, ((0, 0),
                      (diff_y // 2, diff_y - diff_y // 2),
                      (diff_x // 2, diff_x - diff_x // 2),
                      (0, 0)))
    x = jnp.concatenate([x2, x1], axis=-1)
    h = _ref_conv_bn_relu(x, params["w1"], params["g1"], params["b1"])
    h = _ref_conv_bn_relu(h, params["w2"], params["g2"], params["b2"])
    return jnp.transpose(h, (0, 3, 1, 2))


# --------------------------------- main --------------------------------------

if __name__ == "__main__":
    key = jax.random.PRNGKey(0)
    k1, k2, k3, k4 = jax.random.split(key, 4)

    # Up(in_channels=8, out_channels=4, bilinear=True)
    in_channels, out_channels = 8, 4
    mid_channels = in_channels // 2            # DoubleConv mid

    N, H, W = 2, 8, 8
    x1 = jax.random.normal(k1, (N, in_channels // 2, H, W), jnp.float32)          # deep feature
    x2 = jax.random.normal(k2, (N, in_channels // 2, 2 * H, 2 * W), jnp.float32)  # skip feature

    params = {
        # Conv2d weights, OIHW (no bias); BatchNorm default init (gamma=1, beta=0).
        "w1": 0.1 * jax.random.normal(k3, (mid_channels, in_channels, 3, 3), jnp.float32),
        "g1": jnp.ones((mid_channels,), jnp.float32),
        "b1": jnp.zeros((mid_channels,), jnp.float32),
        "w2": 0.1 * jax.random.normal(k4, (out_channels, mid_channels, 3, 3), jnp.float32),
        "g2": jnp.ones((out_channels,), jnp.float32),
        "b2": jnp.zeros((out_channels,), jnp.float32),
    }

    out = jax.block_until_ready(up_forward(x1, x2, params))
    assert out.shape == (N, out_channels, 2 * H, 2 * W), out.shape

    ref = jax.block_until_ready(_ref_up_forward(x1, x2, params))
    # bf16 MXU inputs/weights vs. the f32 reference => a few e-2 tolerance.
    assert jnp.allclose(out, ref, atol=5e-2, rtol=5e-2), \
        float(jnp.max(jnp.abs(out - ref)))

    print("KERNEL_OK")
</pallas_src>

<mosaic_0001>
module attributes {stable_mosaic.version = 11 : i64} {
  func.func @kernel(%arg0: i32, %arg1: i32, %arg2: memref<1x18x18x4xbf16, #tpu.memory_space<vmem>>, %arg3: memref<1x18x18x4xbf16, #tpu.memory_space<vmem>>, %arg4: memref<72x128xbf16, #tpu.memory_space<vmem>>, %arg5: memref<1x256x128xf32, #tpu.memory_space<vmem>>, %arg6: memref<1x8x128xf32, #tpu.memory_space<vmem>>, %arg7: memref<1x8x128xf32, #tpu.memory_space<vmem>>, %arg8: memref<256x72xbf16, #tpu.memory_space<vmem>>) attributes {dimension_semantics = [#tpu.dimension_semantics<parallel>, #tpu.dimension_semantics<arbitrary>], iteration_bounds = array<i64: 2, 1>, scalar_prefetch = 0 : i64, scratch_operands = 1 : i64, tpu.core_type = #tpu.core_type<tc>, window_params = [{transform_indices = @transform_0, window_bounds = array<i64: 1, 18, 18, 4>}, {transform_indices = @transform_1, window_bounds = array<i64: 1, 18, 18, 4>}, {pipeline_mode = #tpu.pipeline_mode<synchronous>, transform_indices = @transform_2, window_bounds = array<i64: 72, 128>}, {transform_indices = @transform_3, window_bounds = array<i64: 1, 256, 128>}, {transform_indices = @transform_4, window_bounds = array<i64: 1, 8, 128>}, {transform_indices = @transform_5, window_bounds = array<i64: 1, 8, 128>}]} {
    %c0 = arith.constant 0 : index
    %c0_0 = arith.constant 0 : index
    %c0_1 = arith.constant 0 : index
    %c0_2 = arith.constant 0 : index
    %0 = vector.load %arg2[%c0, %c0_0, %c0_1, %c0_2] : memref<1x18x18x4xbf16, #tpu.memory_space<vmem>>, vector<1x18x18x4xbf16>
    %1 = vector.shape_cast %0 : vector<1x18x18x4xbf16> to vector<18x18x4xbf16>
    %2 = vector.extract_strided_slice %1 {offsets = [0, 0, 0], sizes = [16, 16, 4], strides = [1, 1, 1]} : vector<18x18x4xbf16> to vector<16x16x4xbf16>
    %3 = vector.shape_cast %2 : vector<16x16x4xbf16> to vector<256x4xbf16>
    %c0_3 = arith.constant 0 : index
    %c0_4 = arith.constant 0 : index
    %4 = vector.load %arg8[%c0_3, %c0_4] : memref<256x72xbf16, #tpu.memory_space<vmem>>, vector<256x4xbf16>
    tpu.vector_store %arg8[%c0_3, %c0_4], %3 {strides = array<i32>} : memref<256x72xbf16, #tpu.memory_space<vmem>>, vector<256x4xbf16>,
    %5 = vector.extract_strided_slice %1 {offsets = [0, 1, 0], sizes = [16, 16, 4], strides = [1, 1, 1]} : vector<18x18x4xbf16> to vector<16x16x4xbf16>
    %6 = vector.shape_cast %5 : vector<16x16x4xbf16> to vector<256x4xbf16>
    %c0_5 = arith.constant 0 : index
    %c4 = arith.constant 4 : index
    %7 = vector.load %arg8[%c0_5, %c4] : memref<256x72xbf16, #tpu.memory_space<vmem>>, vector<256x4xbf16>
    tpu.vector_store %arg8[%c0_5, %c4], %6 {strides = array<i32>} : memref<256x72xbf16, #tpu.memory_space<vmem>>, vector<256x4xbf16>,
    %8 = vector.extract_strided_slice %1 {offsets = [0, 2, 0], sizes = [16, 16, 4], strides = [1, 1, 1]} : vector<18x18x4xbf16> to vector<16x16x4xbf16>
    %9 = vector.shape_cast %8 : vector<16x16x4xbf16> to vector<256x4xbf16>
    %c0_6 = arith.constant 0 : index
    %c8 = arith.constant 8 : index
    %10 = vector.load %arg8[%c0_6, %c8] : memref<256x72xbf16, #tpu.memory_space<vmem>>, vector<256x4xbf16>
    tpu.vector_store %arg8[%c0_6, %c8], %9 {strides = array<i32>} : memref<256x72xbf16, #tpu.memory_space<vmem>>, vector<256x4xbf16>,
    %11 = vector.extract_strided_slice %1 {offsets = [1, 0, 0], sizes = [16, 16, 4], strides = [1, 1, 1]} : vector<18x18x4xbf16> to vector<16x16x4xbf16>
    %12 = vector.shape_cast %11 : vector<16x16x4xbf16> to vector<256x4xbf16>
    %c0_7 = arith.constant 0 : index
    %c12 = arith.constant 12 : index
    %13 = vector.load %arg8[%c0_7, %c12] : memref<256x72xbf16, #tpu.memory_space<vmem>>, vector<256x4xbf16>
    tpu.vector_store %arg8[%c0_7, %c12], %12 {strides = array<i32>} : memref<256x72xbf16, #tpu.memory_space<vmem>>, vector<256x4xbf16>,
    %14 = vector.extract_strided_slice %1 {offsets = [1, 1, 0], sizes = [16, 16, 4], strides = [1, 1, 1]} : vector<18x18x4xbf16> to vector<16x16x4xbf16>
    %15 = vector.shape_cast %14 : vector<16x16x4xbf16> to vector<256x4xbf16>
    %c0_8 = arith.constant 0 : index
    %c16 = arith.constant 16 : index
    %16 = vector.load %arg8[%c0_8, %c16] : memref<256x72xbf16, #tpu.memory_space<vmem>>, vector<256x4xbf16>
    tpu.vector_store %arg8[%c0_8, %c16], %15 {strides = array<i32>} : memref<256x72xbf16, #tpu.memory_space<vmem>>, vector<256x4xbf16>,
    %17 = vector.extract_strided_slice %1 {offsets = [1, 2, 0], sizes = [16, 16, 4], strides = [1, 1, 1]} : vector<18x18x4xbf16> to vector<16x16x4xbf16>
    %18 = vector.shape_cast %17 : vector<16x16x4xbf16> to vector<256x4xbf16>
    %c0_9 = arith.constant 0 : index
    %c20 = arith.constant 20 : index
    %19 = vector.load %arg8[%c0_9, %c20] : memref<256x72xbf16, #tpu.memory_space<vmem>>, vector<256x4xbf16>
    tpu.vector_store %arg8[%c0_9, %c20], %18 {strides = array<i32>} : memref<256x72xbf16, #tpu.memory_space<vmem>>, vector<256x4xbf16>,
    %20 = vector.extract_strided_slice %1 {offsets = [2, 0, 0], sizes = [16, 16, 4], strides = [1, 1, 1]} : vector<18x18x4xbf16> to vector<16x16x4xbf16>
    %21 = vector.shape_cast %20 : vector<16x16x4xbf16> to vector<256x4xbf16>
    %c0_10 = arith.constant 0 : index
    %c24 = arith.constant 24 : index
    %22 = vector.load %arg8[%c0_10, %c24] : memref<256x72xbf16, #tpu.memory_space<vmem>>, vector<256x4xbf16>
    tpu.vector_store %arg8[%c0_10, %c24], %21 {strides = array<i32>} : memref<256x72xbf16, #tpu.memory_space<vmem>>, vector<256x4xbf16>,
    %23 = vector.extract_strided_slice %1 {offsets = [2, 1, 0], sizes = [16, 16, 4], strides = [1, 1, 1]} : vector<18x18x4xbf16> to vector<16x16x4xbf16>
    %24 = vector.shape_cast %23 : vector<16x16x4xbf16> to vector<256x4xbf16>
    %c0_11 = arith.constant 0 : index
    %c28 = arith.constant 28 : index
    %25 = vector.load %arg8[%c0_11, %c28] : memref<256x72xbf16, #tpu.memory_space<vmem>>, vector<256x4xbf16>
    tpu.vector_store %arg8[%c0_11, %c28], %24 {strides = array<i32>} : memref<256x72xbf16, #tpu.memory_space<vmem>>, vector<256x4xbf16>,
    %26 = vector.extract_strided_slice %1 {offsets = [2, 2, 0], sizes = [16, 16, 4], strides = [1, 1, 1]} : vector<18x18x4xbf16> to vector<16x16x4xbf16>
    %27 = vector.shape_cast %26 : vector<16x16x4xbf16> to vector<256x4xbf16>
    %c0_12 = arith.constant 0 : index
    %c32 = arith.constant 32 : index
    %28 = vector.load %arg8[%c0_12, %c32] : memref<256x72xbf16, #tpu.memory_space<vmem>>, vector<256x4xbf16>
    tpu.vector_store %arg8[%c0_12, %c32], %27 {strides = array<i32>} : memref<256x72xbf16, #tpu.memory_space<vmem>>, vector<256x4xbf16>,
    %c0_13 = arith.constant 0 : index
    %c0_14 = arith.constant 0 : index
    %c0_15 = arith.constant 0 : index
    %c0_16 = arith.constant 0 : index
    %29 = vector.load %arg3[%c0_13, %c0_14, %c0_15, %c0_16] : memref<1x18x18x4xbf16, #tpu.memory_space<vmem>>, vector<1x18x18x4xbf16>
    %30 = vector.shape_cast %29 : vector<1x18x18x4xbf16> to vector<18x18x4xbf16>
    %31 = vector.extract_strided_slice %30 {offsets = [0, 0, 0], sizes = [16, 16, 4], strides = [1, 1, 1]} : vector<18x18x4xbf16> to vector<16x16x4xbf16>
    %32 = vector.shape_cast %31 : vector<16x16x4xbf16> to vector<256x4xbf16>
    %c0_17 = arith.constant 0 : index
    %c36 = arith.constant 36 : index
    %33 = vector.load %arg8[%c0_17, %c36] : memref<256x72xbf16, #tpu.memory_space<vmem>>, vector<256x4xbf16>
    tpu.vector_store %arg8[%c0_17, %c36], %32 {strides = array<i32>} : memref<256x72xbf16, #tpu.memory_space<vmem>>, vector<256x4xbf16>,
    %34 = vector.extract_strided_slice %30 {offsets = [0, 1, 0], sizes = [16, 16, 4], strides = [1, 1, 1]} : vector<18x18x4xbf16> to vector<16x16x4xbf16>
    %35 = vector.shape_cast %34 : vector<16x16x4xbf16> to vector<256x4xbf16>
    %c0_18 = arith.constant 0 : index
    %c40 = arith.constant 40 : index
    %36 = vector.load %arg8[%c0_18, %c40] : memref<256x72xbf16, #tpu.memory_space<vmem>>, vector<256x4xbf16>
    tpu.vector_store %arg8[%c0_18, %c40], %35 {strides = array<i32>} : memref<256x72xbf16, #tpu.memory_space<vmem>>, vector<256x4xbf16>,
    %37 = vector.extract_strided_slice %30 {offsets = [0, 2, 0], sizes = [16, 16, 4], strides = [1, 1, 1]} : vector<18x18x4xbf16> to vector<16x16x4xbf16>
    %38 = vector.shape_cast %37 : vector<16x16x4xbf16> to vector<256x4xbf16>
    %c0_19 = arith.constant 0 : index
    %c44 = arith.constant 44 : index
    %39 = vector.load %arg8[%c0_19, %c44] : memref<256x72xbf16, #tpu.memory_space<vmem>>, vector<256x4xbf16>
    tpu.vector_store %arg8[%c0_19, %c44], %38 {strides = array<i32>} : memref<256x72xbf16, #tpu.memory_space<vmem>>, vector<256x4xbf16>,
    %40 = vector.extract_strided_slice %30 {offsets = [1, 0, 0], sizes = [16, 16, 4], strides = [1, 1, 1]} : vector<18x18x4xbf16> to vector<16x16x4xbf16>
    %41 = vector.shape_cast %40 : vector<16x16x4xbf16> to vector<256x4xbf16>
    %c0_20 = arith.constant 0 : index
    %c48 = arith.constant 48 : index
    %42 = vector.load %arg8[%c0_20, %c48] : memref<256x72xbf16, #tpu.memory_space<vmem>>, vector<256x4xbf16>
    tpu.vector_store %arg8[%c0_20, %c48], %41 {strides = array<i32>} : memref<256x72xbf16, #tpu.memory_space<vmem>>, vector<256x4xbf16>,
    %43 = vector.extract_strided_slice %30 {offsets = [1, 1, 0], sizes = [16, 16, 4], strides = [1, 1, 1]} : vector<18x18x4xbf16> to vector<16x16x4xbf16>
    %44 = vector.shape_cast %43 : vector<16x16x4xbf16> to vector<256x4xbf16>
    %c0_21 = arith.constant 0 : index
    %c52 = arith.constant 52 : index
    %45 = vector.load %arg8[%c0_21, %c52] : memref<256x72xbf16, #tpu.memory_space<vmem>>, vector<256x4xbf16>
    tpu.vector_store %arg8[%c0_21, %c52], %44 {strides = array<i32>} : memref<256x72xbf16, #tpu.memory_space<vmem>>, vector<256x4xbf16>,
    %46 = vector.extract_strided_slice %30 {offsets = [1, 2, 0], sizes = [16, 16, 4], strides = [1, 1, 1]} : vector<18x18x4xbf16> to vector<16x16x4xbf16>
    %47 = vector.shape_cast %46 : vector<16x16x4xbf16> to vector<256x4xbf16>
    %c0_22 = arith.constant 0 : index
    %c56 = arith.constant 56 : index
    %48 = vector.load %arg8[%c0_22, %c56] : memref<256x72xbf16, #tpu.memory_space<vmem>>, vector<256x4xbf16>
    tpu.vector_store %arg8[%c0_22, %c56], %47 {strides = array<i32>} : memref<256x72xbf16, #tpu.memory_space<vmem>>, vector<256x4xbf16>,
    %49 = vector.extract_strided_slice %30 {offsets = [2, 0, 0], sizes = [16, 16, 4], strides = [1, 1, 1]} : vector<18x18x4xbf16> to vector<16x16x4xbf16>
    %50 = vector.shape_cast %49 : vector<16x16x4xbf16> to vector<256x4xbf16>
    %c0_23 = arith.constant 0 : index
    %c60 = arith.constant 60 : index
    %51 = vector.load %arg8[%c0_23, %c60] : memref<256x72xbf16, #tpu.memory_space<vmem>>, vector<256x4xbf16>
    tpu.vector_store %arg8[%c0_23, %c60], %50 {strides = array<i32>} : memref<256x72xbf16, #tpu.memory_space<vmem>>, vector<256x4xbf16>,
    %52 = vector.extract_strided_slice %30 {offsets = [2, 1, 0], sizes = [16, 16, 4], strides = [1, 1, 1]} : vector<18x18x4xbf16> to vector<16x16x4xbf16>
    %53 = vector.shape_cast %52 : vector<16x16x4xbf16> to vector<256x4xbf16>
    %c0_24 = arith.constant 0 : index
    %c64 = arith.constant 64 : index
    %54 = vector.load %arg8[%c0_24, %c64] : memref<256x72xbf16, #tpu.memory_space<vmem>>, vector<256x4xbf16>
    tpu.vector_store %arg8[%c0_24, %c64], %53 {strides = array<i32>} : memref<256x72xbf16, #tpu.memory_space<vmem>>, vector<256x4xbf16>,
    %55 = vector.extract_strided_slice %30 {offsets = [2, 2, 0], sizes = [16, 16, 4], strides = [1, 1, 1]} : vector<18x18x4xbf16> to vector<16x16x4xbf16>
    %56 = vector.shape_cast %55 : vector<16x16x4xbf16> to vector<256x4xbf16>
    %c0_25 = arith.constant 0 : index
    %c68 = arith.constant 68 : index
    %57 = vector.load %arg8[%c0_25, %c68] : memref<256x72xbf16, #tpu.memory_space<vmem>>, vector<256x4xbf16>
    tpu.vector_store %arg8[%c0_25, %c68], %56 {strides = array<i32>} : memref<256x72xbf16, #tpu.memory_space<vmem>>, vector<256x4xbf16>,
    %c0_26 = arith.constant 0 : index
    %c0_27 = arith.constant 0 : index
    %58 = vector.load %arg8[%c0_26, %c0_27] : memref<256x72xbf16, #tpu.memory_space<vmem>>, vector<256x72xbf16>
    %c0_28 = arith.constant 0 : index
    %c0_29 = arith.constant 0 : index
    %59 = vector.load %arg4[%c0_28, %c0_29] : memref<72x128xbf16, #tpu.memory_space<vmem>>, vector<72x128xbf16>
    %cst = arith.constant dense<0.000000e+00> : vector<256x128xf32>
    %60 = tpu.matmul %58, %59, %cst {dimension_numbers = #tpu.dot_dimension_numbers<[1], [0], [0], [1], [0, 0, 1, 1], [], []>} : vector<256x72xbf16>, vector<72x128xbf16>, vector<256x128xf32> -> vector<256x128xf32>
    %61 = vector.shape_cast %60 : vector<256x128xf32> to vector<1x256x128xf32>
    %c0_30 = arith.constant 0 : index
    %c0_31 = arith.constant 0 : index
    %c0_32 = arith.constant 0 : index
    %62 = vector.load %arg5[%c0_30, %c0_31, %c0_32] : memref<1x256x128xf32, #tpu.memory_space<vmem>>, vector<1x256x128xf32>
    tpu.vector_store %arg5[%c0_30, %c0_31, %c0_32], %61 {strides = array<i32>} : memref<1x256x128xf32, #tpu.memory_space<vmem>>, vector<1x256x128xf32>,
    %c0_i32 = arith.constant 0 : i32
    %63 = arith.cmpi eq, %arg1, %c0_i32 : i32
    %64 = arith.extui %63 : i1 to i32
    %c0_i32_33 = arith.constant 0 : i32
    %65 = arith.cmpi ne, %64, %c0_i32_33 : i32
    scf.if %65 {
      %cst_48 = arith.constant 0.000000e+00 : f32
      %79 = vector.broadcast %cst_48 : f32 to vector<1x8x128xf32>
      %c0_49 = arith.constant 0 : index
      %c0_50 = arith.constant 0 : index
      %c0_51 = arith.constant 0 : index
      %80 = vector.load %arg6[%c0_49, %c0_50, %c0_51] : memref<1x8x128xf32, #tpu.memory_space<vmem>>, vector<1x8x128xf32>
      tpu.vector_store %arg6[%c0_49, %c0_50, %c0_51], %79 {strides = array<i32>} : memref<1x8x128xf32, #tpu.memory_space<vmem>>, vector<1x8x128xf32>,
      %cst_52 = arith.constant 0.000000e+00 : f32
      %81 = vector.broadcast %cst_52 : f32 to vector<1x8x128xf32>
      %c0_53 = arith.constant 0 : index
      %c0_54 = arith.constant 0 : index
      %c0_55 = arith.constant 0 : index
      %82 = vector.load %arg7[%c0_53, %c0_54, %c0_55] : memref<1x8x128xf32, #tpu.memory_space<vmem>>, vector<1x8x128xf32>
      tpu.vector_store %arg7[%c0_53, %c0_54, %c0_55], %81 {strides = array<i32>} : memref<1x8x128xf32, #tpu.memory_space<vmem>>, vector<1x8x128xf32>,
    } else {
    }
    %c0_34 = arith.constant 0 : index
    %c0_35 = arith.constant 0 : index
    %c0_36 = arith.constant 0 : index
    %66 = vector.load %arg6[%c0_34, %c0_35, %c0_36] : memref<1x8x128xf32, #tpu.memory_space<vmem>>, vector<1x8x128xf32>
    %cst_37 = arith.constant dense<0.000000e+00> : vector<128xf32>
    %67 = vector.multi_reduction <add>, %60, %cst_37 [0] : vector<256x128xf32> to vector<128xf32>
    %68 = vector.shape_cast %67 : vector<128xf32> to vector<1x1x128xf32>
    %69 = vector.broadcast %68 : vector<1x1x128xf32> to vector<1x8x128xf32>
    %70 = arith.addf %66, %69 : vector<1x8x128xf32>
    %c0_38 = arith.constant 0 : index
    %c0_39 = arith.constant 0 : index
    %c0_40 = arith.constant 0 : index
    %71 = vector.load %arg6[%c0_38, %c0_39, %c0_40] : memref<1x8x128xf32, #tpu.memory_space<vmem>>, vector<1x8x128xf32>
    tpu.vector_store %arg6[%c0_38, %c0_39, %c0_40], %70 {strides = array<i32>} : memref<1x8x128xf32, #tpu.memory_space<vmem>>, vector<1x8x128xf32>,
    %c0_41 = arith.constant 0 : index
    %c0_42 = arith.constant 0 : index
    %c0_43 = arith.constant 0 : index
    %72 = vector.load %arg7[%c0_41, %c0_42, %c0_43] : memref<1x8x128xf32, #tpu.memory_space<vmem>>, vector<1x8x128xf32>
    %73 = arith.mulf %60, %60 : vector<256x128xf32>
    %cst_44 = arith.constant dense<0.000000e+00> : vector<128xf32>
    %74 = vector.multi_reduction <add>, %73, %cst_44 [0] : vector<256x128xf32> to vector<128xf32>
    %75 = vector.shape_cast %74 : vector<128xf32> to vector<1x1x128xf32>
    %76 = vector.broadcast %75 : vector<1x1x128xf32> to vector<1x8x128xf32>
    %77 = arith.addf %72, %76 : vector<1x8x128xf32>
    %c0_45 = arith.constant 0 : index
    %c0_46 = arith.constant 0 : index
    %c0_47 = arith.constant 0 : index
    %78 = vector.load %arg7[%c0_45, %c0_46, %c0_47] : memref<1x8x128xf32, #tpu.memory_space<vmem>>, vector<1x8x128xf32>
    tpu.vector_store %arg7[%c0_45, %c0_46, %c0_47], %77 {strides = array<i32>} : memref<1x8x128xf32, #tpu.memory_space<vmem>>, vector<1x8x128xf32>,
    return
  }
  func.func @transform_0(%arg0: i32, %arg1: i32) -> (i32, i32, i32, i32) {
    %c1_i32 = arith.constant 1 : i32
    %0 = arith.muli %arg0, %c1_i32 : i32
    %1 = arith.addi %0, %arg1 : i32
    %c0_i32 = arith.constant 0 : i32
    %c0_i32_0 = arith.constant 0 : i32
    %c0_i32_1 = arith.constant 0 : i32
    %c0_i32_2 = arith.constant 0 : i32
    return %1, %c0_i32, %c0_i32_0, %c0_i32_1 : i32, i32, i32, i32
  }
  func.func @transform_1(%arg0: i32, %arg1: i32) -> (i32, i32, i32, i32) {
    %c1_i32 = arith.constant 1 : i32
    %0 = arith.muli %arg0, %c1_i32 : i32
    %1 = arith.addi %0, %arg1 : i32
    %c0_i32 = arith.constant 0 : i32
    %c0_i32_0 = arith.constant 0 : i32
    %c0_i32_1 = arith.constant 0 : i32
    %c0_i32_2 = arith.constant 0 : i32
    return %1, %c0_i32, %c0_i32_0, %c0_i32_1 : i32, i32, i32, i32
  }
  func.func @transform_2(%arg0: i32, %arg1: i32) -> (i32, i32) {
    %c0_i32 = arith.constant 0 : i32
    %c0_i32_0 = arith.constant 0 : i32
    %c0_i32_1 = arith.constant 0 : i32
    return %c0_i32, %c0_i32_0 : i32, i32
  }
  func.func @transform_3(%arg0: i32, %arg1: i32) -> (i32, i32, i32) {
    %c1_i32 = arith.constant 1 : i32
    %0 = arith.muli %arg0, %c1_i32 : i32
    %1 = arith.addi %0, %arg1 : i32
    %c0_i32 = arith.constant 0 : i32
    %c0_i32_0 = arith.constant 0 : i32
    %c0_i32_1 = arith.constant 0 : i32
    return %1, %c0_i32, %c0_i32_0 : i32, i32, i32
  }
  func.func @transform_4(%arg0: i32, %arg1: i32) -> (i32, i32, i32) {
    %c0_i32 = arith.constant 0 : i32
    %c0_i32_0 = arith.constant 0 : i32
    %c0_i32_1 = arith.constant 0 : i32
    return %arg0, %c0_i32, %c0_i32_0 : i32, i32, i32
  }
  func.func @transform_5(%arg0: i32, %arg1: i32) -> (i32, i32, i32) {
    %c0_i32 = arith.constant 0 : i32
    %c0_i32_0 = arith.constant 0 : i32
    %c0_i32_1 = arith.constant 0 : i32
    return %arg0, %c0_i32, %c0_i32_0 : i32, i32, i32
  }
}

</mosaic_0001>

<llo_original>
// kernel: tpu_custom_call.1
$region0: #{tpu_custom_call.1}
  #allocation0 [shape = 'u32[]', space=smem, size = 0x4, offset = 0x4, fixed_abs, tag = 'smem constant byte address 0x4 - core index']
  #allocation1 [shape = 'u32[144,128]{1,0:T(1,128)}', space=vmem, size = 0x12000, scoped, tag = 'internal scratch']
  #allocation2 [shape = 'bf16[256,72]{1,0:T(16,128)(2,1)}', space=vmem, size = 0x10000, scoped, tag = 'scratch operand']
  %s0 = inlined_call_operand.vmem [shape: bf16[2,18,18,4], index: 0, kind: input, shape index: {}]
  %s1 = inlined_call_operand.vmem [shape: bf16[2,18,18,4], index: 1, kind: input, shape index: {}]
  %s2 = inlined_call_operand.vmem [shape: bf16[72,128], index: 2, kind: input, shape index: {}]
  %s3 = inlined_call_operand.hbm [shape: f32[2,256,128], index: 3, kind: output, shape index: {0}]
  %s4 = inlined_call_operand.hbm [shape: f32[2,8,128], index: 4, kind: output, shape index: {1}]
  %s5 = inlined_call_operand.hbm [shape: f32[2,8,128], index: 5, kind: output, shape index: {2}]
  %6 = xla_tuple %s3, %s4, %s5
  %s7 = sld [smem:[#allocation0]]
  $region65: #{tpu_custom_call.1} parent=0
    _
  %s9 = ssub.s32 1, %s7
  %s10 = scalar_select 0, %s9, %s7
  $region1: #{tpu_custom_call.1} parent=0
    #allocation3 [shape = 'u8[262144]{0}', space=vmem, size = 0x40000, scoped, tag = 'output window, operand 0']
    #allocation4 [shape = 's32[2]{0}', space=sflag, size = 0x8, scoped, tag = 'scoped memory for tpu_custom_call.1']
    #allocation5 [shape = 'u8[8192]{0}', space=vmem, size = 0x2000, scoped, tag = 'output window, operand 1']
    #allocation6 [shape = 's32[2]{0}', space=sflag, size = 0x8, scoped, tag = 'scoped memory for tpu_custom_call.1']
    #allocation7 [shape = 'u8[8192]{0}', space=vmem, size = 0x2000, scoped, tag = 'output window, operand 2']
    %11 = vsyncpa [#allocation4], 0
    %s12 = scalar_lea.sflag [#allocation4], 1
    %13 = vsyncpa %s12, 0
    %14 = vsyncpa [#allocation6], 0
    %s15 = scalar_lea.sflag [#allocation6], 1
    %16 = vsyncpa %s15, 0
    loop: start=0, step=1, limit=4
    $region2: #{tpu_custom_call.1} parent=1 // loop_pre_header
      _
    $region3: #{tpu_custom_call.1} parent=1 // loop_header
      %s18 = sphi 0, %s22
      %p19 = scmp.ge.s32.totalorder %s18, 4
      %s25 = sphi 0, %s37
      %s26 = sphi 0, %s33
      %s27 = sphi 0, %s25
      %s28 = sphi 0, %s26
      %s29 = sphi 0, %s27
      %s30 = sphi 0, %s28
      %s42 = sphi 0, %s44
      %s45 = sphi 0, %s42
      %s46 = sphi 0, %s45
      %s62 = sphi 0, %s46
      %s70 = sphi 0, %s72
      %s73 = sphi 0, %s70
      %s74 = sphi 0, %s73
      %s90 = sphi 0, %s74
      %s94 = sphi 0, %s94
      %s96 = sphi 0, %s94
      %s97 = sphi 0, %s96
      %s111 = sphi 0, %s97
      %s119 = sphi 0, %s121
      %s122 = sphi 0, %s119
      %s123 = sphi 0, %s122
      %s139 = sphi 0, %s123
      %s145 = sphi 0, %s147
      %s148 = sphi 0, %s145
      %s149 = sphi 0, %s148
      %s165 = sphi 0, %s149
      %s171 = sphi 0, %s173
      %s174 = sphi 0, %s171
      %s175 = sphi 0, %s174
      %s191 = sphi 0, %s175
    $region4: #{tpu_custom_call.1} parent=1 // loop_header_branch
      %21 = sbr.rel (%p19) target = $region8
    $region5: #{tpu_custom_call.1} parent=1 // loop_body
      %s23 = ssub.s32 %s18, 1
      %s24 = ssub.s32 %s18, 2
      %s31 = sadd.s32 1, %s26
      %p32 = scmp.ge.s32.totalorder %s31, 1
      %s33 = scalar_select %p32, 0, %s31
      %s34 = sadd.s32 1, %s25
      %s35 = scalar_select %p32, %s34, %s25
      %p36 = scmp.ge.s32.totalorder %s35, 2
      %s37 = scalar_select %p36, 0, %s35
      %s38 = sadd.s32 %s25, %s26
      %s39 = sadd.s32 %s37, %s33
      %s40 = ssub.s32 %s38, %s39
      %p41 = scmp.eq.s32.totalorder %s40, 0
      %s43 = sadd.s32 %s42, 1
      %s44 = scalar_select %p41, %s42, %s43
      %p47 = pneg %p41
      %p48 = scmp.eq.s32.totalorder %s18, 1
      %p49 = por %p47, %p48
      %p50 = scmp.ne.s32.totalorder %s42, %s45
      %p51 = scmp.eq.s32.totalorder %s18, 0
      %p52 = por %p50, %p51
      %p53 = scmp.ne.s32.totalorder %s42, %s45
      %p54 = scmp.eq.s32.totalorder %s23, 1
      %p55 = por %p53, %p54
      %p56 = scmp.ne.s32.totalorder %s45, %s46
      %p57 = scmp.eq.s32.totalorder %s23, 0
      %p58 = por %p56, %p57
      %p59 = scmp.ne.s32.totalorder %s45, %s46
      %p60 = scmp.eq.s32.totalorder %s24, 1
      %p61 = por %p59, %p60
      %p63 = scmp.ne.s32.totalorder %s46, %s62
      %p64 = scmp.eq.s32.totalorder %s24, 0
      %p65 = por %p63, %p64
      %s66 = sadd.s32 %s25, %s26
      %s67 = sadd.s32 %s37, %s33
      %s68 = ssub.s32 %s66, %s67
      %p69 = scmp.eq.s32.totalorder %s68, 0
      %s71 = sadd.s32 %s70, 1
      %s72 = scalar_select %p69, %s70, %s71
      %p75 = pneg %p69
      %p76 = scmp.eq.s32.totalorder %s18, 1
      %p77 = por %p75, %p76
      %p78 = scmp.ne.s32.totalorder %s70, %s73
      %p79 = scmp.eq.s32.totalorder %s18, 0
      %p80 = por %p78, %p79
      %p81 = scmp.ne.s32.totalorder %s70, %s73
      %p82 = scmp.eq.s32.totalorder %s23, 1
      %p83 = por %p81, %p82
      %p84 = scmp.ne.s32.totalorder %s73, %s74
      %p85 = scmp.eq.s32.totalorder %s23, 0
      %p86 = por %p84, %p85
      %p87 = scmp.ne.s32.totalorder %s73, %s74
      %p88 = scmp.eq.s32.totalorder %s24, 1
      %p89 = por %p87, %p88
      %p91 = scmp.ne.s32.totalorder %s74, %s90
      %p92 = scmp.eq.s32.totalorder %s24, 0
      %p93 = por %p91, %p92
      %s95 = sadd.s32 %s94, 1
      %p98 = scmp.eq.s32.totalorder %s18, 1
      %p99 = scmp.ne.s32.totalorder %s94, %s96
      %p100 = scmp.eq.s32.totalorder %s18, 0
      %p101 = por %p99, %p100
      %p102 = scmp.ne.s32.totalorder %s94, %s96
      %p103 = scmp.eq.s32.totalorder %s23, 1
      %p104 = por %p102, %p103
      %p105 = scmp.ne.s32.totalorder %s96, %s97
      %p106 = scmp.eq.s32.totalorder %s23, 0
      %p107 = por %p105, %p106
      %p108 = scmp.ne.s32.totalorder %s96, %s97
      %p109 = scmp.eq.s32.totalorder %s24, 1
      %p110 = por %p108, %p109
      %p112 = scmp.ne.s32.totalorder %s97, %s111
      %p113 = scmp.eq.s32.totalorder %s24, 0
      %p114 = por %p112, %p113
      %s115 = sadd.s32 %s25, %s26
      %s116 = sadd.s32 %s37, %s33
      %s117 = ssub.s32 %s115, %s116
      %p118 = scmp.eq.s32.totalorder %s117, 0
      %s120 = sadd.s32 %s119, 1
      %s121 = scalar_select %p118, %s119, %s120
      %p124 = pneg %p118
      %p125 = scmp.eq.s32.totalorder %s18, 1
      %p126 = por %p124, %p125
      %p127 = scmp.ne.s32.totalorder %s119, %s122
      %p128 = scmp.eq.s32.totalorder %s18, 0
      %p129 = por %p127, %p128
      %p130 = scmp.ne.s32.totalorder %s119, %s122
      %p131 = scmp.eq.s32.totalorder %s23, 1
      %p132 = por %p130, %p131
      %p133 = scmp.ne.s32.totalorder %s122, %s123
      %p134 = scmp.eq.s32.totalorder %s23, 0
      %p135 = por %p133, %p134
      %p136 = scmp.ne.s32.totalorder %s122, %s123
      %p137 = scmp.eq.s32.totalorder %s24, 1
      %p138 = por %p136, %p137
      %p140 = scmp.ne.s32.totalorder %s123, %s139
      %p141 = scmp.eq.s32.totalorder %s24, 0
      %p142 = por %p140, %p141
      %s143 = ssub.s32 %s25, %s37
      %p144 = scmp.eq.s32.totalorder %s143, 0
      %s146 = sadd.s32 %s145, 1
      %s147 = scalar_select %p144, %s145, %s146
      %p150 = pneg %p144
      %p151 = scmp.eq.s32.totalorder %s18, 1
      %p152 = por %p150, %p151
      %p153 = scmp.ne.s32.totalorder %s145, %s148
      %p154 = scmp.eq.s32.totalorder %s18, 0
      %p155 = por %p153, %p154
      %p156 = scmp.ne.s32.totalorder %s145, %s148
      %p157 = scmp.eq.s32.totalorder %s23, 1
      %p158 = por %p156, %p157
      %p159 = scmp.ne.s32.totalorder %s148, %s149
      %p160 = scmp.eq.s32.totalorder %s23, 0
      %p161 = por %p159, %p160
      %p162 = scmp.ne.s32.totalorder %s148, %s149
      %p163 = scmp.eq.s32.totalorder %s24, 1
      %p164 = por %p162, %p163
      %p166 = scmp.ne.s32.totalorder %s149, %s165
      %p167 = scmp.eq.s32.totalorder %s24, 0
      %p168 = por %p166, %p167
      %s169 = ssub.s32 %s25, %s37
      %p170 = scmp.eq.s32.totalorder %s169, 0
      %s172 = sadd.s32 %s171, 1
      %s173 = scalar_select %p170, %s171, %s172
      %p176 = pneg %p170
      %p177 = scmp.eq.s32.totalorder %s18, 1
      %p178 = por %p176, %p177
      %p179 = scmp.ne.s32.totalorder %s171, %s174
      %p180 = scmp.eq.s32.totalorder %s18, 0
      %p181 = por %p179, %p180
      %p182 = scmp.ne.s32.totalorder %s171, %s174
      %p183 = scmp.eq.s32.totalorder %s23, 1
      %p184 = por %p182, %p183
      %p185 = scmp.ne.s32.totalorder %s174, %s175
      %p186 = scmp.eq.s32.totalorder %s23, 0
      %p187 = por %p185, %p186
      %p188 = scmp.ne.s32.totalorder %s174, %s175
      %p189 = scmp.eq.s32.totalorder %s24, 1
      %p190 = por %p188, %p189
      %p192 = scmp.ne.s32.totalorder %s175, %s191
      %p193 = scmp.eq.s32.totalorder %s24, 0
      %p194 = por %p192, %p193
      %p195 = scmp.le.s32.totalorder 1, %s18
      %p196 = scmp.lt.s32.totalorder %s18, 3
      %p197 = pnand %p195, %p196
      %p198 = pneg %p197
      // Predicated region
      $region9: #{tpu_custom_call.1} parent=5 // pred_check
        _
      $region10: #{tpu_custom_call.1} parent=5 // pred_check_branch
        %200 = sbr.rel (%p197) target = $region12
      $region11: #{tpu_custom_call.1} parent=5 // pred_region
        %s201 = ssub.s32 %s18, 1
        // Predicated region
        $region13: #{tpu_custom_call.1} parent=11 // pred_check
          %p202 = pneg %p107
        $region14: #{tpu_custom_call.1} parent=11 // pred_check_branch
          %204 = sbr.rel (%p202) target = $region16
        $region15: #{tpu_custom_call.1} parent=11 // pred_region
          _
        $region16: #{tpu_custom_call.1} parent=11 // pred_fallthru
          _
      $region12: #{tpu_custom_call.1} parent=5 // pred_fallthru
        _
      %p205 = scmp.lt.s32.totalorder %s18, 2
      // Predicated region
      $region17: #{tpu_custom_call.1} parent=5 // pred_check
        %p206 = pneg %p205
      $region18: #{tpu_custom_call.1} parent=5 // pred_check_branch
        %208 = sbr.rel (%p206) target = $region20
      $region19: #{tpu_custom_call.1} parent=5 // pred_region
        // Predicated region
        $region21: #{tpu_custom_call.1} parent=19 // pred_check
          %p209 = pneg %p52
        $region22: #{tpu_custom_call.1} parent=19 // pred_check_branch
          %211 = sbr.rel (%p209) target = $region24
        $region23: #{tpu_custom_call.1} parent=19 // pred_region
          %s212 = sadd.s32 %s25, %s26
          %p213 = scmp.lt.s32.totalorder %s212, 1
          %s214 = scalar_select %p213, %s212, 1
          %s215 = smul.addr %s214, 54
          %s216 = smul.addr %s215, 4
          %s217 = scalar_lea.vmem %s0, %s216
          %s218 = sadd.s32 %s25, %s26
        $region24: #{tpu_custom_call.1} parent=19 // pred_fallthru
          _
        // Predicated region
        $region25: #{tpu_custom_call.1} parent=19 // pred_check
          %p219 = pneg %p80
        $region26: #{tpu_custom_call.1} parent=19 // pred_check_branch
          %221 = sbr.rel (%p219) target = $region28
        $region27: #{tpu_custom_call.1} parent=19 // pred_region
          %s222 = sadd.s32 %s25, %s26
          %p223 = scmp.lt.s32.totalorder %s222, 1
          %s224 = scalar_select %p223, %s222, 1
          %s225 = smul.addr %s224, 54
          %s226 = smul.addr %s225, 4
          %s227 = scalar_lea.vmem %s1, %s226
          %s228 = sadd.s32 %s25, %s26
        $region28: #{tpu_custom_call.1} parent=19 // pred_fallthru
          _
      $region20: #{tpu_custom_call.1} parent=5 // pred_fallthru
        _
      %p229 = scmp.le.s32.totalorder 1, %s18
      %p230 = scmp.lt.s32.totalorder %s18, 3
      %p231 = pnand %p229, %p230
      %p232 = pneg %p231
      // Predicated region
      $region29: #{tpu_custom_call.1} parent=5 // pred_check
        _
      $region30: #{tpu_custom_call.1} parent=5 // pred_check_branch
        %234 = sbr.rel (%p231) target = $region32
      $region31: #{tpu_custom_call.1} parent=5 // pred_region
        %s235 = ssub.s32 %s18, 1
        %s236 = sadd.s32 %s27, %s28
        %p237 = scmp.lt.s32.totalorder %s236, 1
        %s238 = scalar_select %p237, %s236, 1
        %s239 = smul.addr %s238, 54
        %s240 = smul.addr %s239, 4
        %s241 = scalar_lea.vmem %s0, %s240
        %p242 = pneg %p58
        %p243 = pneg %p55
        %s244 = sadd.s32 %s27, %s28
        %p245 = scmp.lt.s32.totalorder %s244, 1
        %s246 = scalar_select %p245, %s244, 1
        %s247 = smul.addr %s246, 54
        %s248 = smul.addr %s247, 4
        %s249 = scalar_lea.vmem %s1, %s248
        %p250 = pneg %p86
        %p251 = pneg %p83
        %p252 = pneg %p107
        %p253 = pneg %p104
        %p254 = pneg %p135
        %p255 = pneg %p132
        %s256 = sand.u32 %s122, 1
        %s257 = scalar_lea.sflag [#allocation4], %s256
        %s258 = sand.u32 %s122, 1
        %s259 = smul.addr %s258, 256
        %s260 = scalar_lea.vmem [#allocation3], %s259
        %p261 = pneg %p161
        %p262 = pneg %p158
        %s263 = sand.u32 %s23, 1
        %s264 = scalar_lea.sflag [#allocation6], %s263
        %s265 = sand.u32 %s148, 1
        %s266 = smul.addr %s265, 8
        %s267 = scalar_lea.vmem [#allocation5], %s266
        %p268 = pneg %p187
        %p269 = pneg %p184
        %s270 = sand.u32 %s23, 1
        %s271 = scalar_lea.sflag [#allocation6], %s270
        %s272 = sand.u32 %s174, 1
        %s273 = smul.addr %s272, 8
        %s274 = scalar_lea.vmem [#allocation7], %s273
        %s275 = sadd.s32 %s27, %s28
        %p276 = scmp.lt.s32.totalorder %s275, 1
        %s277 = scalar_select %p276, %s275, 1
        %s278 = smul.addr %s277, 54
        %s279 = smul.addr %s278, 4
        %s280 = scalar_lea.vmem %s0, %s279
        %s281 = sadd.s32 %s27, %s28
        %s282 = sadd.s32 %s27, %s28
        %p283 = scmp.lt.s32.totalorder %s282, 1
        %s284 = scalar_select %p283, %s282, 1
        %s285 = smul.addr %s284, 54
        %s286 = smul.addr %s285, 4
        %s287 = scalar_lea.vmem %s1, %s286
        %s288 = sadd.s32 %s27, %s28
        %s289 = sadd.s32 %s27, %s28
        %v291 = vld [vmem:[%s280] sm:$0xf]
        %v292 = vld [vmem:[%s280 + $0x4] sm:$0xf]
        %v293 = vld [vmem:[%s280 + $0x8] sm:$0x1]
        %v294 = vld [vmem:[%s280 + $0xc] sm:$0xf]
        %v295 = vld [vmem:[%s280 + $0x10] sm:$0xf]
        %v296 = vld [vmem:[%s280 + $0x14] sm:$0x1]
        %v297 = vld [vmem:[%s280 + $0x18] sm:$0xf]
        %v298 = vld [vmem:[%s280 + $0x1c] sm:$0xf]
        %v299 = vld [vmem:[%s280 + $0x20] sm:$0x1]
        %v300 = vld [vmem:[%s280 + $0x24] sm:$0xf]
        %v301 = vld [vmem:[%s280 + $0x28] sm:$0xf]
        %v302 = vld [vmem:[%s280 + $0x2c] sm:$0x1]
        %v303 = vld [vmem:[%s280 + $0x30] sm:$0xf]
        %v304 = vld [vmem:[%s280 + $0x34] sm:$0xf]
        %v305 = vld [vmem:[%s280 + $0x38] sm:$0x1]
        %v306 = vld [vmem:[%s280 + $0x3c] sm:$0xf]
        %v307 = vld [vmem:[%s280 + $0x40] sm:$0xf]
        %v308 = vld [vmem:[%s280 + $0x44] sm:$0x1]
        %v309 = vld [vmem:[%s280 + $0x48] sm:$0xf]
        %v310 = vld [vmem:[%s280 + $0x4c] sm:$0xf]
        %v311 = vld [vmem:[%s280 + $0x50] sm:$0x1]
        %v312 = vld [vmem:[%s280 + $0x54] sm:$0xf]
        %v313 = vld [vmem:[%s280 + $0x58] sm:$0xf]
        %v314 = vld [vmem:[%s280 + $0x5c] sm:$0x1]
        %v315 = vld [vmem:[%s280 + $0x60] sm:$0xf]
        %v316 = vld [vmem:[%s280 + $0x64] sm:$0xf]
        %v317 = vld [vmem:[%s280 + $0x68] sm:$0x1]
        %v318 = vld [vmem:[%s280 + $0x6c] sm:$0xf]
        %v319 = vld [vmem:[%s280 + $0x70] sm:$0xf]
        %v320 = vld [vmem:[%s280 + $0x74] sm:$0x1]
        %v321 = vld [vmem:[%s280 + $0x78] sm:$0xf]
        %v322 = vld [vmem:[%s280 + $0x7c] sm:$0xf]
        %v323 = vld [vmem:[%s280 + $0x80] sm:$0x1]
        %v324 = vld [vmem:[%s280 + $0x84] sm:$0xf]
        %v325 = vld [vmem:[%s280 + $0x88] sm:$0xf]
        %v326 = vld [vmem:[%s280 + $0x8c] sm:$0x1]
        %v327 = vld [vmem:[%s280 + $0x90] sm:$0xf]
        %v328 = vld [vmem:[%s280 + $0x94] sm:$0xf]
        %v329 = vld [vmem:[%s280 + $0x98] sm:$0x1]
        %v330 = vld [vmem:[%s280 + $0x9c] sm:$0xf]
        %v331 = vld [vmem:[%s280 + $0xa0] sm:$0xf]
        %v332 = vld [vmem:[%s280 + $0xa4] sm:$0x1]
        %v333 = vld [vmem:[%s280 + $0xa8] sm:$0xf]
        %v334 = vld [vmem:[%s280 + $0xac] sm:$0xf]
        %v335 = vld [vmem:[%s280 + $0xb0] sm:$0x1]
        %v336 = vld [vmem:[%s280 + $0xb4] sm:$0xf]
        %v337 = vld [vmem:[%s280 + $0xb8] sm:$0xf]
        %v338 = vld [vmem:[%s280 + $0xbc] sm:$0x1]
        %v339 = vld [vmem:[%s280 + $0xc0] sm:$0xf]
        %v340 = vld [vmem:[%s280 + $0xc4] sm:$0xf]
        %v341 = vld [vmem:[%s280 + $0xc8] sm:$0x1]
        %v342 = vld [vmem:[%s280 + $0xcc] sm:$0xf]
        %v343 = vld [vmem:[%s280 + $0xd0] sm:$0xf]
        %v344 = vld [vmem:[%s280 + $0xd4] sm:$0x1]
        %v377 = vunpack.c.l.b16 %v291
        %v378 = vunpack.c.l.b16 %v292
        %v379 = vunpack.c.l.b16 %v294
        %v380 = vunpack.c.l.b16 %v295
        %v381 = vunpack.c.l.b16 %v297
        %v382 = vunpack.c.l.b16 %v298
        %v383 = vunpack.c.l.b16 %v300
        %v384 = vunpack.c.l.b16 %v301
        %v385 = vunpack.c.l.b16 %v303
        %v386 = vunpack.c.l.b16 %v304
        %v387 = vunpack.c.l.b16 %v306
        %v388 = vunpack.c.l.b16 %v307
        %v389 = vunpack.c.l.b16 %v309
        %v390 = vunpack.c.l.b16 %v310
        %v391 = vunpack.c.l.b16 %v312
        %v392 = vunpack.c.l.b16 %v313
        %v393 = vunpack.c.l.b16 %v315
        %v394 = vunpack.c.l.b16 %v316
        %v395 = vunpack.c.l.b16 %v318
        %v396 = vunpack.c.l.b16 %v319
        %v397 = vunpack.c.l.b16 %v321
        %v398 = vunpack.c.l.b16 %v322
        %v399 = vunpack.c.l.b16 %v324
        %v400 = vunpack.c.l.b16 %v325
        %v401 = vunpack.c.l.b16 %v327
        %v402 = vunpack.c.l.b16 %v328
        %v403 = vunpack.c.l.b16 %v330
        %v404 = vunpack.c.l.b16 %v331
        %v405 = vunpack.c.l.b16 %v333
        %v406 = vunpack.c.l.b16 %v334
        %v407 = vunpack.c.l.b16 %v336
        %v408 = vunpack.c.l.b16 %v337
        %v409 = vpack.c.b16 %v378, %v377
        %v410 = vpack.c.b16 %v380, %v379
        %v411 = vpack.c.b16 %v382, %v381
        %v412 = vpack.c.b16 %v384, %v383
        %v413 = vpack.c.b16 %v386, %v385
        %v414 = vpack.c.b16 %v388, %v387
        %v415 = vpack.c.b16 %v390, %v389
        %v416 = vpack.c.b16 %v392, %v391
        %v417 = vpack.c.b16 %v394, %v393
        %v418 = vpack.c.b16 %v396, %v395
        %v419 = vpack.c.b16 %v398, %v397
        %v420 = vpack.c.b16 %v400, %v399
        %v421 = vpack.c.b16 %v402, %v401
        %v422 = vpack.c.b16 %v404, %v403
        %v423 = vpack.c.b16 %v406, %v405
        %v424 = vpack.c.b16 %v408, %v407
        %vm441 = vcmask 31744
        %442 = vst.msk [vmem:[#allocation2] sm:$0xff] %vm441, %v409
        %443 = vst.msk [vmem:[#allocation2 + $0x8] sm:$0xff] %vm441, %v410
        %444 = vst.msk [vmem:[#allocation2 + $0x10] sm:$0xff] %vm441, %v411
        %445 = vst.msk [vmem:[#allocation2 + $0x18] sm:$0xff] %vm441, %v412
        %446 = vst.msk [vmem:[#allocation2 + $0x20] sm:$0xff] %vm441, %v413
        %447 = vst.msk [vmem:[#allocation2 + $0x28] sm:$0xff] %vm441, %v414
        %448 = vst.msk [vmem:[#allocation2 + $0x30] sm:$0xff] %vm441, %v415
        %449 = vst.msk [vmem:[#allocation2 + $0x38] sm:$0xff] %vm441, %v416
        %450 = vst.msk [vmem:[#allocation2 + $0x40] sm:$0xff] %vm441, %v417
        %451 = vst.msk [vmem:[#allocation2 + $0x48] sm:$0xff] %vm441, %v418
        %452 = vst.msk [vmem:[#allocation2 + $0x50] sm:$0xff] %vm441, %v419
        %453 = vst.msk [vmem:[#allocation2 + $0x58] sm:$0xff] %vm441, %v420
        %454 = vst.msk [vmem:[#allocation2 + $0x60] sm:$0xff] %vm441, %v421
        %455 = vst.msk [vmem:[#allocation2 + $0x68] sm:$0xff] %vm441, %v422
        %456 = vst.msk [vmem:[#allocation2 + $0x70] sm:$0xff] %vm441, %v423
        %457 = vst.msk [vmem:[#allocation2 + $0x78] sm:$0xff] %vm441, %v424
        %vm458 = vsmask.f32 3328
        %vm459 = vsmask.f32 7440
        %vm460 = vmor %vm458, %vm459
        %v462 = vshrl.u32 %v291, 16
        %v464 = vrot.slane %v462, 4
        %v465 = vshll.u32 %v291, 16
        %v467 = vrot.slane %v465, 5
        %v468 = vor.u32 %v464, %v467
        %v469 = vrot.slane %v468, 4
        %v471 = vshll.u32 %v292, 16
        %v473 = vrot.slane %v471, 5
        %v474 = vsel %vm460, %v469, %v473
        %v475 = vshrl.u32 %v292, 16
        %v477 = vrot.slane %v475, 4
        %v478 = vor.u32 %v477, %v473
        %v479 = vrot.slane %v478, 4
        %v481 = vshll.u32 %v293, 16
        %v483 = vrot.slane %v481, 5
        %v484 = vsel %vm460, %v479, %v483
        %v486 = vshrl.u32 %v294, 16
        %v488 = vrot.slane %v486, 4
        %v489 = vshll.u32 %v294, 16
        %v491 = vrot.slane %v489, 5
        %v492 = vor.u32 %v488, %v491
        %v493 = vrot.slane %v492, 4
        %v495 = vshll.u32 %v295, 16
        %v497 = vrot.slane %v495, 5
        %v498 = vsel %vm460, %v493, %v497
        %v499 = vshrl.u32 %v295, 16
        %v501 = vrot.slane %v499, 4
        %v502 = vor.u32 %v501, %v497
        %v503 = vrot.slane %v502, 4
        %v505 = vshll.u32 %v296, 16
        %v507 = vrot.slane %v505, 5
        %v508 = vsel %vm460, %v503, %v507
        %v510 = vshrl.u32 %v297, 16
        %v512 = vrot.slane %v510, 4
        %v513 = vshll.u32 %v297, 16
        %v515 = vrot.slane %v513, 5
        %v516 = vor.u32 %v512, %v515
        %v517 = vrot.slane %v516, 4
        %v519 = vshll.u32 %v298, 16
        %v521 = vrot.slane %v519, 5
        %v522 = vsel %vm460, %v517, %v521
        %v523 = vshrl.u32 %v298, 16
        %v525 = vrot.slane %v523, 4
        %v526 = vor.u32 %v525, %v521
        %v527 = vrot.slane %v526, 4
        %v529 = vshll.u32 %v299, 16
        %v531 = vrot.slane %v529, 5
        %v532 = vsel %vm460, %v527, %v531
        %v534 = vshrl.u32 %v300, 16
        %v536 = vrot.slane %v534, 4
        %v537 = vshll.u32 %v300, 16
        %v539 = vrot.slane %v537, 5
        %v540 = vor.u32 %v536, %v539
        %v541 = vrot.slane %v540, 4
        %v543 = vshll.u32 %v301, 16
        %v545 = vrot.slane %v543, 5
        %v546 = vsel %vm460, %v541, %v545
        %v547 = vshrl.u32 %v301, 16
        %v549 = vrot.slane %v547, 4
        %v550 = vor.u32 %v549, %v545
        %v551 = vrot.slane %v550, 4
        %v553 = vshll.u32 %v302, 16
        %v555 = vrot.slane %v553, 5
        %v556 = vsel %vm460, %v551, %v555
        %v558 = vshrl.u32 %v303, 16
        %v560 = vrot.slane %v558, 4
        %v561 = vshll.u32 %v303, 16
        %v563 = vrot.slane %v561, 5
        %v564 = vor.u32 %v560, %v563
        %v565 = vrot.slane %v564, 4
        %v567 = vshll.u32 %v304, 16
        %v569 = vrot.slane %v567, 5
        %v570 = vsel %vm460, %v565, %v569
        %v571 = vshrl.u32 %v304, 16
        %v573 = vrot.slane %v571, 4
        %v574 = vor.u32 %v573, %v569
        %v575 = vrot.slane %v574, 4
        %v577 = vshll.u32 %v305, 16
        %v579 = vrot.slane %v577, 5
        %v580 = vsel %vm460, %v575, %v579
        %v582 = vshrl.u32 %v306, 16
        %v584 = vrot.slane %v582, 4
        %v585 = vshll.u32 %v306, 16
        %v587 = vrot.slane %v585, 5
        %v588 = vor.u32 %v584, %v587
        %v589 = vrot.slane %v588, 4
        %v591 = vshll.u32 %v307, 16
        %v593 = vrot.slane %v591, 5
        %v594 = vsel %vm460, %v589, %v593
        %v595 = vshrl.u32 %v307, 16
        %v597 = vrot.slane %v595, 4
        %v598 = vor.u32 %v597, %v593
        %v599 = vrot.slane %v598, 4
        %v601 = vshll.u32 %v308, 16
        %v603 = vrot.slane %v601, 5
        %v604 = vsel %vm460, %v599, %v603
        %v606 = vshrl.u32 %v309, 16
        %v608 = vrot.slane %v606, 4
        %v609 = vshll.u32 %v309, 16
        %v611 = vrot.slane %v609, 5
        %v612 = vor.u32 %v608, %v611
        %v613 = vrot.slane %v612, 4
        %v615 = vshll.u32 %v310, 16
        %v617 = vrot.slane %v615, 5
        %v618 = vsel %vm460, %v613, %v617
        %v619 = vshrl.u32 %v310, 16
        %v621 = vrot.slane %v619, 4
        %v622 = vor.u32 %v621, %v617
        %v623 = vrot.slane %v622, 4
        %v625 = vshll.u32 %v311, 16
        %v627 = vrot.slane %v625, 5
        %v628 = vsel %vm460, %v623, %v627
        %v630 = vshrl.u32 %v312, 16
        %v632 = vrot.slane %v630, 4
        %v633 = vshll.u32 %v312, 16
        %v635 = vrot.slane %v633, 5
        %v636 = vor.u32 %v632, %v635
        %v637 = vrot.slane %v636, 4
        %v639 = vshll.u32 %v313, 16
        %v641 = vrot.slane %v639, 5
        %v642 = vsel %vm460, %v637, %v641
        %v643 = vshrl.u32 %v313, 16
        %v645 = vrot.slane %v643, 4
        %v646 = vor.u32 %v645, %v641
        %v647 = vrot.slane %v646, 4
        %v649 = vshll.u32 %v314, 16
        %v651 = vrot.slane %v649, 5
        %v652 = vsel %vm460, %v647, %v651
        %v654 = vshrl.u32 %v315, 16
        %v656 = vrot.slane %v654, 4
        %v657 = vshll.u32 %v315, 16
        %v659 = vrot.slane %v657, 5
        %v660 = vor.u32 %v656, %v659
        %v661 = vrot.slane %v660, 4
        %v663 = vshll.u32 %v316, 16
        %v665 = vrot.slane %v663, 5
        %v666 = vsel %vm460, %v661, %v665
        %v667 = vshrl.u32 %v316, 16
        %v669 = vrot.slane %v667, 4
        %v670 = vor.u32 %v669, %v665
        %v671 = vrot.slane %v670, 4
        %v673 = vshll.u32 %v317, 16
        %v675 = vrot.slane %v673, 5
        %v676 = vsel %vm460, %v671, %v675
        %v678 = vshrl.u32 %v318, 16
        %v680 = vrot.slane %v678, 4
        %v681 = vshll.u32 %v318, 16
        %v683 = vrot.slane %v681, 5
        %v684 = vor.u32 %v680, %v683
        %v685 = vrot.slane %v684, 4
        %v687 = vshll.u32 %v319, 16
        %v689 = vrot.slane %v687, 5
        %v690 = vsel %vm460, %v685, %v689
        %v691 = vshrl.u32 %v319, 16
        %v693 = vrot.slane %v691, 4
        %v694 = vor.u32 %v693, %v689
        %v695 = vrot.slane %v694, 4
        %v697 = vshll.u32 %v320, 16
        %v699 = vrot.slane %v697, 5
        %v700 = vsel %vm460, %v695, %v699
        %v702 = vshrl.u32 %v321, 16
        %v704 = vrot.slane %v702, 4
        %v705 = vshll.u32 %v321, 16
        %v707 = vrot.slane %v705, 5
        %v708 = vor.u32 %v704, %v707
        %v709 = vrot.slane %v708, 4
        %v711 = vshll.u32 %v322, 16
        %v713 = vrot.slane %v711, 5
        %v714 = vsel %vm460, %v709, %v713
        %v715 = vshrl.u32 %v322, 16
        %v717 = vrot.slane %v715, 4
        %v718 = vor.u32 %v717, %v713
        %v719 = vrot.slane %v718, 4
        %v721 = vshll.u32 %v323, 16
        %v723 = vrot.slane %v721, 5
        %v724 = vsel %vm460, %v719, %v723
        %v726 = vshrl.u32 %v324, 16
        %v728 = vrot.slane %v726, 4
        %v729 = vshll.u32 %v324, 16
        %v731 = vrot.slane %v729, 5
        %v732 = vor.u32 %v728, %v731
        %v733 = vrot.slane %v732, 4
        %v735 = vshll.u32 %v325, 16
        %v737 = vrot.slane %v735, 5
        %v738 = vsel %vm460, %v733, %v737
        %v739 = vshrl.u32 %v325, 16
        %v741 = vrot.slane %v739, 4
        %v742 = vor.u32 %v741, %v737
        %v743 = vrot.slane %v742, 4
        %v745 = vshll.u32 %v326, 16
        %v747 = vrot.slane %v745, 5
        %v748 = vsel %vm460, %v743, %v747
        %v750 = vshrl.u32 %v327, 16
        %v752 = vrot.slane %v750, 4
        %v753 = vshll.u32 %v327, 16
        %v755 = vrot.slane %v753, 5
        %v756 = vor.u32 %v752, %v755
        %v757 = vrot.slane %v756, 4
        %v759 = vshll.u32 %v328, 16
        %v761 = vrot.slane %v759, 5
        %v762 = vsel %vm460, %v757, %v761
        %v763 = vshrl.u32 %v328, 16
        %v765 = vrot.slane %v763, 4
        %v766 = vor.u32 %v765, %v761
        %v767 = vrot.slane %v766, 4
        %v769 = vshll.u32 %v329, 16
        %v771 = vrot.slane %v769, 5
        %v772 = vsel %vm460, %v767, %v771
        %v774 = vshrl.u32 %v330, 16
        %v776 = vrot.slane %v774, 4
        %v777 = vshll.u32 %v330, 16
        %v779 = vrot.slane %v777, 5
        %v780 = vor.u32 %v776, %v779
        %v781 = vrot.slane %v780, 4
        %v783 = vshll.u32 %v331, 16
        %v785 = vrot.slane %v783, 5
        %v786 = vsel %vm460, %v781, %v785
        %v787 = vshrl.u32 %v331, 16
        %v789 = vrot.slane %v787, 4
        %v790 = vor.u32 %v789, %v785
        %v791 = vrot.slane %v790, 4
        %v793 = vshll.u32 %v332, 16
        %v795 = vrot.slane %v793, 5
        %v796 = vsel %vm460, %v791, %v795
        %v798 = vshrl.u32 %v333, 16
        %v800 = vrot.slane %v798, 4
        %v801 = vshll.u32 %v333, 16
        %v803 = vrot.slane %v801, 5
        %v804 = vor.u32 %v800, %v803
        %v805 = vrot.slane %v804, 4
        %v807 = vshll.u32 %v334, 16
        %v809 = vrot.slane %v807, 5
        %v810 = vsel %vm460, %v805, %v809
        %v811 = vshrl.u32 %v334, 16
        %v813 = vrot.slane %v811, 4
        %v814 = vor.u32 %v813, %v809
        %v815 = vrot.slane %v814, 4
        %v817 = vshll.u32 %v335, 16
        %v819 = vrot.slane %v817, 5
        %v820 = vsel %vm460, %v815, %v819
        %v822 = vshrl.u32 %v336, 16
        %v824 = vrot.slane %v822, 4
        %v825 = vshll.u32 %v336, 16
        %v827 = vrot.slane %v825, 5
        %v828 = vor.u32 %v824, %v827
        %v829 = vrot.slane %v828, 4
        %v831 = vshll.u32 %v337, 16
        %v833 = vrot.slane %v831, 5
        %v834 = vsel %vm460, %v829, %v833
        %v835 = vshrl.u32 %v337, 16
        %v837 = vrot.slane %v835, 4
        %v838 = vor.u32 %v837, %v833
        %v839 = vrot.slane %v838, 4
        %v841 = vshll.u32 %v338, 16
        %v843 = vrot.slane %v841, 5
        %v844 = vsel %vm460, %v839, %v843
        %v845 = vunpack.c.l.b16 %v474
        %v846 = vunpack.c.l.b16 %v484
        %v847 = vunpack.c.l.b16 %v498
        %v848 = vunpack.c.l.b16 %v508
        %v849 = vunpack.c.l.b16 %v522
        %v850 = vunpack.c.l.b16 %v532
        %v851 = vunpack.c.l.b16 %v546
        %v852 = vunpack.c.l.b16 %v556
        %v853 = vunpack.c.l.b16 %v570
        %v854 = vunpack.c.l.b16 %v580
        %v855 = vunpack.c.l.b16 %v594
        %v856 = vunpack.c.l.b16 %v604
        %v857 = vunpack.c.l.b16 %v618
        %v858 = vunpack.c.l.b16 %v628
        %v859 = vunpack.c.l.b16 %v642
        %v860 = vunpack.c.l.b16 %v652
        %v861 = vunpack.c.l.b16 %v666
        %v862 = vunpack.c.l.b16 %v676
        %v863 = vunpack.c.l.b16 %v690
        %v864 = vunpack.c.l.b16 %v700
        %v865 = vunpack.c.l.b16 %v714
        %v866 = vunpack.c.l.b16 %v724
        %v867 = vunpack.c.l.b16 %v738
        %v868 = vunpack.c.l.b16 %v748
        %v869 = vunpack.c.l.b16 %v762
        %v870 = vunpack.c.l.b16 %v772
        %v871 = vunpack.c.l.b16 %v786
        %v872 = vunpack.c.l.b16 %v796
        %v873 = vunpack.c.l.b16 %v810
        %v874 = vunpack.c.l.b16 %v820
        %v875 = vunpack.c.l.b16 %v834
        %v876 = vunpack.c.l.b16 %v844
        %v877 = vpack.c.b16 %v846, %v845
        %v878 = vpack.c.b16 %v848, %v847
        %v879 = vpack.c.b16 %v850, %v849
        %v880 = vpack.c.b16 %v852, %v851
        %v881 = vpack.c.b16 %v854, %v853
        %v882 = vpack.c.b16 %v856, %v855
        %v883 = vpack.c.b16 %v858, %v857
        %v884 = vpack.c.b16 %v860, %v859
        %v885 = vpack.c.b16 %v862, %v861
        %v886 = vpack.c.b16 %v864, %v863
        %v887 = vpack.c.b16 %v866, %v865
        %v888 = vpack.c.b16 %v868, %v867
        %v889 = vpack.c.b16 %v870, %v869
        %v890 = vpack.c.b16 %v872, %v871
        %v891 = vpack.c.b16 %v874, %v873
        %v892 = vpack.c.b16 %v876, %v875
        %893 = vrot.lane.b32.xlu0 %v877, 4
        %v894 = vpop.permute.xlu0 %893
        %895 = vrot.lane.b32.xlu0 %v878, 4
        %v896 = vpop.permute.xlu0 %895
        %897 = vrot.lane.b32.xlu0 %v879, 4
        %v898 = vpop.permute.xlu0 %897
        %899 = vrot.lane.b32.xlu0 %v880, 4
        %v900 = vpop.permute.xlu0 %899
        %901 = vrot.lane.b32.xlu0 %v881, 4
        %v902 = vpop.permute.xlu0 %901
        %903 = vrot.lane.b32.xlu0 %v882, 4
        %v904 = vpop.permute.xlu0 %903
        %905 = vrot.lane.b32.xlu0 %v883, 4
        %v906 = vpop.permute.xlu0 %905
        %907 = vrot.lane.b32.xlu0 %v884, 4
        %v908 = vpop.permute.xlu0 %907
        %909 = vrot.lane.b32.xlu0 %v885, 4
        %v910 = vpop.permute.xlu0 %909
        %911 = vrot.lane.b32.xlu0 %v886, 4
        %v912 = vpop.permute.xlu0 %911
        %913 = vrot.lane.b32.xlu0 %v887, 4
        %v914 = vpop.permute.xlu0 %913
        %915 = vrot.lane.b32.xlu0 %v888, 4
        %v916 = vpop.permute.xlu0 %915
        %917 = vrot.lane.b32.xlu0 %v889, 4
        %v918 = vpop.permute.xlu0 %917
        %919 = vrot.lane.b32.xlu0 %v890, 4
        %v920 = vpop.permute.xlu0 %919
        %921 = vrot.lane.b32.xlu0 %v891, 4
        %v922 = vpop.permute.xlu0 %921
        %923 = vrot.lane.b32.xlu0 %v892, 4
        %v924 = vpop.permute.xlu0 %923
        %vm941 = vcmask 64544
        %942 = vst.msk [vmem:[#allocation2] sm:$0xff] %vm941, %v894
        %943 = vst.msk [vmem:[#allocation2 + $0x8] sm:$0xff] %vm941, %v896
        %944 = vst.msk [vmem:[#allocation2 + $0x10] sm:$0xff] %vm941, %v898
        %945 = vst.msk [vmem:[#allocation2 + $0x18] sm:$0xff] %vm941, %v900
        %946 = vst.msk [vmem:[#allocation2 + $0x20] sm:$0xff] %vm941, %v902
        %947 = vst.msk [vmem:[#allocation2 + $0x28] sm:$0xff] %vm941, %v904
        %948 = vst.msk [vmem:[#allocation2 + $0x30] sm:$0xff] %vm941, %v906
        %949 = vst.msk [vmem:[#allocation2 + $0x38] sm:$0xff] %vm941, %v908
        %950 = vst.msk [vmem:[#allocation2 + $0x40] sm:$0xff] %vm941, %v910
        %951 = vst.msk [vmem:[#allocation2 + $0x48] sm:$0xff] %vm941, %v912
        %952 = vst.msk [vmem:[#allocation2 + $0x50] sm:$0xff] %vm941, %v914
        %953 = vst.msk [vmem:[#allocation2 + $0x58] sm:$0xff] %vm941, %v916
        %954 = vst.msk [vmem:[#allocation2 + $0x60] sm:$0xff] %vm941, %v918
        %955 = vst.msk [vmem:[#allocation2 + $0x68] sm:$0xff] %vm941, %v920
        %956 = vst.msk [vmem:[#allocation2 + $0x70] sm:$0xff] %vm941, %v922
        %957 = vst.msk [vmem:[#allocation2 + $0x78] sm:$0xff] %vm941, %v924
        %vm974 = vcmask 1042432
        %vm975 = vcmask 1046532
        %vm976 = vmor %vm974, %vm975
        %v977 = vrot.slane %v291, 5
        %v978 = vrot.slane %v977, 4
        %v979 = vrot.slane %v292, 5
        %v980 = vsel %vm976, %v978, %v979
        %v981 = vrot.slane %v979, 4
        %v982 = vrot.slane %v293, 5
        %v983 = vsel %vm976, %v981, %v982
        %v984 = vrot.slane %v294, 5
        %v985 = vrot.slane %v984, 4
        %v986 = vrot.slane %v295, 5
        %v987 = vsel %vm976, %v985, %v986
        %v988 = vrot.slane %v986, 4
        %v989 = vrot.slane %v296, 5
        %v990 = vsel %vm976, %v988, %v989
        %v991 = vrot.slane %v297, 5
        %v992 = vrot.slane %v991, 4
        %v993 = vrot.slane %v298, 5
        %v994 = vsel %vm976, %v992, %v993
        %v995 = vrot.slane %v993, 4
        %v996 = vrot.slane %v299, 5
        %v997 = vsel %vm976, %v995, %v996
        %v998 = vrot.slane %v300, 5
        %v999 = vrot.slane %v998, 4
        %v1000 = vrot.slane %v301, 5
        %v1001 = vsel %vm976, %v999, %v1000
        %v1002 = vrot.slane %v1000, 4
        %v1003 = vrot.slane %v302, 5
        %v1004 = vsel %vm976, %v1002, %v1003
        %v1005 = vrot.slane %v303, 5
        %v1006 = vrot.slane %v1005, 4
        %v1007 = vrot.slane %v304, 5
        %v1008 = vsel %vm976, %v1006, %v1007
        %v1009 = vrot.slane %v1007, 4
        %v1010 = vrot.slane %v305, 5
        %v1011 = vsel %vm976, %v1009, %v1010
        %v1012 = vrot.slane %v306, 5
        %v1013 = vrot.slane %v1012, 4
        %v1014 = vrot.slane %v307, 5
        %v1015 = vsel %vm976, %v1013, %v1014
        %v1016 = vrot.slane %v1014, 4
        %v1017 = vrot.slane %v308, 5
        %v1018 = vsel %vm976, %v1016, %v1017
        %v1019 = vrot.slane %v309, 5
        %v1020 = vrot.slane %v1019, 4
        %v1021 = vrot.slane %v310, 5
        %v1022 = vsel %vm976, %v1020, %v1021
        %v1023 = vrot.slane %v1021, 4
        %v1024 = vrot.slane %v311, 5
        %v1025 = vsel %vm976, %v1023, %v1024
        %v1026 = vrot.slane %v312, 5
        %v1027 = vrot.slane %v1026, 4
        %v1028 = vrot.slane %v313, 5
        %v1029 = vsel %vm976, %v1027, %v1028
        %v1030 = vrot.slane %v1028, 4
        %v1031 = vrot.slane %v314, 5
        %v1032 = vsel %vm976, %v1030, %v1031
        %v1033 = vrot.slane %v315, 5
        %v1034 = vrot.slane %v1033, 4
        %v1035 = vrot.slane %v316, 5
        %v1036 = vsel %vm976, %v1034, %v1035
        %v1037 = vrot.slane %v1035, 4
        %v1038 = vrot.slane %v317, 5
        %v1039 = vsel %vm976, %v1037, %v1038
        %v1040 = vrot.slane %v318, 5
        %v1041 = vrot.slane %v1040, 4
        %v1042 = vrot.slane %v319, 5
        %v1043 = vsel %vm976, %v1041, %v1042
        %v1044 = vrot.slane %v1042, 4
        %v1045 = vrot.slane %v320, 5
        %v1046 = vsel %vm976, %v1044, %v1045
        %v1047 = vrot.slane %v321, 5
        %v1048 = vrot.slane %v1047, 4
        %v1049 = vrot.slane %v322, 5
        %v1050 = vsel %vm976, %v1048, %v1049
        %v1051 = vrot.slane %v1049, 4
        %v1052 = vrot.slane %v323, 5
        %v1053 = vsel %vm976, %v1051, %v1052
        %v1054 = vrot.slane %v324, 5
        %v1055 = vrot.slane %v1054, 4
        %v1056 = vrot.slane %v325, 5
        %v1057 = vsel %vm976, %v1055, %v1056
        %v1058 = vrot.slane %v1056, 4
        %v1059 = vrot.slane %v326, 5
        %v1060 = vsel %vm976, %v1058, %v1059
        %v1061 = vrot.slane %v327, 5
        %v1062 = vrot.slane %v1061, 4
        %v1063 = vrot.slane %v328, 5
        %v1064 = vsel %vm976, %v1062, %v1063
        %v1065 = vrot.slane %v1063, 4
        %v1066 = vrot.slane %v329, 5
        %v1067 = vsel %vm976, %v1065, %v1066
        %v1068 = vrot.slane %v330, 5
        %v1069 = vrot.slane %v1068, 4
        %v1070 = vrot.slane %v331, 5
        %v1071 = vsel %vm976, %v1069, %v1070
        %v1072 = vrot.slane %v1070, 4
        %v1073 = vrot.slane %v332, 5
        %v1074 = vsel %vm976, %v1072, %v1073
        %v1075 = vrot.slane %v333, 5
        %v1076 = vrot.slane %v1075, 4
        %v1077 = vrot.slane %v334, 5
        %v1078 = vsel %vm976, %v1076, %v1077
        %v1079 = vrot.slane %v1077, 4
        %v1080 = vrot.slane %v335, 5
        %v1081 = vsel %vm976, %v1079, %v1080
        %v1082 = vrot.slane %v336, 5
        %v1083 = vrot.slane %v1082, 4
        %v1084 = vrot.slane %v337, 5
        %v1085 = vsel %vm976, %v1083, %v1084
        %v1086 = vrot.slane %v1084, 4
        %v1087 = vrot.slane %v338, 5
        %v1088 = vsel %vm976, %v1086, %v1087
        %v1089 = vunpack.c.l.b16 %v980
        %v1090 = vunpack.c.l.b16 %v983
        %v1091 = vunpack.c.l.b16 %v987
        %v1092 = vunpack.c.l.b16 %v990
        %v1093 = vunpack.c.l.b16 %v994
        %v1094 = vunpack.c.l.b16 %v997
        %v1095 = vunpack.c.l.b16 %v1001
        %v1096 = vunpack.c.l.b16 %v1004
        %v1097 = vunpack.c.l.b16 %v1008
        %v1098 = vunpack.c.l.b16 %v1011
        %v1099 = vunpack.c.l.b16 %v1015
        %v1100 = vunpack.c.l.b16 %v1018
        %v1101 = vunpack.c.l.b16 %v1022
        %v1102 = vunpack.c.l.b16 %v1025
        %v1103 = vunpack.c.l.b16 %v1029
        %v1104 = vunpack.c.l.b16 %v1032
        %v1105 = vunpack.c.l.b16 %v1036
        %v1106 = vunpack.c.l.b16 %v1039
        %v1107 = vunpack.c.l.b16 %v1043
        %v1108 = vunpack.c.l.b16 %v1046
        %v1109 = vunpack.c.l.b16 %v1050
        %v1110 = vunpack.c.l.b16 %v1053
        %v1111 = vunpack.c.l.b16 %v1057
        %v1112 = vunpack.c.l.b16 %v1060
        %v1113 = vunpack.c.l.b16 %v1064
        %v1114 = vunpack.c.l.b16 %v1067
        %v1115 = vunpack.c.l.b16 %v1071
        %v1116 = vunpack.c.l.b16 %v1074
        %v1117 = vunpack.c.l.b16 %v1078
        %v1118 = vunpack.c.l.b16 %v1081
        %v1119 = vunpack.c.l.b16 %v1085
        %v1120 = vunpack.c.l.b16 %v1088
        %v1121 = vpack.c.b16 %v1090, %v1089
        %v1122 = vpack.c.b16 %v1092, %v1091
        %v1123 = vpack.c.b16 %v1094, %v1093
        %v1124 = vpack.c.b16 %v1096, %v1095
        %v1125 = vpack.c.b16 %v1098, %v1097
        %v1126 = vpack.c.b16 %v1100, %v1099
        %v1127 = vpack.c.b16 %v1102, %v1101
        %v1128 = vpack.c.b16 %v1104, %v1103
        %v1129 = vpack.c.b16 %v1106, %v1105
        %v1130 = vpack.c.b16 %v1108, %v1107
        %v1131 = vpack.c.b16 %v1110, %v1109
        %v1132 = vpack.c.b16 %v1112, %v1111
        %v1133 = vpack.c.b16 %v1114, %v1113
        %v1134 = vpack.c.b16 %v1116, %v1115
        %v1135 = vpack.c.b16 %v1118, %v1117
        %v1136 = vpack.c.b16 %v1120, %v1119
        %1137 = vrot.lane.b32.xlu0 %v1121, 8
        %v1138 = vpop.permute.xlu0 %1137
        %1139 = vrot.lane.b32.xlu0 %v1122, 8
        %v1140 = vpop.permute.xlu0 %1139
        %1141 = vrot.lane.b32.xlu0 %v1123, 8
        %v1142 = vpop.permute.xlu0 %1141
        %1143 = vrot.lane.b32.xlu0 %v1124, 8
        %v1144 = vpop.permute.xlu0 %1143
        %1145 = vrot.lane.b32.xlu0 %v1125, 8
        %v1146 = vpop.permute.xlu0 %1145
        %1147 = vrot.lane.b32.xlu0 %v1126, 8
        %v1148 = vpop.permute.xlu0 %1147
        %1149 = vrot.lane.b32.xlu0 %v1127, 8
        %v1150 = vpop.permute.xlu0 %1149
        %1151 = vrot.lane.b32.xlu0 %v1128, 8
        %v1152 = vpop.permute.xlu0 %1151
        %1153 = vrot.lane.b32.xlu0 %v1129, 8
        %v1154 = vpop.permute.xlu0 %1153
        %1155 = vrot.lane.b32.xlu0 %v1130, 8
        %v1156 = vpop.permute.xlu0 %1155
        %1157 = vrot.lane.b32.xlu0 %v1131, 8
        %v1158 = vpop.permute.xlu0 %1157
        %1159 = vrot.lane.b32.xlu0 %v1132, 8
        %v1160 = vpop.permute.xlu0 %1159
        %1161 = vrot.lane.b32.xlu0 %v1133, 8
        %v1162 = vpop.permute.xlu0 %1161
        %1163 = vrot.lane.b32.xlu0 %v1134, 8
        %v1164 = vpop.permute.xlu0 %1163
        %1165 = vrot.lane.b32.xlu0 %v1135, 8
        %v1166 = vpop.permute.xlu0 %1165
        %1167 = vrot.lane.b32.xlu0 %v1136, 8
        %v1168 = vpop.permute.xlu0 %1167
        %vm1185 = vcmask 97344
        %1186 = vst.msk [vmem:[#allocation2] sm:$0xff] %vm1185, %v1138
        %1187 = vst.msk [vmem:[#allocation2 + $0x8] sm:$0xff] %vm1185, %v1140
        %1188 = vst.msk [vmem:[#allocation2 + $0x10] sm:$0xff] %vm1185, %v1142
        %1189 = vst.msk [vmem:[#allocation2 + $0x18] sm:$0xff] %vm1185, %v1144
        %1190 = vst.msk [vmem:[#allocation2 + $0x20] sm:$0xff] %vm1185, %v1146
        %1191 = vst.msk [vmem:[#allocation2 + $0x28] sm:$0xff] %vm1185, %v1148
        %1192 = vst.msk [vmem:[#allocation2 + $0x30] sm:$0xff] %vm1185, %v1150
        %1193 = vst.msk [vmem:[#allocation2 + $0x38] sm:$0xff] %vm1185, %v1152
        %1194 = vst.msk [vmem:[#allocation2 + $0x40] sm:$0xff] %vm1185, %v1154
        %1195 = vst.msk [vmem:[#allocation2 + $0x48] sm:$0xff] %vm1185, %v1156
        %1196 = vst.msk [vmem:[#allocation2 + $0x50] sm:$0xff] %vm1185, %v1158
        %1197 = vst.msk [vmem:[#allocation2 + $0x58] sm:$0xff] %vm1185, %v1160
        %1198 = vst.msk [vmem:[#allocation2 + $0x60] sm:$0xff] %vm1185, %v1162
        %1199 = vst.msk [vmem:[#allocation2 + $0x68] sm:$0xff] %vm1185, %v1164
        %1200 = vst.msk [vmem:[#allocation2 + $0x70] sm:$0xff] %vm1185, %v1166
        %1201 = vst.msk [vmem:[#allocation2 + $0x78] sm:$0xff] %vm1185, %v1168
        %v1204 = vunpack.c.l.b16 %v339
        %v1205 = vunpack.c.l.b16 %v340
        %v1206 = vpack.c.b16 %v1205, %v1204
        %1207 = vrot.lane.b32.xlu0 %v410, 12
        %v1208 = vpop.permute.xlu0 %1207
        %1209 = vrot.lane.b32.xlu0 %v411, 12
        %v1210 = vpop.permute.xlu0 %1209
        %1211 = vrot.lane.b32.xlu0 %v412, 12
        %v1212 = vpop.permute.xlu0 %1211
        %1213 = vrot.lane.b32.xlu0 %v413, 12
        %v1214 = vpop.permute.xlu0 %1213
        %1215 = vrot.lane.b32.xlu0 %v414, 12
        %v1216 = vpop.permute.xlu0 %1215
        %1217 = vrot.lane.b32.xlu0 %v415, 12
        %v1218 = vpop.permute.xlu0 %1217
        %1219 = vrot.lane.b32.xlu0 %v416, 12
        %v1220 = vpop.permute.xlu0 %1219
        %1221 = vrot.lane.b32.xlu0 %v417, 12
        %v1222 = vpop.permute.xlu0 %1221
        %1223 = vrot.lane.b32.xlu0 %v418, 12
        %v1224 = vpop.permute.xlu0 %1223
        %1225 = vrot.lane.b32.xlu0 %v419, 12
        %v1226 = vpop.permute.xlu0 %1225
        %1227 = vrot.lane.b32.xlu0 %v420, 12
        %v1228 = vpop.permute.xlu0 %1227
        %1229 = vrot.lane.b32.xlu0 %v421, 12
        %v1230 = vpop.permute.xlu0 %1229
        %1231 = vrot.lane.b32.xlu0 %v422, 12
        %v1232 = vpop.permute.xlu0 %1231
        %1233 = vrot.lane.b32.xlu0 %v423, 12
        %v1234 = vpop.permute.xlu0 %1233
        %1235 = vrot.lane.b32.xlu0 %v424, 12
        %v1236 = vpop.permute.xlu0 %1235
        %1237 = vrot.lane.b32.xlu0 %v1206, 12
        %v1238 = vpop.permute.xlu0 %1237
        %vm1255 = vcmask 130144
        %1256 = vst.msk [vmem:[#allocation2] sm:$0xff] %vm1255, %v1208
        %1257 = vst.msk [vmem:[#allocation2 + $0x8] sm:$0xff] %vm1255, %v1210
        %1258 = vst.msk [vmem:[#allocation2 + $0x10] sm:$0xff] %vm1255, %v1212
        %1259 = vst.msk [vmem:[#allocation2 + $0x18] sm:$0xff] %vm1255, %v1214
        %1260 = vst.msk [vmem:[#allocation2 + $0x20] sm:$0xff] %vm1255, %v1216
        %1261 = vst.msk [vmem:[#allocation2 + $0x28] sm:$0xff] %vm1255, %v1218
        %1262 = vst.msk [vmem:[#allocation2 + $0x30] sm:$0xff] %vm1255, %v1220
        %1263 = vst.msk [vmem:[#allocation2 + $0x38] sm:$0xff] %vm1255, %v1222
        %1264 = vst.msk [vmem:[#allocation2 + $0x40] sm:$0xff] %vm1255, %v1224
        %1265 = vst.msk [vmem:[#allocation2 + $0x48] sm:$0xff] %vm1255, %v1226
        %1266 = vst.msk [vmem:[#allocation2 + $0x50] sm:$0xff] %vm1255, %v1228
        %1267 = vst.msk [vmem:[#allocation2 + $0x58] sm:$0xff] %vm1255, %v1230
        %1268 = vst.msk [vmem:[#allocation2 + $0x60] sm:$0xff] %vm1255, %v1232
        %1269 = vst.msk [vmem:[#allocation2 + $0x68] sm:$0xff] %vm1255, %v1234
        %1270 = vst.msk [vmem:[#allocation2 + $0x70] sm:$0xff] %vm1255, %v1236
        %1271 = vst.msk [vmem:[#allocation2 + $0x78] sm:$0xff] %vm1255, %v1238
        %v1273 = vshrl.u32 %v339, 16
        %v1275 = vrot.slane %v1273, 4
        %v1276 = vshll.u32 %v339, 16
        %v1278 = vrot.slane %v1276, 5
        %v1279 = vor.u32 %v1275, %v1278
        %v1280 = vrot.slane %v1279, 4
        %v1282 = vshll.u32 %v340, 16
        %v1284 = vrot.slane %v1282, 5
        %v1285 = vsel %vm460, %v1280, %v1284
        %v1286 = vshrl.u32 %v340, 16
        %v1288 = vrot.slane %v1286, 4
        %v1289 = vor.u32 %v1288, %v1284
        %v1290 = vrot.slane %v1289, 4
        %v1292 = vshll.u32 %v341, 16
        %v1294 = vrot.slane %v1292, 5
        %v1295 = vsel %vm460, %v1290, %v1294
        %v1296 = vunpack.c.l.b16 %v1285
        %v1297 = vunpack.c.l.b16 %v1295
        %v1298 = vpack.c.b16 %v1297, %v1296
        %1299 = vrot.lane.b32.xlu0 %v878, 16
        %v1300 = vpop.permute.xlu0 %1299
        %1301 = vrot.lane.b32.xlu0 %v879, 16
        %v1302 = vpop.permute.xlu0 %1301
        %1303 = vrot.lane.b32.xlu0 %v880, 16
        %v1304 = vpop.permute.xlu0 %1303
        %1305 = vrot.lane.b32.xlu0 %v881, 16
        %v1306 = vpop.permute.xlu0 %1305
        %1307 = vrot.lane.b32.xlu0 %v882, 16
        %v1308 = vpop.permute.xlu0 %1307
        %1309 = vrot.lane.b32.xlu0 %v883, 16
        %v1310 = vpop.permute.xlu0 %1309
        %1311 = vrot.lane.b32.xlu0 %v884, 16
        %v1312 = vpop.permute.xlu0 %1311
        %1313 = vrot.lane.b32.xlu0 %v885, 16
        %v1314 = vpop.permute.xlu0 %1313
        %1315 = vrot.lane.b32.xlu0 %v886, 16
        %v1316 = vpop.permute.xlu0 %1315
        %1317 = vrot.lane.b32.xlu0 %v887, 16
        %v1318 = vpop.permute.xlu0 %1317
        %1319 = vrot.lane.b32.xlu0 %v888, 16
        %v1320 = vpop.permute.xlu0 %1319
        %1321 = vrot.lane.b32.xlu0 %v889, 16
        %v1322 = vpop.permute.xlu0 %1321
        %1323 = vrot.lane.b32.xlu0 %v890, 16
        %v1324 = vpop.permute.xlu0 %1323
        %1325 = vrot.lane.b32.xlu0 %v891, 16
        %v1326 = vpop.permute.xlu0 %1325
        %1327 = vrot.lane.b32.xlu0 %v892, 16
        %v1328 = vpop.permute.xlu0 %1327
        %1329 = vrot.lane.b32.xlu0 %v1298, 16
        %v1330 = vpop.permute.xlu0 %1329
        %vm1347 = vcmask 162944
        %1348 = vst.msk [vmem:[#allocation2] sm:$0xff] %vm1347, %v1300
        %1349 = vst.msk [vmem:[#allocation2 + $0x8] sm:$0xff] %vm1347, %v1302
        %1350 = vst.msk [vmem:[#allocation2 + $0x10] sm:$0xff] %vm1347, %v1304
        %1351 = vst.msk [vmem:[#allocation2 + $0x18] sm:$0xff] %vm1347, %v1306
        %1352 = vst.msk [vmem:[#allocation2 + $0x20] sm:$0xff] %vm1347, %v1308
        %1353 = vst.msk [vmem:[#allocation2 + $0x28] sm:$0xff] %vm1347, %v1310
        %1354 = vst.msk [vmem:[#allocation2 + $0x30] sm:$0xff] %vm1347, %v1312
        %1355 = vst.msk [vmem:[#allocation2 + $0x38] sm:$0xff] %vm1347, %v1314
        %1356 = vst.msk [vmem:[#allocation2 + $0x40] sm:$0xff] %vm1347, %v1316
        %1357 = vst.msk [vmem:[#allocation2 + $0x48] sm:$0xff] %vm1347, %v1318
        %1358 = vst.msk [vmem:[#allocation2 + $0x50] sm:$0xff] %vm1347, %v1320
        %1359 = vst.msk [vmem:[#allocation2 + $0x58] sm:$0xff] %vm1347, %v1322
        %1360 = vst.msk [vmem:[#allocation2 + $0x60] sm:$0xff] %vm1347, %v1324
        %1361 = vst.msk [vmem:[#allocation2 + $0x68] sm:$0xff] %vm1347, %v1326
        %1362 = vst.msk [vmem:[#allocation2 + $0x70] sm:$0xff] %vm1347, %v1328
        %1363 = vst.msk [vmem:[#allocation2 + $0x78] sm:$0xff] %vm1347, %v1330
        %v1365 = vrot.slane %v339, 5
        %v1366 = vrot.slane %v1365, 4
        %v1367 = vrot.slane %v340, 5
        %v1368 = vsel %vm976, %v1366, %v1367
        %v1369 = vrot.slane %v1367, 4
        %v1370 = vrot.slane %v341, 5
        %v1371 = vsel %vm976, %v1369, %v1370
        %v1372 = vunpack.c.l.b16 %v1368
        %v1373 = vunpack.c.l.b16 %v1371
        %v1374 = vpack.c.b16 %v1373, %v1372
        %1375 = vrot.lane.b32.xlu0 %v1122, 20
        %v1376 = vpop.permute.xlu0 %1375
        %1377 = vrot.lane.b32.xlu0 %v1123, 20
        %v1378 = vpop.permute.xlu0 %1377
        %1379 = vrot.lane.b32.xlu0 %v1124, 20
        %v1380 = vpop.permute.xlu0 %1379
        %1381 = vrot.lane.b32.xlu0 %v1125, 20
        %v1382 = vpop.permute.xlu0 %1381
        %1383 = vrot.lane.b32.xlu0 %v1126, 20
        %v1384 = vpop.permute.xlu0 %1383
        %1385 = vrot.lane.b32.xlu0 %v1127, 20
        %v1386 = vpop.permute.xlu0 %1385
        %1387 = vrot.lane.b32.xlu0 %v1128, 20
        %v1388 = vpop.permute.xlu0 %1387
        %1389 = vrot.lane.b32.xlu0 %v1129, 20
        %v1390 = vpop.permute.xlu0 %1389
        %1391 = vrot.lane.b32.xlu0 %v1130, 20
        %v1392 = vpop.permute.xlu0 %1391
        %1393 = vrot.lane.b32.xlu0 %v1131, 20
        %v1394 = vpop.permute.xlu0 %1393
        %1395 = vrot.lane.b32.xlu0 %v1132, 20
        %v1396 = vpop.permute.xlu0 %1395
        %1397 = vrot.lane.b32.xlu0 %v1133, 20
        %v1398 = vpop.permute.xlu0 %1397
        %1399 = vrot.lane.b32.xlu0 %v1134, 20
        %v1400 = vpop.permute.xlu0 %1399
        %1401 = vrot.lane.b32.xlu0 %v1135, 20
        %v1402 = vpop.permute.xlu0 %1401
        %1403 = vrot.lane.b32.xlu0 %v1136, 20
        %v1404 = vpop.permute.xlu0 %1403
        %1405 = vrot.lane.b32.xlu0 %v1374, 20
        %v1406 = vpop.permute.xlu0 %1405
        %vm1423 = vcmask 195744
        %1424 = vst.msk [vmem:[#allocation2] sm:$0xff] %vm1423, %v1376
        %1425 = vst.msk [vmem:[#allocation2 + $0x8] sm:$0xff] %vm1423, %v1378
        %1426 = vst.msk [vmem:[#allocation2 + $0x10] sm:$0xff] %vm1423, %v1380
        %1427 = vst.msk [vmem:[#allocation2 + $0x18] sm:$0xff] %vm1423, %v1382
        %1428 = vst.msk [vmem:[#allocation2 + $0x20] sm:$0xff] %vm1423, %v1384
        %1429 = vst.msk [vmem:[#allocation2 + $0x28] sm:$0xff] %vm1423, %v1386
        %1430 = vst.msk [vmem:[#allocation2 + $0x30] sm:$0xff] %vm1423, %v1388
        %1431 = vst.msk [vmem:[#allocation2 + $0x38] sm:$0xff] %vm1423, %v1390
        %1432 = vst.msk [vmem:[#allocation2 + $0x40] sm:$0xff] %vm1423, %v1392
        %1433 = vst.msk [vmem:[#allocation2 + $0x48] sm:$0xff] %vm1423, %v1394
        %1434 = vst.msk [vmem:[#allocation2 + $0x50] sm:$0xff] %vm1423, %v1396
        %1435 = vst.msk [vmem:[#allocation2 + $0x58] sm:$0xff] %vm1423, %v1398
        %1436 = vst.msk [vmem:[#allocation2 + $0x60] sm:$0xff] %vm1423, %v1400
        %1437 = vst.msk [vmem:[#allocation2 + $0x68] sm:$0xff] %vm1423, %v1402
        %1438 = vst.msk [vmem:[#allocation2 + $0x70] sm:$0xff] %vm1423, %v1404
        %1439 = vst.msk [vmem:[#allocation2 + $0x78] sm:$0xff] %vm1423, %v1406
        %v1442 = vunpack.c.l.b16 %v342
        %v1443 = vunpack.c.l.b16 %v343
        %v1444 = vpack.c.b16 %v1443, %v1442
        %1445 = vrot.lane.b32.xlu0 %v411, 24
        %v1446 = vpop.permute.xlu0 %1445
        %1447 = vrot.lane.b32.xlu0 %v412, 24
        %v1448 = vpop.permute.xlu0 %1447
        %1449 = vrot.lane.b32.xlu0 %v413, 24
        %v1450 = vpop.permute.xlu0 %1449
        %1451 = vrot.lane.b32.xlu0 %v414, 24
        %v1452 = vpop.permute.xlu0 %1451
        %1453 = vrot.lane.b32.xlu0 %v415, 24
        %v1454 = vpop.permute.xlu0 %1453
        %1455 = vrot.lane.b32.xlu0 %v416, 24
        %v1456 = vpop.permute.xlu0 %1455
        %1457 = vrot.lane.b32.xlu0 %v417, 24
        %v1458 = vpop.permute.xlu0 %1457
        %1459 = vrot.lane.b32.xlu0 %v418, 24
        %v1460 = vpop.permute.xlu0 %1459
        %1461 = vrot.lane.b32.xlu0 %v419, 24
        %v1462 = vpop.permute.xlu0 %1461
        %1463 = vrot.lane.b32.xlu0 %v420, 24
        %v1464 = vpop.permute.xlu0 %1463
        %1465 = vrot.lane.b32.xlu0 %v421, 24
        %v1466 = vpop.permute.xlu0 %1465
        %1467 = vrot.lane.b32.xlu0 %v422, 24
        %v1468 = vpop.permute.xlu0 %1467
        %1469 = vrot.lane.b32.xlu0 %v423, 24
        %v1470 = vpop.permute.xlu0 %1469
        %1471 = vrot.lane.b32.xlu0 %v424, 24
        %v1472 = vpop.permute.xlu0 %1471
        %1473 = vrot.lane.b32.xlu0 %v1206, 24
        %v1474 = vpop.permute.xlu0 %1473
        %1475 = vrot.lane.b32.xlu0 %v1444, 24
        %v1476 = vpop.permute.xlu0 %1475
        %vm1493 = vcmask 228544
        %1494 = vst.msk [vmem:[#allocation2] sm:$0xff] %vm1493, %v1446
        %1495 = vst.msk [vmem:[#allocation2 + $0x8] sm:$0xff] %vm1493, %v1448
        %1496 = vst.msk [vmem:[#allocation2 + $0x10] sm:$0xff] %vm1493, %v1450
        %1497 = vst.msk [vmem:[#allocation2 + $0x18] sm:$0xff] %vm1493, %v1452
        %1498 = vst.msk [vmem:[#allocation2 + $0x20] sm:$0xff] %vm1493, %v1454
        %1499 = vst.msk [vmem:[#allocation2 + $0x28] sm:$0xff] %vm1493, %v1456
        %1500 = vst.msk [vmem:[#allocation2 + $0x30] sm:$0xff] %vm1493, %v1458
        %1501 = vst.msk [vmem:[#allocation2 + $0x38] sm:$0xff] %vm1493, %v1460
        %1502 = vst.msk [vmem:[#allocation2 + $0x40] sm:$0xff] %vm1493, %v1462
        %1503 = vst.msk [vmem:[#allocation2 + $0x48] sm:$0xff] %vm1493, %v1464
        %1504 = vst.msk [vmem:[#allocation2 + $0x50] sm:$0xff] %vm1493, %v1466
        %1505 = vst.msk [vmem:[#allocation2 + $0x58] sm:$0xff] %vm1493, %v1468
        %1506 = vst.msk [vmem:[#allocation2 + $0x60] sm:$0xff] %vm1493, %v1470
        %1507 = vst.msk [vmem:[#allocation2 + $0x68] sm:$0xff] %vm1493, %v1472
        %1508 = vst.msk [vmem:[#allocation2 + $0x70] sm:$0xff] %vm1493, %v1474
        %1509 = vst.msk [vmem:[#allocation2 + $0x78] sm:$0xff] %vm1493, %v1476
        %v1511 = vshrl.u32 %v342, 16
        %v1513 = vrot.slane %v1511, 4
        %v1514 = vshll.u32 %v342, 16
        %v1516 = vrot.slane %v1514, 5
        %v1517 = vor.u32 %v1513, %v1516
        %v1518 = vrot.slane %v1517, 4
        %v1520 = vshll.u32 %v343, 16
        %v1522 = vrot.slane %v1520, 5
        %v1523 = vsel %vm460, %v1518, %v1522
        %v1524 = vshrl.u32 %v343, 16
        %v1526 = vrot.slane %v1524, 4
        %v1527 = vor.u32 %v1526, %v1522
        %v1528 = vrot.slane %v1527, 4
        %v1530 = vshll.u32 %v344, 16
        %v1532 = vrot.slane %v1530, 5
        %v1533 = vsel %vm460, %v1528, %v1532
        %v1534 = vunpack.c.l.b16 %v1523
        %v1535 = vunpack.c.l.b16 %v1533
        %v1536 = vpack.c.b16 %v1535, %v1534
        %1537 = vrot.lane.b32.xlu0 %v879, 28
        %v1538 = vpop.permute.xlu0 %1537
        %1539 = vrot.lane.b32.xlu0 %v880, 28
        %v1540 = vpop.permute.xlu0 %1539
        %1541 = vrot.lane.b32.xlu0 %v881, 28
        %v1542 = vpop.permute.xlu0 %1541
        %1543 = vrot.lane.b32.xlu0 %v882, 28
        %v1544 = vpop.permute.xlu0 %1543
        %1545 = vrot.lane.b32.xlu0 %v883, 28
        %v1546 = vpop.permute.xlu0 %1545
        %1547 = vrot.lane.b32.xlu0 %v884, 28
        %v1548 = vpop.permute.xlu0 %1547
        %1549 = vrot.lane.b32.xlu0 %v885, 28
        %v1550 = vpop.permute.xlu0 %1549
        %1551 = vrot.lane.b32.xlu0 %v886, 28
        %v1552 = vpop.permute.xlu0 %1551
        %1553 = vrot.lane.b32.xlu0 %v887, 28
        %v1554 = vpop.permute.xlu0 %1553
        %1555 = vrot.lane.b32.xlu0 %v888, 28
        %v1556 = vpop.permute.xlu0 %1555
        %1557 = vrot.lane.b32.xlu0 %v889, 28
        %v1558 = vpop.permute.xlu0 %1557
        %1559 = vrot.lane.b32.xlu0 %v890, 28
        %v1560 = vpop.permute.xlu0 %1559
        %1561 = vrot.lane.b32.xlu0 %v891, 28
        %v1562 = vpop.permute.xlu0 %1561
        %1563 = vrot.lane.b32.xlu0 %v892, 28
        %v1564 = vpop.permute.xlu0 %1563
        %1565 = vrot.lane.b32.xlu0 %v1298, 28
        %v1566 = vpop.permute.xlu0 %1565
        %1567 = vrot.lane.b32.xlu0 %v1536, 28
        %v1568 = vpop.permute.xlu0 %1567
        %vm1585 = vcmask 261344
        %1586 = vst.msk [vmem:[#allocation2] sm:$0xff] %vm1585, %v1538
        %1587 = vst.msk [vmem:[#allocation2 + $0x8] sm:$0xff] %vm1585, %v1540
        %1588 = vst.msk [vmem:[#allocation2 + $0x10] sm:$0xff] %vm1585, %v1542
        %1589 = vst.msk [vmem:[#allocation2 + $0x18] sm:$0xff] %vm1585, %v1544
        %1590 = vst.msk [vmem:[#allocation2 + $0x20] sm:$0xff] %vm1585, %v1546
        %1591 = vst.msk [vmem:[#allocation2 + $0x28] sm:$0xff] %vm1585, %v1548
        %1592 = vst.msk [vmem:[#allocation2 + $0x30] sm:$0xff] %vm1585, %v1550
        %1593 = vst.msk [vmem:[#allocation2 + $0x38] sm:$0xff] %vm1585, %v1552
        %1594 = vst.msk [vmem:[#allocation2 + $0x40] sm:$0xff] %vm1585, %v1554
        %1595 = vst.msk [vmem:[#allocation2 + $0x48] sm:$0xff] %vm1585, %v1556
        %1596 = vst.msk [vmem:[#allocation2 + $0x50] sm:$0xff] %vm1585, %v1558
        %1597 = vst.msk [vmem:[#allocation2 + $0x58] sm:$0xff] %vm1585, %v1560
        %1598 = vst.msk [vmem:[#allocation2 + $0x60] sm:$0xff] %vm1585, %v1562
        %1599 = vst.msk [vmem:[#allocation2 + $0x68] sm:$0xff] %vm1585, %v1564
        %1600 = vst.msk [vmem:[#allocation2 + $0x70] sm:$0xff] %vm1585, %v1566
        %1601 = vst.msk [vmem:[#allocation2 + $0x78] sm:$0xff] %vm1585, %v1568
        %v1603 = vrot.slane %v342, 5
        %v1604 = vrot.slane %v1603, 4
        %v1605 = vrot.slane %v343, 5
        %v1606 = vsel %vm976, %v1604, %v1605
        %v1607 = vrot.slane %v1605, 4
        %v1608 = vrot.slane %v344, 5
        %v1609 = vsel %vm976, %v1607, %v1608
        %v1610 = vunpack.c.l.b16 %v1606
        %v1611 = vunpack.c.l.b16 %v1609
        %v1612 = vpack.c.b16 %v1611, %v1610
        %1613 = vrot.lane.b32.xlu0 %v1123, 32
        %v1614 = vpop.permute.xlu0 %1613
        %1615 = vrot.lane.b32.xlu0 %v1124, 32
        %v1616 = vpop.permute.xlu0 %1615
        %1617 = vrot.lane.b32.xlu0 %v1125, 32
        %v1618 = vpop.permute.xlu0 %1617
        %1619 = vrot.lane.b32.xlu0 %v1126, 32
        %v1620 = vpop.permute.xlu0 %1619
        %1621 = vrot.lane.b32.xlu0 %v1127, 32
        %v1622 = vpop.permute.xlu0 %1621
        %1623 = vrot.lane.b32.xlu0 %v1128, 32
        %v1624 = vpop.permute.xlu0 %1623
        %1625 = vrot.lane.b32.xlu0 %v1129, 32
        %v1626 = vpop.permute.xlu0 %1625
        %1627 = vrot.lane.b32.xlu0 %v1130, 32
        %v1628 = vpop.permute.xlu0 %1627
        %1629 = vrot.lane.b32.xlu0 %v1131, 32
        %v1630 = vpop.permute.xlu0 %1629
        %1631 = vrot.lane.b32.xlu0 %v1132, 32
        %v1632 = vpop.permute.xlu0 %1631
        %1633 = vrot.lane.b32.xlu0 %v1133, 32
        %v1634 = vpop.permute.xlu0 %1633
        %1635 = vrot.lane.b32.xlu0 %v1134, 32
        %v1636 = vpop.permute.xlu0 %1635
        %1637 = vrot.lane.b32.xlu0 %v1135, 32
        %v1638 = vpop.permute.xlu0 %1637
        %1639 = vrot.lane.b32.xlu0 %v1136, 32
        %v1640 = vpop.permute.xlu0 %1639
        %1641 = vrot.lane.b32.xlu0 %v1374, 32
        %v1642 = vpop.permute.xlu0 %1641
        %1643 = vrot.lane.b32.xlu0 %v1612, 32
        %v1644 = vpop.permute.xlu0 %1643
        %vm1661 = vcmask 294144
        %1662 = vst.msk [vmem:[#allocation2] sm:$0xff] %vm1661, %v1614
        %1663 = vst.msk [vmem:[#allocation2 + $0x8] sm:$0xff] %vm1661, %v1616
        %1664 = vst.msk [vmem:[#allocation2 + $0x10] sm:$0xff] %vm1661, %v1618
        %1665 = vst.msk [vmem:[#allocation2 + $0x18] sm:$0xff] %vm1661, %v1620
        %1666 = vst.msk [vmem:[#allocation2 + $0x20] sm:$0xff] %vm1661, %v1622
        %1667 = vst.msk [vmem:[#allocation2 + $0x28] sm:$0xff] %vm1661, %v1624
        %1668 = vst.msk [vmem:[#allocation2 + $0x30] sm:$0xff] %vm1661, %v1626
        %1669 = vst.msk [vmem:[#allocation2 + $0x38] sm:$0xff] %vm1661, %v1628
        %1670 = vst.msk [vmem:[#allocation2 + $0x40] sm:$0xff] %vm1661, %v1630
        %1671 = vst.msk [vmem:[#allocation2 + $0x48] sm:$0xff] %vm1661, %v1632
        %1672 = vst.msk [vmem:[#allocation2 + $0x50] sm:$0xff] %vm1661, %v1634
        %1673 = vst.msk [vmem:[#allocation2 + $0x58] sm:$0xff] %vm1661, %v1636
        %1674 = vst.msk [vmem:[#allocation2 + $0x60] sm:$0xff] %vm1661, %v1638
        %1675 = vst.msk [vmem:[#allocation2 + $0x68] sm:$0xff] %vm1661, %v1640
        %1676 = vst.msk [vmem:[#allocation2 + $0x70] sm:$0xff] %vm1661, %v1642
        %1677 = vst.msk [vmem:[#allocation2 + $0x78] sm:$0xff] %vm1661, %v1644
        %v1678 = vld [vmem:[%s287] sm:$0xf]
        %v1679 = vld [vmem:[%s287 + $0x4] sm:$0xf]
        %v1680 = vld [vmem:[%s287 + $0x8] sm:$0x1]
        %v1681 = vld [vmem:[%s287 + $0xc] sm:$0xf]
        %v1682 = vld [vmem:[%s287 + $0x10] sm:$0xf]
        %v1683 = vld [vmem:[%s287 + $0x14] sm:$0x1]
        %v1684 = vld [vmem:[%s287 + $0x18] sm:$0xf]
        %v1685 = vld [vmem:[%s287 + $0x1c] sm:$0xf]
        %v1686 = vld [vmem:[%s287 + $0x20] sm:$0x1]
        %v1687 = vld [vmem:[%s287 + $0x24] sm:$0xf]
        %v1688 = vld [vmem:[%s287 + $0x28] sm:$0xf]
        %v1689 = vld [vmem:[%s287 + $0x2c] sm:$0x1]
        %v1690 = vld [vmem:[%s287 + $0x30] sm:$0xf]
        %v1691 = vld [vmem:[%s287 + $0x34] sm:$0xf]
        %v1692 = vld [vmem:[%s287 + $0x38] sm:$0x1]
        %v1693 = vld [vmem:[%s287 + $0x3c] sm:$0xf]
        %v1694 = vld [vmem:[%s287 + $0x40] sm:$0xf]
        %v1695 = vld [vmem:[%s287 + $0x44] sm:$0x1]
        %v1696 = vld [vmem:[%s287 + $0x48] sm:$0xf]
        %v1697 = vld [vmem:[%s287 + $0x4c] sm:$0xf]
        %v1698 = vld [vmem:[%s287 + $0x50] sm:$0x1]
        %v1699 = vld [vmem:[%s287 + $0x54] sm:$0xf]
        %v1700 = vld [vmem:[%s287 + $0x58] sm:$0xf]
        %v1701 = vld [vmem:[%s287 + $0x5c] sm:$0x1]
        %v1702 = vld [vmem:[%s287 + $0x60] sm:$0xf]
        %v1703 = vld [vmem:[%s287 + $0x64] sm:$0xf]
        %v1704 = vld [vmem:[%s287 + $0x68] sm:$0x1]
        %v1705 = vld [vmem:[%s287 + $0x6c] sm:$0xf]
        %v1706 = vld [vmem:[%s287 + $0x70] sm:$0xf]
        %v1707 = vld [vmem:[%s287 + $0x74] sm:$0x1]
        %v1708 = vld [vmem:[%s287 + $0x78] sm:$0xf]
        %v1709 = vld [vmem:[%s287 + $0x7c] sm:$0xf]
        %v1710 = vld [vmem:[%s287 + $0x80] sm:$0x1]
        %v1711 = vld [vmem:[%s287 + $0x84] sm:$0xf]
        %v1712 = vld [vmem:[%s287 + $0x88] sm:$0xf]
        %v1713 = vld [vmem:[%s287 + $0x8c] sm:$0x1]
        %v1714 = vld [vmem:[%s287 + $0x90] sm:$0xf]
        %v1715 = vld [vmem:[%s287 + $0x94] sm:$0xf]
        %v1716 = vld [vmem:[%s287 + $0x98] sm:$0x1]
        %v1717 = vld [vmem:[%s287 + $0x9c] sm:$0xf]
        %v1718 = vld [vmem:[%s287 + $0xa0] sm:$0xf]
        %v1719 = vld [vmem:[%s287 + $0xa4] sm:$0x1]
        %v1720 = vld [vmem:[%s287 + $0xa8] sm:$0xf]
        %v1721 = vld [vmem:[%s287 + $0xac] sm:$0xf]
        %v1722 = vld [vmem:[%s287 + $0xb0] sm:$0x1]
        %v1723 = vld [vmem:[%s287 + $0xb4] sm:$0xf]
        %v1724 = vld [vmem:[%s287 + $0xb8] sm:$0xf]
        %v1725 = vld [vmem:[%s287 + $0xbc] sm:$0x1]
        %v1726 = vld [vmem:[%s287 + $0xc0] sm:$0xf]
        %v1727 = vld [vmem:[%s287 + $0xc4] sm:$0xf]
        %v1728 = vld [vmem:[%s287 + $0xc8] sm:$0x1]
        %v1729 = vld [vmem:[%s287 + $0xcc] sm:$0xf]
        %v1730 = vld [vmem:[%s287 + $0xd0] sm:$0xf]
        %v1731 = vld [vmem:[%s287 + $0xd4] sm:$0x1]
        %v1764 = vunpack.c.l.b16 %v1678
        %v1765 = vunpack.c.l.b16 %v1679
        %v1766 = vunpack.c.l.b16 %v1681
        %v1767 = vunpack.c.l.b16 %v1682
        %v1768 = vunpack.c.l.b16 %v1684
        %v1769 = vunpack.c.l.b16 %v1685
        %v1770 = vunpack.c.l.b16 %v1687
        %v1771 = vunpack.c.l.b16 %v1688
        %v1772 = vunpack.c.l.b16 %v1690
        %v1773 = vunpack.c.l.b16 %v1691
        %v1774 = vunpack.c.l.b16 %v1693
        %v1775 = vunpack.c.l.b16 %v1694
        %v1776 = vunpack.c.l.b16 %v1696
        %v1777 = vunpack.c.l.b16 %v1697
        %v1778 = vunpack.c.l.b16 %v1699
        %v1779 = vunpack.c.l.b16 %v1700
        %v1780 = vunpack.c.l.b16 %v1702
        %v1781 = vunpack.c.l.b16 %v1703
        %v1782 = vunpack.c.l.b16 %v1705
        %v1783 = vunpack.c.l.b16 %v1706
        %v1784 = vunpack.c.l.b16 %v1708
        %v1785 = vunpack.c.l.b16 %v1709
        %v1786 = vunpack.c.l.b16 %v1711
        %v1787 = vunpack.c.l.b16 %v1712
        %v1788 = vunpack.c.l.b16 %v1714
        %v1789 = vunpack.c.l.b16 %v1715
        %v1790 = vunpack.c.l.b16 %v1717
        %v1791 = vunpack.c.l.b16 %v1718
        %v1792 = vunpack.c.l.b16 %v1720
        %v1793 = vunpack.c.l.b16 %v1721
        %v1794 = vunpack.c.l.b16 %v1723
        %v1795 = vunpack.c.l.b16 %v1724
        %v1796 = vpack.c.b16 %v1765, %v1764
        %v1797 = vpack.c.b16 %v1767, %v1766
        %v1798 = vpack.c.b16 %v1769, %v1768
        %v1799 = vpack.c.b16 %v1771, %v1770
        %v1800 = vpack.c.b16 %v1773, %v1772
        %v1801 = vpack.c.b16 %v1775, %v1774
        %v1802 = vpack.c.b16 %v1777, %v1776
        %v1803 = vpack.c.b16 %v1779, %v1778
        %v1804 = vpack.c.b16 %v1781, %v1780
        %v1805 = vpack.c.b16 %v1783, %v1782
        %v1806 = vpack.c.b16 %v1785, %v1784
        %v1807 = vpack.c.b16 %v1787, %v1786
        %v1808 = vpack.c.b16 %v1789, %v1788
        %v1809 = vpack.c.b16 %v1791, %v1790
        %v1810 = vpack.c.b16 %v1793, %v1792
        %v1811 = vpack.c.b16 %v1795, %v1794
        %1812 = vrot.lane.b32.xlu0 %v1796, 36
        %v1813 = vpop.permute.xlu0 %1812
        %1814 = vrot.lane.b32.xlu0 %v1797, 36
        %v1815 = vpop.permute.xlu0 %1814
        %1816 = vrot.lane.b32.xlu0 %v1798, 36
        %v1817 = vpop.permute.xlu0 %1816
        %1818 = vrot.lane.b32.xlu0 %v1799, 36
        %v1819 = vpop.permute.xlu0 %1818
        %1820 = vrot.lane.b32.xlu0 %v1800, 36
        %v1821 = vpop.permute.xlu0 %1820
        %1822 = vrot.lane.b32.xlu0 %v1801, 36
        %v1823 = vpop.permute.xlu0 %1822
        %1824 = vrot.lane.b32.xlu0 %v1802, 36
        %v1825 = vpop.permute.xlu0 %1824
        %1826 = vrot.lane.b32.xlu0 %v1803, 36
        %v1827 = vpop.permute.xlu0 %1826
        %1828 = vrot.lane.b32.xlu0 %v1804, 36
        %v1829 = vpop.permute.xlu0 %1828
        %1830 = vrot.lane.b32.xlu0 %v1805, 36
        %v1831 = vpop.permute.xlu0 %1830
        %1832 = vrot.lane.b32.xlu0 %v1806, 36
        %v1833 = vpop.permute.xlu0 %1832
        %1834 = vrot.lane.b32.xlu0 %v1807, 36
        %v1835 = vpop.permute.xlu0 %1834
        %1836 = vrot.lane.b32.xlu0 %v1808, 36
        %v1837 = vpop.permute.xlu0 %1836
        %1838 = vrot.lane.b32.xlu0 %v1809, 36
        %v1839 = vpop.permute.xlu0 %1838
        %1840 = vrot.lane.b32.xlu0 %v1810, 36
        %v1841 = vpop.permute.xlu0 %1840
        %1842 = vrot.lane.b32.xlu0 %v1811, 36
        %v1843 = vpop.permute.xlu0 %1842
        %vm1860 = vcmask 326944
        %1861 = vst.msk [vmem:[#allocation2] sm:$0xff] %vm1860, %v1813
        %1862 = vst.msk [vmem:[#allocation2 + $0x8] sm:$0xff] %vm1860, %v1815
        %1863 = vst.msk [vmem:[#allocation2 + $0x10] sm:$0xff] %vm1860, %v1817
        %1864 = vst.msk [vmem:[#allocation2 + $0x18] sm:$0xff] %vm1860, %v1819
        %1865 = vst.msk [vmem:[#allocation2 + $0x20] sm:$0xff] %vm1860, %v1821
        %1866 = vst.msk [vmem:[#allocation2 + $0x28] sm:$0xff] %vm1860, %v1823
        %1867 = vst.msk [vmem:[#allocation2 + $0x30] sm:$0xff] %vm1860, %v1825
        %1868 = vst.msk [vmem:[#allocation2 + $0x38] sm:$0xff] %vm1860, %v1827
        %1869 = vst.msk [vmem:[#allocation2 + $0x40] sm:$0xff] %vm1860, %v1829
        %1870 = vst.msk [vmem:[#allocation2 + $0x48] sm:$0xff] %vm1860, %v1831
        %1871 = vst.msk [vmem:[#allocation2 + $0x50] sm:$0xff] %vm1860, %v1833
        %1872 = vst.msk [vmem:[#allocation2 + $0x58] sm:$0xff] %vm1860, %v1835
        %1873 = vst.msk [vmem:[#allocation2 + $0x60] sm:$0xff] %vm1860, %v1837
        %1874 = vst.msk [vmem:[#allocation2 + $0x68] sm:$0xff] %vm1860, %v1839
        %1875 = vst.msk [vmem:[#allocation2 + $0x70] sm:$0xff] %vm1860, %v1841
        %1876 = vst.msk [vmem:[#allocation2 + $0x78] sm:$0xff] %vm1860, %v1843
        %v1878 = vshrl.u32 %v1678, 16
        %v1880 = vrot.slane %v1878, 4
        %v1881 = vshll.u32 %v1678, 16
        %v1883 = vrot.slane %v1881, 5
        %v1884 = vor.u32 %v1880, %v1883
        %v1885 = vrot.slane %v1884, 4
        %v1887 = vshll.u32 %v1679, 16
        %v1889 = vrot.slane %v1887, 5
        %v1890 = vsel %vm460, %v1885, %v1889
        %v1891 = vshrl.u32 %v1679, 16
        %v1893 = vrot.slane %v1891, 4
        %v1894 = vor.u32 %v1893, %v1889
        %v1895 = vrot.slane %v1894, 4
        %v1897 = vshll.u32 %v1680, 16
        %v1899 = vrot.slane %v1897, 5
        %v1900 = vsel %vm460, %v1895, %v1899
        %v1902 = vshrl.u32 %v1681, 16
        %v1904 = vrot.slane %v1902, 4
        %v1905 = vshll.u32 %v1681, 16
        %v1907 = vrot.slane %v1905, 5
        %v1908 = vor.u32 %v1904, %v1907
        %v1909 = vrot.slane %v1908, 4
        %v1911 = vshll.u32 %v1682, 16
        %v1913 = vrot.slane %v1911, 5
        %v1914 = vsel %vm460, %v1909, %v1913
        %v1915 = vshrl.u32 %v1682, 16
        %v1917 = vrot.slane %v1915, 4
        %v1918 = vor.u32 %v1917, %v1913
        %v1919 = vrot.slane %v1918, 4
        %v1921 = vshll.u32 %v1683, 16
        %v1923 = vrot.slane %v1921, 5
        %v1924 = vsel %vm460, %v1919, %v1923
        %v1926 = vshrl.u32 %v1684, 16
        %v1928 = vrot.slane %v1926, 4
        %v1929 = vshll.u32 %v1684, 16
        %v1931 = vrot.slane %v1929, 5
        %v1932 = vor.u32 %v1928, %v1931
        %v1933 = vrot.slane %v1932, 4
        %v1935 = vshll.u32 %v1685, 16
        %v1937 = vrot.slane %v1935, 5
        %v1938 = vsel %vm460, %v1933, %v1937
        %v1939 = vshrl.u32 %v1685, 16
        %v1941 = vrot.slane %v1939, 4
        %v1942 = vor.u32 %v1941, %v1937
        %v1943 = vrot.slane %v1942, 4
        %v1945 = vshll.u32 %v1686, 16
        %v1947 = vrot.slane %v1945, 5
        %v1948 = vsel %vm460, %v1943, %v1947
        %v1950 = vshrl.u32 %v1687, 16
        %v1952 = vrot.slane %v1950, 4
        %v1953 = vshll.u32 %v1687, 16
        %v1955 = vrot.slane %v1953, 5
        %v1956 = vor.u32 %v1952, %v1955
        %v1957 = vrot.slane %v1956, 4
        %v1959 = vshll.u32 %v1688, 16
        %v1961 = vrot.slane %v1959, 5
        %v1962 = vsel %vm460, %v1957, %v1961
        %v1963 = vshrl.u32 %v1688, 16
        %v1965 = vrot.slane %v1963, 4
        %v1966 = vor.u32 %v1965, %v1961
        %v1967 = vrot.slane %v1966, 4
        %v1969 = vshll.u32 %v1689, 16
        %v1971 = vrot.slane %v1969, 5
        %v1972 = vsel %vm460, %v1967, %v1971
        %v1974 = vshrl.u32 %v1690, 16
        %v1976 = vrot.slane %v1974, 4
        %v1977 = vshll.u32 %v1690, 16
        %v1979 = vrot.slane %v1977, 5
        %v1980 = vor.u32 %v1976, %v1979
        %v1981 = vrot.slane %v1980, 4
        %v1983 = vshll.u32 %v1691, 16
        %v1985 = vrot.slane %v1983, 5
        %v1986 = vsel %vm460, %v1981, %v1985
        %v1987 = vshrl.u32 %v1691, 16
        %v1989 = vrot.slane %v1987, 4
        %v1990 = vor.u32 %v1989, %v1985
        %v1991 = vrot.slane %v1990, 4
        %v1993 = vshll.u32 %v1692, 16
        %v1995 = vrot.slane %v1993, 5
        %v1996 = vsel %vm460, %v1991, %v1995
        %v1998 = vshrl.u32 %v1693, 16
        %v2000 = vrot.slane %v1998, 4
        %v2001 = vshll.u32 %v1693, 16
        %v2003 = vrot.slane %v2001, 5
        %v2004 = vor.u32 %v2000, %v2003
        %v2005 = vrot.slane %v2004, 4
        %v2007 = vshll.u32 %v1694, 16
        %v2009 = vrot.slane %v2007, 5
        %v2010 = vsel %vm460, %v2005, %v2009
        %v2011 = vshrl.u32 %v1694, 16
        %v2013 = vrot.slane %v2011, 4
        %v2014 = vor.u32 %v2013, %v2009
        %v2015 = vrot.slane %v2014, 4
        %v2017 = vshll.u32 %v1695, 16
        %v2019 = vrot.slane %v2017, 5
        %v2020 = vsel %vm460, %v2015, %v2019
        %v2022 = vshrl.u32 %v1696, 16
        %v2024 = vrot.slane %v2022, 4
        %v2025 = vshll.u32 %v1696, 16
        %v2027 = vrot.slane %v2025, 5
        %v2028 = vor.u32 %v2024, %v2027
        %v2029 = vrot.slane %v2028, 4
        %v2031 = vshll.u32 %v1697, 16
        %v2033 = vrot.slane %v2031, 5
        %v2034 = vsel %vm460, %v2029, %v2033
        %v2035 = vshrl.u32 %v1697, 16
        %v2037 = vrot.slane %v2035, 4
        %v2038 = vor.u32 %v2037, %v2033
        %v2039 = vrot.slane %v2038, 4
        %v2041 = vshll.u32 %v1698, 16
        %v2043 = vrot.slane %v2041, 5
        %v2044 = vsel %vm460, %v2039, %v2043
        %v2046 = vshrl.u32 %v1699, 16
        %v2048 = vrot.slane %v2046, 4
        %v2049 = vshll.u32 %v1699, 16
        %v2051 = vrot.slane %v2049, 5
        %v2052 = vor.u32 %v2048, %v2051
        %v2053 = vrot.slane %v2052, 4
        %v2055 = vshll.u32 %v1700, 16
        %v2057 = vrot.slane %v2055, 5
        %v2058 = vsel %vm460, %v2053, %v2057
        %v2059 = vshrl.u32 %v1700, 16
        %v2061 = vrot.slane %v2059, 4
        %v2062 = vor.u32 %v2061, %v2057
        %v2063 = vrot.slane %v2062, 4
        %v2065 = vshll.u32 %v1701, 16
        %v2067 = vrot.slane %v2065, 5
        %v2068 = vsel %vm460, %v2063, %v2067
        %v2070 = vshrl.u32 %v1702, 16
        %v2072 = vrot.slane %v2070, 4
        %v2073 = vshll.u32 %v1702, 16
        %v2075 = vrot.slane %v2073, 5
        %v2076 = vor.u32 %v2072, %v2075
        %v2077 = vrot.slane %v2076, 4
        %v2079 = vshll.u32 %v1703, 16
        %v2081 = vrot.slane %v2079, 5
        %v2082 = vsel %vm460, %v2077, %v2081
        %v2083 = vshrl.u32 %v1703, 16
        %v2085 = vrot.slane %v2083, 4
        %v2086 = vor.u32 %v2085, %v2081
        %v2087 = vrot.slane %v2086, 4
        %v2089 = vshll.u32 %v1704, 16
        %v2091 = vrot.slane %v2089, 5
        %v2092 = vsel %vm460, %v2087, %v2091
        %v2094 = vshrl.u32 %v1705, 16
        %v2096 = vrot.slane %v2094, 4
        %v2097 = vshll.u32 %v1705, 16
        %v2099 = vrot.slane %v2097, 5
        %v2100 = vor.u32 %v2096, %v2099
        %v2101 = vrot.slane %v2100, 4
        %v2103 = vshll.u32 %v1706, 16
        %v2105 = vrot.slane %v2103, 5
        %v2106 = vsel %vm460, %v2101, %v2105
        %v2107 = vshrl.u32 %v1706, 16
        %v2109 = vrot.slane %v2107, 4
        %v2110 = vor.u32 %v2109, %v2105
        %v2111 = vrot.slane %v2110, 4
        %v2113 = vshll.u32 %v1707, 16
        %v2115 = vrot.slane %v2113, 5
        %v2116 = vsel %vm460, %v2111, %v2115
        %v2118 = vshrl.u32 %v1708, 16
        %v2120 = vrot.slane %v2118, 4
        %v2121 = vshll.u32 %v1708, 16
        %v2123 = vrot.slane %v2121, 5
        %v2124 = vor.u32 %v2120, %v2123
        %v2125 = vrot.slane %v2124, 4
        %v2127 = vshll.u32 %v1709, 16
        %v2129 = vrot.slane %v2127, 5
        %v2130 = vsel %vm460, %v2125, %v2129
        %v2131 = vshrl.u32 %v1709, 16
        %v2133 = vrot.slane %v2131, 4
        %v2134 = vor.u32 %v2133, %v2129
        %v2135 = vrot.slane %v2134, 4
        %v2137 = vshll.u32 %v1710, 16
        %v2139 = vrot.slane %v2137, 5
        %v2140 = vsel %vm460, %v2135, %v2139
        %v2142 = vshrl.u32 %v1711, 16
        %v2144 = vrot.slane %v2142, 4
        %v2145 = vshll.u32 %v1711, 16
        %v2147 = vrot.slane %v2145, 5
        %v2148 = vor.u32 %v2144, %v2147
        %v2149 = vrot.slane %v2148, 4
        %v2151 = vshll.u32 %v1712, 16
        %v2153 = vrot.slane %v2151, 5
        %v2154 = vsel %vm460, %v2149, %v2153
        %v2155 = vshrl.u32 %v1712, 16
        %v2157 = vrot.slane %v2155, 4
        %v2158 = vor.u32 %v2157, %v2153
        %v2159 = vrot.slane %v2158, 4
        %v2161 = vshll.u32 %v1713, 16
        %v2163 = vrot.slane %v2161, 5
        %v2164 = vsel %vm460, %v2159, %v2163
        %v2166 = vshrl.u32 %v1714, 16
        %v2168 = vrot.slane %v2166, 4
        %v2169 = vshll.u32 %v1714, 16
        %v2171 = vrot.slane %v2169, 5
        %v2172 = vor.u32 %v2168, %v2171
        %v2173 = vrot.slane %v2172, 4
        %v2175 = vshll.u32 %v1715, 16
        %v2177 = vrot.slane %v2175, 5
        %v2178 = vsel %vm460, %v2173, %v2177
        %v2179 = vshrl.u32 %v1715, 16
        %v2181 = vrot.slane %v2179, 4
        %v2182 = vor.u32 %v2181, %v2177
        %v2183 = vrot.slane %v2182, 4
        %v2185 = vshll.u32 %v1716, 16
        %v2187 = vrot.slane %v2185, 5
        %v2188 = vsel %vm460, %v2183, %v2187
        %v2190 = vshrl.u32 %v1717, 16
        %v2192 = vrot.slane %v2190, 4
        %v2193 = vshll.u32 %v1717, 16
        %v2195 = vrot.slane %v2193, 5
        %v2196 = vor.u32 %v2192, %v2195
        %v2197 = vrot.slane %v2196, 4
        %v2199 = vshll.u32 %v1718, 16
        %v2201 = vrot.slane %v2199, 5
        %v2202 = vsel %vm460, %v2197, %v2201
        %v2203 = vshrl.u32 %v1718, 16
        %v2205 = vrot.slane %v2203, 4
        %v2206 = vor.u32 %v2205, %v2201
        %v2207 = vrot.slane %v2206, 4
        %v2209 = vshll.u32 %v1719, 16
        %v2211 = vrot.slane %v2209, 5
        %v2212 = vsel %vm460, %v2207, %v2211
        %v2214 = vshrl.u32 %v1720, 16
        %v2216 = vrot.slane %v2214, 4
        %v2217 = vshll.u32 %v1720, 16
        %v2219 = vrot.slane %v2217, 5
        %v2220 = vor.u32 %v2216, %v2219
        %v2221 = vrot.slane %v2220, 4
        %v2223 = vshll.u32 %v1721, 16
        %v2225 = vrot.slane %v2223, 5
        %v2226 = vsel %vm460, %v2221, %v2225
        %v2227 = vshrl.u32 %v1721, 16
        %v2229 = vrot.slane %v2227, 4
        %v2230 = vor.u32 %v2229, %v2225
        %v2231 = vrot.slane %v2230, 4
        %v2233 = vshll.u32 %v1722, 16
        %v2235 = vrot.slane %v2233, 5
        %v2236 = vsel %vm460, %v2231, %v2235
        %v2238 = vshrl.u32 %v1723, 16
        %v2240 = vrot.slane %v2238, 4
        %v2241 = vshll.u32 %v1723, 16
        %v2243 = vrot.slane %v2241, 5
        %v2244 = vor.u32 %v2240, %v2243
        %v2245 = vrot.slane %v2244, 4
        %v2247 = vshll.u32 %v1724, 16
        %v2249 = vrot.slane %v2247, 5
        %v2250 = vsel %vm460, %v2245, %v2249
        %v2251 = vshrl.u32 %v1724, 16
        %v2253 = vrot.slane %v2251, 4
        %v2254 = vor.u32 %v2253, %v2249
        %v2255 = vrot.slane %v2254, 4
        %v2257 = vshll.u32 %v1725, 16
        %v2259 = vrot.slane %v2257, 5
        %v2260 = vsel %vm460, %v2255, %v2259
        %v2261 = vunpack.c.l.b16 %v1890
        %v2262 = vunpack.c.l.b16 %v1900
        %v2263 = vunpack.c.l.b16 %v1914
        %v2264 = vunpack.c.l.b16 %v1924
        %v2265 = vunpack.c.l.b16 %v1938
        %v2266 = vunpack.c.l.b16 %v1948
        %v2267 = vunpack.c.l.b16 %v1962
        %v2268 = vunpack.c.l.b16 %v1972
        %v2269 = vunpack.c.l.b16 %v1986
        %v2270 = vunpack.c.l.b16 %v1996
        %v2271 = vunpack.c.l.b16 %v2010
        %v2272 = vunpack.c.l.b16 %v2020
        %v2273 = vunpack.c.l.b16 %v2034
        %v2274 = vunpack.c.l.b16 %v2044
        %v2275 = vunpack.c.l.b16 %v2058
        %v2276 = vunpack.c.l.b16 %v2068
        %v2277 = vunpack.c.l.b16 %v2082
        %v2278 = vunpack.c.l.b16 %v2092
        %v2279 = vunpack.c.l.b16 %v2106
        %v2280 = vunpack.c.l.b16 %v2116
        %v2281 = vunpack.c.l.b16 %v2130
        %v2282 = vunpack.c.l.b16 %v2140
        %v2283 = vunpack.c.l.b16 %v2154
        %v2284 = vunpack.c.l.b16 %v2164
        %v2285 = vunpack.c.l.b16 %v2178
        %v2286 = vunpack.c.l.b16 %v2188
        %v2287 = vunpack.c.l.b16 %v2202
        %v2288 = vunpack.c.l.b16 %v2212
        %v2289 = vunpack.c.l.b16 %v2226
        %v2290 = vunpack.c.l.b16 %v2236
        %v2291 = vunpack.c.l.b16 %v2250
        %v2292 = vunpack.c.l.b16 %v2260
        %v2293 = vpack.c.b16 %v2262, %v2261
        %v2294 = vpack.c.b16 %v2264, %v2263
        %v2295 = vpack.c.b16 %v2266, %v2265
        %v2296 = vpack.c.b16 %v2268, %v2267
        %v2297 = vpack.c.b16 %v2270, %v2269
        %v2298 = vpack.c.b16 %v2272, %v2271
        %v2299 = vpack.c.b16 %v2274, %v2273
        %v2300 = vpack.c.b16 %v2276, %v2275
        %v2301 = vpack.c.b16 %v2278, %v2277
        %v2302 = vpack.c.b16 %v2280, %v2279
        %v2303 = vpack.c.b16 %v2282, %v2281
        %v2304 = vpack.c.b16 %v2284, %v2283
        %v2305 = vpack.c.b16 %v2286, %v2285
        %v2306 = vpack.c.b16 %v2288, %v2287
        %v2307 = vpack.c.b16 %v2290, %v2289
        %v2308 = vpack.c.b16 %v2292, %v2291
        %2309 = vrot.lane.b32.xlu0 %v2293, 40
        %v2310 = vpop.permute.xlu0 %2309
        %2311 = vrot.lane.b32.xlu0 %v2294, 40
        %v2312 = vpop.permute.xlu0 %2311
        %2313 = vrot.lane.b32.xlu0 %v2295, 40
        %v2314 = vpop.permute.xlu0 %2313
        %2315 = vrot.lane.b32.xlu0 %v2296, 40
        %v2316 = vpop.permute.xlu0 %2315
        %2317 = vrot.lane.b32.xlu0 %v2297, 40
        %v2318 = vpop.permute.xlu0 %2317
        %2319 = vrot.lane.b32.xlu0 %v2298, 40
        %v2320 = vpop.permute.xlu0 %2319
        %2321 = vrot.lane.b32.xlu0 %v2299, 40
        %v2322 = vpop.permute.xlu0 %2321
        %2323 = vrot.lane.b32.xlu0 %v2300, 40
        %v2324 = vpop.permute.xlu0 %2323
        %2325 = vrot.lane.b32.xlu0 %v2301, 40
        %v2326 = vpop.permute.xlu0 %2325
        %2327 = vrot.lane.b32.xlu0 %v2302, 40
        %v2328 = vpop.permute.xlu0 %2327
        %2329 = vrot.lane.b32.xlu0 %v2303, 40
        %v2330 = vpop.permute.xlu0 %2329
        %2331 = vrot.lane.b32.xlu0 %v2304, 40
        %v2332 = vpop.permute.xlu0 %2331
        %2333 = vrot.lane.b32.xlu0 %v2305, 40
        %v2334 = vpop.permute.xlu0 %2333
        %2335 = vrot.lane.b32.xlu0 %v2306, 40
        %v2336 = vpop.permute.xlu0 %2335
        %2337 = vrot.lane.b32.xlu0 %v2307, 40
        %v2338 = vpop.permute.xlu0 %2337
        %2339 = vrot.lane.b32.xlu0 %v2308, 40
        %v2340 = vpop.permute.xlu0 %2339
        %vm2357 = vcmask 359744
        %2358 = vst.msk [vmem:[#allocation2] sm:$0xff] %vm2357, %v2310
        %2359 = vst.msk [vmem:[#allocation2 + $0x8] sm:$0xff] %vm2357, %v2312
        %2360 = vst.msk [vmem:[#allocation2 + $0x10] sm:$0xff] %vm2357, %v2314
        %2361 = vst.msk [vmem:[#allocation2 + $0x18] sm:$0xff] %vm2357, %v2316
        %2362 = vst.msk [vmem:[#allocation2 + $0x20] sm:$0xff] %vm2357, %v2318
        %2363 = vst.msk [vmem:[#allocation2 + $0x28] sm:$0xff] %vm2357, %v2320
        %2364 = vst.msk [vmem:[#allocation2 + $0x30] sm:$0xff] %vm2357, %v2322
        %2365 = vst.msk [vmem:[#allocation2 + $0x38] sm:$0xff] %vm2357, %v2324
        %2366 = vst.msk [vmem:[#allocation2 + $0x40] sm:$0xff] %vm2357, %v2326
        %2367 = vst.msk [vmem:[#allocation2 + $0x48] sm:$0xff] %vm2357, %v2328
        %2368 = vst.msk [vmem:[#allocation2 + $0x50] sm:$0xff] %vm2357, %v2330
        %2369 = vst.msk [vmem:[#allocation2 + $0x58] sm:$0xff] %vm2357, %v2332
        %2370 = vst.msk [vmem:[#allocation2 + $0x60] sm:$0xff] %vm2357, %v2334
        %2371 = vst.msk [vmem:[#allocation2 + $0x68] sm:$0xff] %vm2357, %v2336
        %2372 = vst.msk [vmem:[#allocation2 + $0x70] sm:$0xff] %vm2357, %v2338
        %2373 = vst.msk [vmem:[#allocation2 + $0x78] sm:$0xff] %vm2357, %v2340
        %v2390 = vrot.slane %v1678, 5
        %v2391 = vrot.slane %v2390, 4
        %v2392 = vrot.slane %v1679, 5
        %v2393 = vsel %vm976, %v2391, %v2392
        %v2394 = vrot.slane %v2392, 4
        %v2395 = vrot.slane %v1680, 5
        %v2396 = vsel %vm976, %v2394, %v2395
        %v2397 = vrot.slane %v1681, 5
        %v2398 = vrot.slane %v2397, 4
        %v2399 = vrot.slane %v1682, 5
        %v2400 = vsel %vm976, %v2398, %v2399
        %v2401 = vrot.slane %v2399, 4
        %v2402 = vrot.slane %v1683, 5
        %v2403 = vsel %vm976, %v2401, %v2402
        %v2404 = vrot.slane %v1684, 5
        %v2405 = vrot.slane %v2404, 4
        %v2406 = vrot.slane %v1685, 5
        %v2407 = vsel %vm976, %v2405, %v2406
        %v2408 = vrot.slane %v2406, 4
        %v2409 = vrot.slane %v1686, 5
        %v2410 = vsel %vm976, %v2408, %v2409
        %v2411 = vrot.slane %v1687, 5
        %v2412 = vrot.slane %v2411, 4
        %v2413 = vrot.slane %v1688, 5
        %v2414 = vsel %vm976, %v2412, %v2413
        %v2415 = vrot.slane %v2413, 4
        %v2416 = vrot.slane %v1689, 5
        %v2417 = vsel %vm976, %v2415, %v2416
        %v2418 = vrot.slane %v1690, 5
        %v2419 = vrot.slane %v2418, 4
        %v2420 = vrot.slane %v1691, 5
        %v2421 = vsel %vm976, %v2419, %v2420
        %v2422 = vrot.slane %v2420, 4
        %v2423 = vrot.slane %v1692, 5
        %v2424 = vsel %vm976, %v2422, %v2423
        %v2425 = vrot.slane %v1693, 5
        %v2426 = vrot.slane %v2425, 4
        %v2427 = vrot.slane %v1694, 5
        %v2428 = vsel %vm976, %v2426, %v2427
        %v2429 = vrot.slane %v2427, 4
        %v2430 = vrot.slane %v1695, 5
        %v2431 = vsel %vm976, %v2429, %v2430
        %v2432 = vrot.slane %v1696, 5
        %v2433 = vrot.slane %v2432, 4
        %v2434 = vrot.slane %v1697, 5
        %v2435 = vsel %vm976, %v2433, %v2434
        %v2436 = vrot.slane %v2434, 4
        %v2437 = vrot.slane %v1698, 5
        %v2438 = vsel %vm976, %v2436, %v2437
        %v2439 = vrot.slane %v1699, 5
        %v2440 = vrot.slane %v2439, 4
        %v2441 = vrot.slane %v1700, 5
        %v2442 = vsel %vm976, %v2440, %v2441
        %v2443 = vrot.slane %v2441, 4
        %v2444 = vrot.slane %v1701, 5
        %v2445 = vsel %vm976, %v2443, %v2444
        %v2446 = vrot.slane %v1702, 5
        %v2447 = vrot.slane %v2446, 4
        %v2448 = vrot.slane %v1703, 5
        %v2449 = vsel %vm976, %v2447, %v2448
        %v2450 = vrot.slane %v2448, 4
        %v2451 = vrot.slane %v1704, 5
        %v2452 = vsel %vm976, %v2450, %v2451
        %v2453 = vrot.slane %v1705, 5
        %v2454 = vrot.slane %v2453, 4
        %v2455 = vrot.slane %v1706, 5
        %v2456 = vsel %vm976, %v2454, %v2455
        %v2457 = vrot.slane %v2455, 4
        %v2458 = vrot.slane %v1707, 5
        %v2459 = vsel %vm976, %v2457, %v2458
        %v2460 = vrot.slane %v1708, 5
        %v2461 = vrot.slane %v2460, 4
        %v2462 = vrot.slane %v1709, 5
        %v2463 = vsel %vm976, %v2461, %v2462
        %v2464 = vrot.slane %v2462, 4
        %v2465 = vrot.slane %v1710, 5
        %v2466 = vsel %vm976, %v2464, %v2465
        %v2467 = vrot.slane %v1711, 5
        %v2468 = vrot.slane %v2467, 4
        %v2469 = vrot.slane %v1712, 5
        %v2470 = vsel %vm976, %v2468, %v2469
        %v2471 = vrot.slane %v2469, 4
        %v2472 = vrot.slane %v1713, 5
        %v2473 = vsel %vm976, %v2471, %v2472
        %v2474 = vrot.slane %v1714, 5
        %v2475 = vrot.slane %v2474, 4
        %v2476 = vrot.slane %v1715, 5
        %v2477 = vsel %vm976, %v2475, %v2476
        %v2478 = vrot.slane %v2476, 4
        %v2479 = vrot.slane %v1716, 5
        %v2480 = vsel %vm976, %v2478, %v2479
        %v2481 = vrot.slane %v1717, 5
        %v2482 = vrot.slane %v2481, 4
        %v2483 = vrot.slane %v1718, 5
        %v2484 = vsel %vm976, %v2482, %v2483
        %v2485 = vrot.slane %v2483, 4
        %v2486 = vrot.slane %v1719, 5
        %v2487 = vsel %vm976, %v2485, %v2486
        %v2488 = vrot.slane %v1720, 5
        %v2489 = vrot.slane %v2488, 4
        %v2490 = vrot.slane %v1721, 5
        %v2491 = vsel %vm976, %v2489, %v2490
        %v2492 = vrot.slane %v2490, 4
        %v2493 = vrot.slane %v1722, 5
        %v2494 = vsel %vm976, %v2492, %v2493
        %v2495 = vrot.slane %v1723, 5
        %v2496 = vrot.slane %v2495, 4
        %v2497 = vrot.slane %v1724, 5
        %v2498 = vsel %vm976, %v2496, %v2497
        %v2499 = vrot.slane %v2497, 4
        %v2500 = vrot.slane %v1725, 5
        %v2501 = vsel %vm976, %v2499, %v2500
        %v2502 = vunpack.c.l.b16 %v2393
        %v2503 = vunpack.c.l.b16 %v2396
        %v2504 = vunpack.c.l.b16 %v2400
        %v2505 = vunpack.c.l.b16 %v2403
        %v2506 = vunpack.c.l.b16 %v2407
        %v2507 = vunpack.c.l.b16 %v2410
        %v2508 = vunpack.c.l.b16 %v2414
        %v2509 = vunpack.c.l.b16 %v2417
        %v2510 = vunpack.c.l.b16 %v2421
        %v2511 = vunpack.c.l.b16 %v2424
        %v2512 = vunpack.c.l.b16 %v2428
        %v2513 = vunpack.c.l.b16 %v2431
        %v2514 = vunpack.c.l.b16 %v2435
        %v2515 = vunpack.c.l.b16 %v2438
        %v2516 = vunpack.c.l.b16 %v2442
        %v2517 = vunpack.c.l.b16 %v2445
        %v2518 = vunpack.c.l.b16 %v2449
        %v2519 = vunpack.c.l.b16 %v2452
        %v2520 = vunpack.c.l.b16 %v2456
        %v2521 = vunpack.c.l.b16 %v2459
        %v2522 = vunpack.c.l.b16 %v2463
        %v2523 = vunpack.c.l.b16 %v2466
        %v2524 = vunpack.c.l.b16 %v2470
        %v2525 = vunpack.c.l.b16 %v2473
        %v2526 = vunpack.c.l.b16 %v2477
        %v2527 = vunpack.c.l.b16 %v2480
        %v2528 = vunpack.c.l.b16 %v2484
        %v2529 = vunpack.c.l.b16 %v2487
        %v2530 = vunpack.c.l.b16 %v2491
        %v2531 = vunpack.c.l.b16 %v2494
        %v2532 = vunpack.c.l.b16 %v2498
        %v2533 = vunpack.c.l.b16 %v2501
        %v2534 = vpack.c.b16 %v2503, %v2502
        %v2535 = vpack.c.b16 %v2505, %v2504
        %v2536 = vpack.c.b16 %v2507, %v2506
        %v2537 = vpack.c.b16 %v2509, %v2508
        %v2538 = vpack.c.b16 %v2511, %v2510
        %v2539 = vpack.c.b16 %v2513, %v2512
        %v2540 = vpack.c.b16 %v2515, %v2514
        %v2541 = vpack.c.b16 %v2517, %v2516
        %v2542 = vpack.c.b16 %v2519, %v2518
        %v2543 = vpack.c.b16 %v2521, %v2520
        %v2544 = vpack.c.b16 %v2523, %v2522
        %v2545 = vpack.c.b16 %v2525, %v2524
        %v2546 = vpack.c.b16 %v2527, %v2526
        %v2547 = vpack.c.b16 %v2529, %v2528
        %v2548 = vpack.c.b16 %v2531, %v2530
        %v2549 = vpack.c.b16 %v2533, %v2532
        %2550 = vrot.lane.b32.xlu0 %v2534, 44
        %v2551 = vpop.permute.xlu0 %2550
        %2552 = vrot.lane.b32.xlu0 %v2535, 44
        %v2553 = vpop.permute.xlu0 %2552
        %2554 = vrot.lane.b32.xlu0 %v2536, 44
        %v2555 = vpop.permute.xlu0 %2554
        %2556 = vrot.lane.b32.xlu0 %v2537, 44
        %v2557 = vpop.permute.xlu0 %2556
        %2558 = vrot.lane.b32.xlu0 %v2538, 44
        %v2559 = vpop.permute.xlu0 %2558
        %2560 = vrot.lane.b32.xlu0 %v2539, 44
        %v2561 = vpop.permute.xlu0 %2560
        %2562 = vrot.lane.b32.xlu0 %v2540, 44
        %v2563 = vpop.permute.xlu0 %2562
        %2564 = vrot.lane.b32.xlu0 %v2541, 44
        %v2565 = vpop.permute.xlu0 %2564
        %2566 = vrot.lane.b32.xlu0 %v2542, 44
        %v2567 = vpop.permute.xlu0 %2566
        %2568 = vrot.lane.b32.xlu0 %v2543, 44
        %v2569 = vpop.permute.xlu0 %2568
        %2570 = vrot.lane.b32.xlu0 %v2544, 44
        %v2571 = vpop.permute.xlu0 %2570
        %2572 = vrot.lane.b32.xlu0 %v2545, 44
        %v2573 = vpop.permute.xlu0 %2572
        %2574 = vrot.lane.b32.xlu0 %v2546, 44
        %v2575 = vpop.permute.xlu0 %2574
        %2576 = vrot.lane.b32.xlu0 %v2547, 44
        %v2577 = vpop.permute.xlu0 %2576
        %2578 = vrot.lane.b32.xlu0 %v2548, 44
        %v2579 = vpop.permute.xlu0 %2578
        %2580 = vrot.lane.b32.xlu0 %v2549, 44
        %v2581 = vpop.permute.xlu0 %2580
        %vm2598 = vcmask 392544
        %2599 = vst.msk [vmem:[#allocation2] sm:$0xff] %vm2598, %v2551
        %2600 = vst.msk [vmem:[#allocation2 + $0x8] sm:$0xff] %vm2598, %v2553
        %2601 = vst.msk [vmem:[#allocation2 + $0x10] sm:$0xff] %vm2598, %v2555
        %2602 = vst.msk [vmem:[#allocation2 + $0x18] sm:$0xff] %vm2598, %v2557
        %2603 = vst.msk [vmem:[#allocation2 + $0x20] sm:$0xff] %vm2598, %v2559
        %2604 = vst.msk [vmem:[#allocation2 + $0x28] sm:$0xff] %vm2598, %v2561
        %2605 = vst.msk [vmem:[#allocation2 + $0x30] sm:$0xff] %vm2598, %v2563
        %2606 = vst.msk [vmem:[#allocation2 + $0x38] sm:$0xff] %vm2598, %v2565
        %2607 = vst.msk [vmem:[#allocation2 + $0x40] sm:$0xff] %vm2598, %v2567
        %2608 = vst.msk [vmem:[#allocation2 + $0x48] sm:$0xff] %vm2598, %v2569
        %2609 = vst.msk [vmem:[#allocation2 + $0x50] sm:$0xff] %vm2598, %v2571
        %2610 = vst.msk [vmem:[#allocation2 + $0x58] sm:$0xff] %vm2598, %v2573
        %2611 = vst.msk [vmem:[#allocation2 + $0x60] sm:$0xff] %vm2598, %v2575
        %2612 = vst.msk [vmem:[#allocation2 + $0x68] sm:$0xff] %vm2598, %v2577
        %2613 = vst.msk [vmem:[#allocation2 + $0x70] sm:$0xff] %vm2598, %v2579
        %2614 = vst.msk [vmem:[#allocation2 + $0x78] sm:$0xff] %vm2598, %v2581
        %v2617 = vunpack.c.l.b16 %v1726
        %v2618 = vunpack.c.l.b16 %v1727
        %v2619 = vpack.c.b16 %v2618, %v2617
        %2620 = vrot.lane.b32.xlu0 %v1797, 48
        %v2621 = vpop.permute.xlu0 %2620
        %2622 = vrot.lane.b32.xlu0 %v1798, 48
        %v2623 = vpop.permute.xlu0 %2622
        %2624 = vrot.lane.b32.xlu0 %v1799, 48
        %v2625 = vpop.permute.xlu0 %2624
        %2626 = vrot.lane.b32.xlu0 %v1800, 48
        %v2627 = vpop.permute.xlu0 %2626
        %2628 = vrot.lane.b32.xlu0 %v1801, 48
        %v2629 = vpop.permute.xlu0 %2628
        %2630 = vrot.lane.b32.xlu0 %v1802, 48
        %v2631 = vpop.permute.xlu0 %2630
        %2632 = vrot.lane.b32.xlu0 %v1803, 48
        %v2633 = vpop.permute.xlu0 %2632
        %2634 = vrot.lane.b32.xlu0 %v1804, 48
        %v2635 = vpop.permute.xlu0 %2634
        %2636 = vrot.lane.b32.xlu0 %v1805, 48
        %v2637 = vpop.permute.xlu0 %2636
        %2638 = vrot.lane.b32.xlu0 %v1806, 48
        %v2639 = vpop.permute.xlu0 %2638
        %2640 = vrot.lane.b32.xlu0 %v1807, 48
        %v2641 = vpop.permute.xlu0 %2640
        %2642 = vrot.lane.b32.xlu0 %v1808, 48
        %v2643 = vpop.permute.xlu0 %2642
        %2644 = vrot.lane.b32.xlu0 %v1809, 48
        %v2645 = vpop.permute.xlu0 %2644
        %2646 = vrot.lane.b32.xlu0 %v1810, 48
        %v2647 = vpop.permute.xlu0 %2646
        %2648 = vrot.lane.b32.xlu0 %v1811, 48
        %v2649 = vpop.permute.xlu0 %2648
        %2650 = vrot.lane.b32.xlu0 %v2619, 48
        %v2651 = vpop.permute.xlu0 %2650
        %vm2668 = vcmask 425344
        %2669 = vst.msk [vmem:[#allocation2] sm:$0xff] %vm2668, %v2621
        %2670 = vst.msk [vmem:[#allocation2 + $0x8] sm:$0xff] %vm2668, %v2623
        %2671 = vst.msk [vmem:[#allocation2 + $0x10] sm:$0xff] %vm2668, %v2625
        %2672 = vst.msk [vmem:[#allocation2 + $0x18] sm:$0xff] %vm2668, %v2627
        %2673 = vst.msk [vmem:[#allocation2 + $0x20] sm:$0xff] %vm2668, %v2629
        %2674 = vst.msk [vmem:[#allocation2 + $0x28] sm:$0xff] %vm2668, %v2631
        %2675 = vst.msk [vmem:[#allocation2 + $0x30] sm:$0xff] %vm2668, %v2633
        %2676 = vst.msk [vmem:[#allocation2 + $0x38] sm:$0xff] %vm2668, %v2635
        %2677 = vst.msk [vmem:[#allocation2 + $0x40] sm:$0xff] %vm2668, %v2637
        %2678 = vst.msk [vmem:[#allocation2 + $0x48] sm:$0xff] %vm2668, %v2639
        %2679 = vst.msk [vmem:[#allocation2 + $0x50] sm:$0xff] %vm2668, %v2641
        %2680 = vst.msk [vmem:[#allocation2 + $0x58] sm:$0xff] %vm2668, %v2643
        %2681 = vst.msk [vmem:[#allocation2 + $0x60] sm:$0xff] %vm2668, %v2645
        %2682 = vst.msk [vmem:[#allocation2 + $0x68] sm:$0xff] %vm2668, %v2647
        %2683 = vst.msk [vmem:[#allocation2 + $0x70] sm:$0xff] %vm2668, %v2649
        %2684 = vst.msk [vmem:[#allocation2 + $0x78] sm:$0xff] %vm2668, %v2651
        %v2686 = vshrl.u32 %v1726, 16
        %v2688 = vrot.slane %v2686, 4
        %v2689 = vshll.u32 %v1726, 16
        %v2691 = vrot.slane %v2689, 5
        %v2692 = vor.u32 %v2688, %v2691
        %v2693 = vrot.slane %v2692, 4
        %v2695 = vshll.u32 %v1727, 16
        %v2697 = vrot.slane %v2695, 5
        %v2698 = vsel %vm460, %v2693, %v2697
        %v2699 = vshrl.u32 %v1727, 16
        %v2701 = vrot.slane %v2699, 4
        %v2702 = vor.u32 %v2701, %v2697
        %v2703 = vrot.slane %v2702, 4
        %v2705 = vshll.u32 %v1728, 16
        %v2707 = vrot.slane %v2705, 5
        %v2708 = vsel %vm460, %v2703, %v2707
        %v2709 = vunpack.c.l.b16 %v2698
        %v2710 = vunpack.c.l.b16 %v2708
        %v2711 = vpack.c.b16 %v2710, %v2709
        %2712 = vrot.lane.b32.xlu0 %v2294, 52
        %v2713 = vpop.permute.xlu0 %2712
        %2714 = vrot.lane.b32.xlu0 %v2295, 52
        %v2715 = vpop.permute.xlu0 %2714
        %2716 = vrot.lane.b32.xlu0 %v2296, 52
        %v2717 = vpop.permute.xlu0 %2716
        %2718 = vrot.lane.b32.xlu0 %v2297, 52
        %v2719 = vpop.permute.xlu0 %2718
        %2720 = vrot.lane.b32.xlu0 %v2298, 52
        %v2721 = vpop.permute.xlu0 %2720
        %2722 = vrot.lane.b32.xlu0 %v2299, 52
        %v2723 = vpop.permute.xlu0 %2722
        %2724 = vrot.lane.b32.xlu0 %v2300, 52
        %v2725 = vpop.permute.xlu0 %2724
        %2726 = vrot.lane.b32.xlu0 %v2301, 52
        %v2727 = vpop.permute.xlu0 %2726
        %2728 = vrot.lane.b32.xlu0 %v2302, 52
        %v2729 = vpop.permute.xlu0 %2728
        %2730 = vrot.lane.b32.xlu0 %v2303, 52
        %v2731 = vpop.permute.xlu0 %2730
        %2732 = vrot.lane.b32.xlu0 %v2304, 52
        %v2733 = vpop.permute.xlu0 %2732
        %2734 = vrot.lane.b32.xlu0 %v2305, 52
        %v2735 = vpop.permute.xlu0 %2734
        %2736 = vrot.lane.b32.xlu0 %v2306, 52
        %v2737 = vpop.permute.xlu0 %2736
        %2738 = vrot.lane.b32.xlu0 %v2307, 52
        %v2739 = vpop.permute.xlu0 %2738
        %2740 = vrot.lane.b32.xlu0 %v2308, 52
        %v2741 = vpop.permute.xlu0 %2740
        %2742 = vrot.lane.b32.xlu0 %v2711, 52
        %v2743 = vpop.permute.xlu0 %2742
        %vm2760 = vcmask 458144
        %2761 = vst.msk [vmem:[#allocation2] sm:$0xff] %vm2760, %v2713
        %2762 = vst.msk [vmem:[#allocation2 + $0x8] sm:$0xff] %vm2760, %v2715
        %2763 = vst.msk [vmem:[#allocation2 + $0x10] sm:$0xff] %vm2760, %v2717
        %2764 = vst.msk [vmem:[#allocation2 + $0x18] sm:$0xff] %vm2760, %v2719
        %2765 = vst.msk [vmem:[#allocation2 + $0x20] sm:$0xff] %vm2760, %v2721
        %2766 = vst.msk [vmem:[#allocation2 + $0x28] sm:$0xff] %vm2760, %v2723
        %2767 = vst.msk [vmem:[#allocation2 + $0x30] sm:$0xff] %vm2760, %v2725
        %2768 = vst.msk [vmem:[#allocation2 + $0x38] sm:$0xff] %vm2760, %v2727
        %2769 = vst.msk [vmem:[#allocation2 + $0x40] sm:$0xff] %vm2760, %v2729
        %2770 = vst.msk [vmem:[#allocation2 + $0x48] sm:$0xff] %vm2760, %v2731
        %2771 = vst.msk [vmem:[#allocation2 + $0x50] sm:$0xff] %vm2760, %v2733
        %2772 = vst.msk [vmem:[#allocation2 + $0x58] sm:$0xff] %vm2760, %v2735
        %2773 = vst.msk [vmem:[#allocation2 + $0x60] sm:$0xff] %vm2760, %v2737
        %2774 = vst.msk [vmem:[#allocation2 + $0x68] sm:$0xff] %vm2760, %v2739
        %2775 = vst.msk [vmem:[#allocation2 + $0x70] sm:$0xff] %vm2760, %v2741
        %2776 = vst.msk [vmem:[#allocation2 + $0x78] sm:$0xff] %vm2760, %v2743
        %v2778 = vrot.slane %v1726, 5
        %v2779 = vrot.slane %v2778, 4
        %v2780 = vrot.slane %v1727, 5
        %v2781 = vsel %vm976, %v2779, %v2780
        %v2782 = vrot.slane %v2780, 4
        %v2783 = vrot.slane %v1728, 5
        %v2784 = vsel %vm976, %v2782, %v2783
        %v2785 = vunpack.c.l.b16 %v2781
        %v2786 = vunpack.c.l.b16 %v2784
        %v2787 = vpack.c.b16 %v2786, %v2785
        %2788 = vrot.lane.b32.xlu0 %v2535, 56
        %v2789 = vpop.permute.xlu0 %2788
        %2790 = vrot.lane.b32.xlu0 %v2536, 56
        %v2791 = vpop.permute.xlu0 %2790
        %2792 = vrot.lane.b32.xlu0 %v2537, 56
        %v2793 = vpop.permute.xlu0 %2792
        %2794 = vrot.lane.b32.xlu0 %v2538, 56
        %v2795 = vpop.permute.xlu0 %2794
        %2796 = vrot.lane.b32.xlu0 %v2539, 56
        %v2797 = vpop.permute.xlu0 %2796
        %2798 = vrot.lane.b32.xlu0 %v2540, 56
        %v2799 = vpop.permute.xlu0 %2798
        %2800 = vrot.lane.b32.xlu0 %v2541, 56
        %v2801 = vpop.permute.xlu0 %2800
        %2802 = vrot.lane.b32.xlu0 %v2542, 56
        %v2803 = vpop.permute.xlu0 %2802
        %2804 = vrot.lane.b32.xlu0 %v2543, 56
        %v2805 = vpop.permute.xlu0 %2804
        %2806 = vrot.lane.b32.xlu0 %v2544, 56
        %v2807 = vpop.permute.xlu0 %2806
        %2808 = vrot.lane.b32.xlu0 %v2545, 56
        %v2809 = vpop.permute.xlu0 %2808
        %2810 = vrot.lane.b32.xlu0 %v2546, 56
        %v2811 = vpop.permute.xlu0 %2810
        %2812 = vrot.lane.b32.xlu0 %v2547, 56
        %v2813 = vpop.permute.xlu0 %2812
        %2814 = vrot.lane.b32.xlu0 %v2548, 56
        %v2815 = vpop.permute.xlu0 %2814
        %2816 = vrot.lane.b32.xlu0 %v2549, 56
        %v2817 = vpop.permute.xlu0 %2816
        %2818 = vrot.lane.b32.xlu0 %v2787, 56
        %v2819 = vpop.permute.xlu0 %2818
        %vm2836 = vcmask 490944
        %2837 = vst.msk [vmem:[#allocation2] sm:$0xff] %vm2836, %v2789
        %2838 = vst.msk [vmem:[#allocation2 + $0x8] sm:$0xff] %vm2836, %v2791
        %2839 = vst.msk [vmem:[#allocation2 + $0x10] sm:$0xff] %vm2836, %v2793
        %2840 = vst.msk [vmem:[#allocation2 + $0x18] sm:$0xff] %vm2836, %v2795
        %2841 = vst.msk [vmem:[#allocation2 + $0x20] sm:$0xff] %vm2836, %v2797
        %2842 = vst.msk [vmem:[#allocation2 + $0x28] sm:$0xff] %vm2836, %v2799
        %2843 = vst.msk [vmem:[#allocation2 + $0x30] sm:$0xff] %vm2836, %v2801
        %2844 = vst.msk [vmem:[#allocation2 + $0x38] sm:$0xff] %vm2836, %v2803
        %2845 = vst.msk [vmem:[#allocation2 + $0x40] sm:$0xff] %vm2836, %v2805
        %2846 = vst.msk [vmem:[#allocation2 + $0x48] sm:$0xff] %vm2836, %v2807
        %2847 = vst.msk [vmem:[#allocation2 + $0x50] sm:$0xff] %vm2836, %v2809
        %2848 = vst.msk [vmem:[#allocation2 + $0x58] sm:$0xff] %vm2836, %v2811
        %2849 = vst.msk [vmem:[#allocation2 + $0x60] sm:$0xff] %vm2836, %v2813
        %2850 = vst.msk [vmem:[#allocation2 + $0x68] sm:$0xff] %vm2836, %v2815
        %2851 = vst.msk [vmem:[#allocation2 + $0x70] sm:$0xff] %vm2836, %v2817
        %2852 = vst.msk [vmem:[#allocation2 + $0x78] sm:$0xff] %vm2836, %v2819
        %v2855 = vunpack.c.l.b16 %v1729
        %v2856 = vunpack.c.l.b16 %v1730
        %v2857 = vpack.c.b16 %v2856, %v2855
        %2858 = vrot.lane.b32.xlu0 %v1798, 60
        %v2859 = vpop.permute.xlu0 %2858
        %2860 = vrot.lane.b32.xlu0 %v1799, 60
        %v2861 = vpop.permute.xlu0 %2860
        %2862 = vrot.lane.b32.xlu0 %v1800, 60
        %v2863 = vpop.permute.xlu0 %2862
        %2864 = vrot.lane.b32.xlu0 %v1801, 60
        %v2865 = vpop.permute.xlu0 %2864
        %2866 = vrot.lane.b32.xlu0 %v1802, 60
        %v2867 = vpop.permute.xlu0 %2866
        %2868 = vrot.lane.b32.xlu0 %v1803, 60
        %v2869 = vpop.permute.xlu0 %2868
        %2870 = vrot.lane.b32.xlu0 %v1804, 60
        %v2871 = vpop.permute.xlu0 %2870
        %2872 = vrot.lane.b32.xlu0 %v1805, 60
        %v2873 = vpop.permute.xlu0 %2872
        %2874 = vrot.lane.b32.xlu0 %v1806, 60
        %v2875 = vpop.permute.xlu0 %2874
        %2876 = vrot.lane.b32.xlu0 %v1807, 60
        %v2877 = vpop.permute.xlu0 %2876
        %2878 = vrot.lane.b32.xlu0 %v1808, 60
        %v2879 = vpop.permute.xlu0 %2878
        %2880 = vrot.lane.b32.xlu0 %v1809, 60
        %v2881 = vpop.permute.xlu0 %2880
        %2882 = vrot.lane.b32.xlu0 %v1810, 60
        %v2883 = vpop.permute.xlu0 %2882
        %2884 = vrot.lane.b32.xlu0 %v1811, 60
        %v2885 = vpop.permute.xlu0 %2884
        %2886 = vrot.lane.b32.xlu0 %v2619, 60
        %v2887 = vpop.permute.xlu0 %2886
        %2888 = vrot.lane.b32.xlu0 %v2857, 60
        %v2889 = vpop.permute.xlu0 %2888
        %vm2906 = vcmask 523744
        %2907 = vst.msk [vmem:[#allocation2] sm:$0xff] %vm2906, %v2859
        %2908 = vst.msk [vmem:[#allocation2 + $0x8] sm:$0xff] %vm2906, %v2861
        %2909 = vst.msk [vmem:[#allocation2 + $0x10] sm:$0xff] %vm2906, %v2863
        %2910 = vst.msk [vmem:[#allocation2 + $0x18] sm:$0xff] %vm2906, %v2865
        %2911 = vst.msk [vmem:[#allocation2 + $0x20] sm:$0xff] %vm2906, %v2867
        %2912 = vst.msk [vmem:[#allocation2 + $0x28] sm:$0xff] %vm2906, %v2869
        %2913 = vst.msk [vmem:[#allocation2 + $0x30] sm:$0xff] %vm2906, %v2871
        %2914 = vst.msk [vmem:[#allocation2 + $0x38] sm:$0xff] %vm2906, %v2873
        %2915 = vst.msk [vmem:[#allocation2 + $0x40] sm:$0xff] %vm2906, %v2875
        %2916 = vst.msk [vmem:[#allocation2 + $0x48] sm:$0xff] %vm2906, %v2877
        %2917 = vst.msk [vmem:[#allocation2 + $0x50] sm:$0xff] %vm2906, %v2879
        %2918 = vst.msk [vmem:[#allocation2 + $0x58] sm:$0xff] %vm2906, %v2881
        %2919 = vst.msk [vmem:[#allocation2 + $0x60] sm:$0xff] %vm2906, %v2883
        %2920 = vst.msk [vmem:[#allocation2 + $0x68] sm:$0xff] %vm2906, %v2885
        %2921 = vst.msk [vmem:[#allocation2 + $0x70] sm:$0xff] %vm2906, %v2887
        %2922 = vst.msk [vmem:[#allocation2 + $0x78] sm:$0xff] %vm2906, %v2889
        %v2924 = vshrl.u32 %v1729, 16
        %v2926 = vrot.slane %v2924, 4
        %v2927 = vshll.u32 %v1729, 16
        %v2929 = vrot.slane %v2927, 5
        %v2930 = vor.u32 %v2926, %v2929
        %v2931 = vrot.slane %v2930, 4
        %v2933 = vshll.u32 %v1730, 16
        %v2935 = vrot.slane %v2933, 5
        %v2936 = vsel %vm460, %v2931, %v2935
        %v2937 = vshrl.u32 %v1730, 16
        %v2939 = vrot.slane %v2937, 4
        %v2940 = vor.u32 %v2939, %v2935
        %v2941 = vrot.slane %v2940, 4
        %v2943 = vshll.u32 %v1731, 16
        %v2945 = vrot.slane %v2943, 5
        %v2946 = vsel %vm460, %v2941, %v2945
        %v2947 = vunpack.c.l.b16 %v2936
        %v2948 = vunpack.c.l.b16 %v2946
        %v2949 = vpack.c.b16 %v2948, %v2947
        %2950 = vrot.lane.b32.xlu0 %v2295, 64
        %v2951 = vpop.permute.xlu0 %2950
        %2952 = vrot.lane.b32.xlu0 %v2296, 64
        %v2953 = vpop.permute.xlu0 %2952
        %2954 = vrot.lane.b32.xlu0 %v2297, 64
        %v2955 = vpop.permute.xlu0 %2954
        %2956 = vrot.lane.b32.xlu0 %v2298, 64
        %v2957 = vpop.permute.xlu0 %2956
        %2958 = vrot.lane.b32.xlu0 %v2299, 64
        %v2959 = vpop.permute.xlu0 %2958
        %2960 = vrot.lane.b32.xlu0 %v2300, 64
        %v2961 = vpop.permute.xlu0 %2960
        %2962 = vrot.lane.b32.xlu0 %v2301, 64
        %v2963 = vpop.permute.xlu0 %2962
        %2964 = vrot.lane.b32.xlu0 %v2302, 64
        %v2965 = vpop.permute.xlu0 %2964
        %2966 = vrot.lane.b32.xlu0 %v2303, 64
        %v2967 = vpop.permute.xlu0 %2966
        %2968 = vrot.lane.b32.xlu0 %v2304, 64
        %v2969 = vpop.permute.xlu0 %2968
        %2970 = vrot.lane.b32.xlu0 %v2305, 64
        %v2971 = vpop.permute.xlu0 %2970
        %2972 = vrot.lane.b32.xlu0 %v2306, 64
        %v2973 = vpop.permute.xlu0 %2972
        %2974 = vrot.lane.b32.xlu0 %v2307, 64
        %v2975 = vpop.permute.xlu0 %2974
        %2976 = vrot.lane.b32.xlu0 %v2308, 64
        %v2977 = vpop.permute.xlu0 %2976
        %2978 = vrot.lane.b32.xlu0 %v2711, 64
        %v2979 = vpop.permute.xlu0 %2978
        %2980 = vrot.lane.b32.xlu0 %v2949, 64
        %v2981 = vpop.permute.xlu0 %2980
        %vm2998 = vcmask 556544
        %2999 = vst.msk [vmem:[#allocation2] sm:$0xff] %vm2998, %v2951
        %3000 = vst.msk [vmem:[#allocation2 + $0x8] sm:$0xff] %vm2998, %v2953
        %3001 = vst.msk [vmem:[#allocation2 + $0x10] sm:$0xff] %vm2998, %v2955
        %3002 = vst.msk [vmem:[#allocation2 + $0x18] sm:$0xff] %vm2998, %v2957
        %3003 = vst.msk [vmem:[#allocation2 + $0x20] sm:$0xff] %vm2998, %v2959
        %3004 = vst.msk [vmem:[#allocation2 + $0x28] sm:$0xff] %vm2998, %v2961
        %3005 = vst.msk [vmem:[#allocation2 + $0x30] sm:$0xff] %vm2998, %v2963
        %3006 = vst.msk [vmem:[#allocation2 + $0x38] sm:$0xff] %vm2998, %v2965
        %3007 = vst.msk [vmem:[#allocation2 + $0x40] sm:$0xff] %vm2998, %v2967
        %3008 = vst.msk [vmem:[#allocation2 + $0x48] sm:$0xff] %vm2998, %v2969
        %3009 = vst.msk [vmem:[#allocation2 + $0x50] sm:$0xff] %vm2998, %v2971
        %3010 = vst.msk [vmem:[#allocation2 + $0x58] sm:$0xff] %vm2998, %v2973
        %3011 = vst.msk [vmem:[#allocation2 + $0x60] sm:$0xff] %vm2998, %v2975
        %3012 = vst.msk [vmem:[#allocation2 + $0x68] sm:$0xff] %vm2998, %v2977
        %3013 = vst.msk [vmem:[#allocation2 + $0x70] sm:$0xff] %vm2998, %v2979
        %3014 = vst.msk [vmem:[#allocation2 + $0x78] sm:$0xff] %vm2998, %v2981
        %v3016 = vrot.slane %v1729, 5
        %v3017 = vrot.slane %v3016, 4
        %v3018 = vrot.slane %v1730, 5
        %v3019 = vsel %vm976, %v3017, %v3018
        %v3020 = vrot.slane %v3018, 4
        %v3021 = vrot.slane %v1731, 5
        %v3022 = vsel %vm976, %v3020, %v3021
        %v3023 = vunpack.c.l.b16 %v3019
        %v3024 = vunpack.c.l.b16 %v3022
        %v3025 = vpack.c.b16 %v3024, %v3023
        %3026 = vrot.lane.b32.xlu0 %v2536, 68
        %v3027 = vpop.permute.xlu0 %3026
        %3028 = vrot.lane.b32.xlu0 %v2537, 68
        %v3029 = vpop.permute.xlu0 %3028
        %3030 = vrot.lane.b32.xlu0 %v2538, 68
        %v3031 = vpop.permute.xlu0 %3030
        %3032 = vrot.lane.b32.xlu0 %v2539, 68
        %v3033 = vpop.permute.xlu0 %3032
        %3034 = vrot.lane.b32.xlu0 %v2540, 68
        %v3035 = vpop.permute.xlu0 %3034
        %3036 = vrot.lane.b32.xlu0 %v2541, 68
        %v3037 = vpop.permute.xlu0 %3036
        %3038 = vrot.lane.b32.xlu0 %v2542, 68
        %v3039 = vpop.permute.xlu0 %3038
        %3040 = vrot.lane.b32.xlu0 %v2543, 68
        %v3041 = vpop.permute.xlu0 %3040
        %3042 = vrot.lane.b32.xlu0 %v2544, 68
        %v3043 = vpop.permute.xlu0 %3042
        %3044 = vrot.lane.b32.xlu0 %v2545, 68
        %v3045 = vpop.permute.xlu0 %3044
        %3046 = vrot.lane.b32.xlu0 %v2546, 68
        %v3047 = vpop.permute.xlu0 %3046
        %3048 = vrot.lane.b32.xlu0 %v2547, 68
        %v3049 = vpop.permute.xlu0 %3048
        %3050 = vrot.lane.b32.xlu0 %v2548, 68
        %v3051 = vpop.permute.xlu0 %3050
        %3052 = vrot.lane.b32.xlu0 %v2549, 68
        %v3053 = vpop.permute.xlu0 %3052
        %3054 = vrot.lane.b32.xlu0 %v2787, 68
        %v3055 = vpop.permute.xlu0 %3054
        %3056 = vrot.lane.b32.xlu0 %v3025, 68
        %v3057 = vpop.permute.xlu0 %3056
        %vm3074 = vcmask 589344
        %3075 = vst.msk [vmem:[#allocation2] sm:$0xff] %vm3074, %v3027
        %3076 = vst.msk [vmem:[#allocation2 + $0x8] sm:$0xff] %vm3074, %v3029
        %3077 = vst.msk [vmem:[#allocation2 + $0x10] sm:$0xff] %vm3074, %v3031
        %3078 = vst.msk [vmem:[#allocation2 + $0x18] sm:$0xff] %vm3074, %v3033
        %3079 = vst.msk [vmem:[#allocation2 + $0x20] sm:$0xff] %vm3074, %v3035
        %3080 = vst.msk [vmem:[#allocation2 + $0x28] sm:$0xff] %vm3074, %v3037
        %3081 = vst.msk [vmem:[#allocation2 + $0x30] sm:$0xff] %vm3074, %v3039
        %3082 = vst.msk [vmem:[#allocation2 + $0x38] sm:$0xff] %vm3074, %v3041
        %3083 = vst.msk [vmem:[#allocation2 + $0x40] sm:$0xff] %vm3074, %v3043
        %3084 = vst.msk [vmem:[#allocation2 + $0x48] sm:$0xff] %vm3074, %v3045
        %3085 = vst.msk [vmem:[#allocation2 + $0x50] sm:$0xff] %vm3074, %v3047
        %3086 = vst.msk [vmem:[#allocation2 + $0x58] sm:$0xff] %vm3074, %v3049
        %3087 = vst.msk [vmem:[#allocation2 + $0x60] sm:$0xff] %vm3074, %v3051
        %3088 = vst.msk [vmem:[#allocation2 + $0x68] sm:$0xff] %vm3074, %v3053
        %3089 = vst.msk [vmem:[#allocation2 + $0x70] sm:$0xff] %vm3074, %v3055
        %3090 = vst.msk [vmem:[#allocation2 + $0x78] sm:$0xff] %vm3074, %v3057
        %v3091 = vld [vmem:[#allocation2] sm:$0xff]
        %v3092 = vld [vmem:[#allocation2 + $0x8] sm:$0xff]
        %v3093 = vld [vmem:[#allocation2 + $0x10] sm:$0xff]
        %v3094 = vld [vmem:[#allocation2 + $0x18] sm:$0xff]
        %v3095 = vld [vmem:[#allocation2 + $0x20] sm:$0xff]
        %v3096 = vld [vmem:[#allocation2 + $0x28] sm:$0xff]
        %v3097 = vld [vmem:[#allocation2 + $0x30] sm:$0xff]
        %v3098 = vld [vmem:[#allocation2 + $0x38] sm:$0xff]
        %v3099 = vld [vmem:[#allocation2 + $0x40] sm:$0xff]
        %v3100 = vld [vmem:[#allocation2 + $0x48] sm:$0xff]
        %v3101 = vld [vmem:[#allocation2 + $0x50] sm:$0xff]
        %v3102 = vld [vmem:[#allocation2 + $0x58] sm:$0xff]
        %v3103 = vld [vmem:[#allocation2 + $0x60] sm:$0xff]
        %v3104 = vld [vmem:[#allocation2 + $0x68] sm:$0xff]
        %v3105 = vld [vmem:[#allocation2 + $0x70] sm:$0xff]
        %v3106 = vld [vmem:[#allocation2 + $0x78] sm:$0xff]
        %v3107 = vld [vmem:[%s2] sm:$0xf]
        %v3108 = vld [vmem:[%s2 + $0x4] sm:$0xf]
        %v3109 = vld [vmem:[%s2 + $0x8] sm:$0xf]
        %v3110 = vld [vmem:[%s2 + $0xc] sm:$0xf]
        %v3111 = vld [vmem:[%s2 + $0x10] sm:$0xf]
        %v3112 = vld [vmem:[%s2 + $0x14] sm:$0xf]
        %v3113 = vld [vmem:[%s2 + $0x18] sm:$0xf]
        %v3114 = vld [vmem:[%s2 + $0x1c] sm:$0xf]
        %v3115 = vld [vmem:[%s2 + $0x20] sm:$0xf]
        %v3125 = vunpack.c.l.b16 %v3107
        %v3126 = vunpack.c.l.b16 %v3108
        %v3127 = vunpack.c.l.b16 %v3109
        %v3128 = vunpack.c.l.b16 %v3110
        %v3129 = vunpack.c.l.b16 %v3111
        %v3130 = vunpack.c.l.b16 %v3112
        %v3131 = vunpack.c.l.b16 %v3113
        %v3132 = vunpack.c.l.b16 %v3114
        %v3133 = vunpack.c.l.b16 %v3115
        %v3134 = vpack.c.b16 %v3126, %v3125
        %v3135 = vpack.c.b16 %v3128, %v3127
        %v3136 = vpack.c.b16 %v3130, %v3129
        %v3137 = vpack.c.b16 %v3132, %v3131
        %v3138 = vpack.c.b16 %v3133, %v3133
        %vm3143 = vcmask 588800
        %v3145 = vsel %vm3143, %v3091, 0
        %v3148 = vsel %vm3143, %v3092, 0
        %v3151 = vsel %vm3143, %v3093, 0
        %v3154 = vsel %vm3143, %v3094, 0
        %v3157 = vsel %vm3143, %v3095, 0
        %v3160 = vsel %vm3143, %v3096, 0
        %v3163 = vsel %vm3143, %v3097, 0
        %v3166 = vsel %vm3143, %v3098, 0
        %v3169 = vsel %vm3143, %v3099, 0
        %v3172 = vsel %vm3143, %v3100, 0
        %v3175 = vsel %vm3143, %v3101, 0
        %v3178 = vsel %vm3143, %v3102, 0
        %v3181 = vsel %vm3143, %v3103, 0
        %v3184 = vsel %vm3143, %v3104, 0
        %v3187 = vsel %vm3143, %v3105, 0
        %v3190 = vsel %vm3143, %v3106, 0
        %vm3192 = vcmask 1043456
        %v3194 = vsel %vm3192, %v3138, 0
        %3196 = vmatprep.subr.bf16.mxu0 0
        %3197 = vmatpush1.bf16.msra.mxu0 %v3134
        %3198 = vmatprep.subr.bf16.mxu0 0
        %3199 = vmatpush1.bf16.msra.mxu0 %v3135
        %3200 = vmatprep.subr.bf16.mxu0 0
        %3201 = vmatpush1.bf16.msra.mxu0 %v3136
        %3202 = vmatprep.subr.bf16.mxu0 0
        %3203 = vmatpush1.bf16.msra.mxu0 %v3137
        %3204 = vmatprep.subr.bf16.mxu0 0
        %3205 = vmatpush1.bf16.msra.mxu0 %v3194
        %3206 = vmatprep.subr.bf16.mxu0 0
        %3207 = vmatpush1.bf16.msra.mxu0 0
        %3208 = vmatprep.subr.bf16.mxu0 0
        %3209 = vmatpush1.bf16.msra.mxu0 0
        %3210 = vmatprep.subr.bf16.mxu0 0
        %3211 = vmatpush1.bf16.msra.mxu0 0
        %3212 = vmatprep.subr.bf16.mxu0 0
        %3213 = vmatpush1.bf16.msra.mxu0 0
        %3214 = vmatprep.subr.bf16.mxu0 0
        %3215 = vmatpush1.bf16.msra.mxu0 0
        %3216 = vmatprep.subr.bf16.mxu0 0
        %3217 = vmatpush1.bf16.msra.mxu0 0
        %3218 = vmatprep.subr.bf16.mxu0 0
        %3219 = vmatpush1.bf16.msra.mxu0 0
        %3220 = vmatprep.subr.bf16.mxu0 0
        %3221 = vmatpush1.bf16.msra.mxu0 0
        %3222 = vmatprep.subr.bf16.mxu0 0
        %3223 = vmatpush1.bf16.msra.mxu0 0
        %3224 = vmatprep.subr.bf16.mxu0 0
        %3225 = vmatpush1.bf16.msra.mxu0 0
        %3226 = vmatprep.subr.bf16.mxu0 0
        %3227 = vmatpush1.bf16.msra.mxu0 0
        %3228 = vmatprep.mubr.bf16.mxu0 0
        %3229 = vmatmul.mubr.bf16.gmra.mrb[0].mxu0 %v3145
        %v3230 = vpop.f32.mrb[0].mxu0
        %v3231 = vadd.f32 0.0, %v3230
        %v3232 = vpop.f32.mrb[0].mxu0
        %v3233 = vpop.f32.mrb[0].mxu0
        %v3234 = vadd.f32 0.0, %v3233
        %v3235 = vpop.f32.mrb[0].mxu0
        %3236 = vmatprep.mubr.bf16.mxu0 0
        %3237 = vmatmul.mubr.bf16.gmra.mrb[0].mxu0 %v3148
        %v3238 = vpop.f32.mrb[0].mxu0
        %v3239 = vadd.f32 0.0, %v3238
        %v3240 = vpop.f32.mrb[0].mxu0
        %v3241 = vpop.f32.mrb[0].mxu0
        %v3242 = vadd.f32 0.0, %v3241
        %v3243 = vpop.f32.mrb[0].mxu0
        %3244 = vmatprep.mubr.bf16.mxu0 0
        %3245 = vmatmul.mubr.bf16.gmra.mrb[0].mxu0 %v3151
        %v3246 = vpop.f32.mrb[0].mxu0
        %v3247 = vadd.f32 0.0, %v3246
        %v3248 = vpop.f32.mrb[0].mxu0
        %v3249 = vpop.f32.mrb[0].mxu0
        %v3250 = vadd.f32 0.0, %v3249
        %v3251 = vpop.f32.mrb[0].mxu0
        %3252 = vmatprep.mubr.bf16.mxu0 0
        %3253 = vmatmul.mubr.bf16.gmra.mrb[0].mxu0 %v3154
        %v3254 = vpop.f32.mrb[0].mxu0
        %v3255 = vadd.f32 0.0, %v3254
        %v3256 = vpop.f32.mrb[0].mxu0
        %v3257 = vpop.f32.mrb[0].mxu0
        %v3258 = vadd.f32 0.0, %v3257
        %v3259 = vpop.f32.mrb[0].mxu0
        %3260 = vmatprep.mubr.bf16.mxu0 0
        %3261 = vmatmul.mubr.bf16.gmra.mrb[0].mxu0 %v3157
        %v3262 = vpop.f32.mrb[0].mxu0
        %v3263 = vadd.f32 0.0, %v3262
        %v3264 = vpop.f32.mrb[0].mxu0
        %v3265 = vpop.f32.mrb[0].mxu0
        %v3266 = vadd.f32 0.0, %v3265
        %v3267 = vpop.f32.mrb[0].mxu0
        %3268 = vmatprep.mubr.bf16.mxu0 0
        %3269 = vmatmul.mubr.bf16.gmra.mrb[0].mxu0 %v3160
        %v3270 = vpop.f32.mrb[0].mxu0
        %v3271 = vadd.f32 0.0, %v3270
        %v3272 = vpop.f32.mrb[0].mxu0
        %v3273 = vpop.f32.mrb[0].mxu0
        %v3274 = vadd.f32 0.0, %v3273
        %v3275 = vpop.f32.mrb[0].mxu0
        %3276 = vmatprep.mubr.bf16.mxu0 0
        %3277 = vmatmul.mubr.bf16.gmra.mrb[0].mxu0 %v3163
        %v3278 = vpop.f32.mrb[0].mxu0
        %v3279 = vadd.f32 0.0, %v3278
        %v3280 = vpop.f32.mrb[0].mxu0
        %v3281 = vpop.f32.mrb[0].mxu0
        %v3282 = vadd.f32 0.0, %v3281
        %v3283 = vpop.f32.mrb[0].mxu0
        %3284 = vmatprep.mubr.bf16.mxu0 0
        %3285 = vmatmul.mubr.bf16.gmra.mrb[0].mxu0 %v3166
        %v3286 = vpop.f32.mrb[0].mxu0
        %v3287 = vadd.f32 0.0, %v3286
        %v3288 = vpop.f32.mrb[0].mxu0
        %v3289 = vpop.f32.mrb[0].mxu0
        %v3290 = vadd.f32 0.0, %v3289
        %v3291 = vpop.f32.mrb[0].mxu0
        %3292 = vmatprep.mubr.bf16.mxu0 0
        %3293 = vmatmul.mubr.bf16.gmra.mrb[0].mxu0 %v3169
        %v3294 = vpop.f32.mrb[0].mxu0
        %v3295 = vadd.f32 0.0, %v3294
        %v3296 = vpop.f32.mrb[0].mxu0
        %v3297 = vpop.f32.mrb[0].mxu0
        %v3298 = vadd.f32 0.0, %v3297
        %v3299 = vpop.f32.mrb[0].mxu0
        %3300 = vmatprep.mubr.bf16.mxu0 0
        %3301 = vmatmul.mubr.bf16.gmra.mrb[0].mxu0 %v3172
        %v3302 = vpop.f32.mrb[0].mxu0
        %v3303 = vadd.f32 0.0, %v3302
        %v3304 = vpop.f32.mrb[0].mxu0
        %v3305 = vpop.f32.mrb[0].mxu0
        %v3306 = vadd.f32 0.0, %v3305
        %v3307 = vpop.f32.mrb[0].mxu0
        %3308 = vmatprep.mubr.bf16.mxu0 0
        %3309 = vmatmul.mubr.bf16.gmra.mrb[0].mxu0 %v3175
        %v3310 = vpop.f32.mrb[0].mxu0
        %v3311 = vadd.f32 0.0, %v3310
        %v3312 = vpop.f32.mrb[0].mxu0
        %v3313 = vpop.f32.mrb[0].mxu0
        %v3314 = vadd.f32 0.0, %v3313
        %v3315 = vpop.f32.mrb[0].mxu0
        %3316 = vmatprep.mubr.bf16.mxu0 0
        %3317 = vmatmul.mubr.bf16.gmra.mrb[0].mxu0 %v3178
        %v3318 = vpop.f32.mrb[0].mxu0
        %v3319 = vadd.f32 0.0, %v3318
        %v3320 = vpop.f32.mrb[0].mxu0
        %v3321 = vpop.f32.mrb[0].mxu0
        %v3322 = vadd.f32 0.0, %v3321
        %v3323 = vpop.f32.mrb[0].mxu0
        %3324 = vmatprep.mubr.bf16.mxu0 0
        %3325 = vmatmul.mubr.bf16.gmra.mrb[0].mxu0 %v3181
        %v3326 = vpop.f32.mrb[0].mxu0
        %v3327 = vadd.f32 0.0, %v3326
        %v3328 = vpop.f32.mrb[0].mxu0
        %v3329 = vpop.f32.mrb[0].mxu0
        %v3330 = vadd.f32 0.0, %v3329
        %v3331 = vpop.f32.mrb[0].mxu0
        %3332 = vmatprep.mubr.bf16.mxu0 0
        %3333 = vmatmul.mubr.bf16.gmra.mrb[0].mxu0 %v3184
        %v3334 = vpop.f32.mrb[0].mxu0
        %v3335 = vadd.f32 0.0, %v3334
        %v3336 = vpop.f32.mrb[0].mxu0
        %v3337 = vpop.f32.mrb[0].mxu0
        %v3338 = vadd.f32 0.0, %v3337
        %v3339 = vpop.f32.mrb[0].mxu0
        %3340 = vmatprep.mubr.bf16.mxu0 0
        %3341 = vmatmul.mubr.bf16.gmra.mrb[0].mxu0 %v3187
        %v3342 = vpop.f32.mrb[0].mxu0
        %v3343 = vadd.f32 0.0, %v3342
        %v3344 = vpop.f32.mrb[0].mxu0
        %v3345 = vpop.f32.mrb[0].mxu0
        %v3346 = vadd.f32 0.0, %v3345
        %v3347 = vpop.f32.mrb[0].mxu0
        %3348 = vmatprep.mubr.bf16.mxu0 0
        %3349 = vmatmul.mubr.bf16.gmra.mrb[0].mxu0 %v3190
        %v3350 = vpop.f32.mrb[0].mxu0
        %v3351 = vadd.f32 0.0, %v3350
        %v3352 = vpop.f32.mrb[0].mxu0
        %v3353 = vpop.f32.mrb[0].mxu0
        %v3354 = vadd.f32 0.0, %v3353
        %v3355 = vpop.f32.mrb[0].mxu0
        %3356 = vdwg.mxu0
        %3357 = vst [vmem:[%s260] sm:$0xff] %v3231
        %3358 = vst [vmem:[%s260 + $0x8] sm:$0xff] %v3234
        %3359 = vst [vmem:[%s260 + $0x10] sm:$0xff] %v3239
        %3360 = vst [vmem:[%s260 + $0x18] sm:$0xff] %v3242
        %3361 = vst [vmem:[%s260 + $0x20] sm:$0xff] %v3247
        %3362 = vst [vmem:[%s260 + $0x28] sm:$0xff] %v3250
        %3363 = vst [vmem:[%s260 + $0x30] sm:$0xff] %v3255
        %3364 = vst [vmem:[%s260 + $0x38] sm:$0xff] %v3258
        %3365 = vst [vmem:[%s260 + $0x40] sm:$0xff] %v3263
        %3366 = vst [vmem:[%s260 + $0x48] sm:$0xff] %v3266
        %3367 = vst [vmem:[%s260 + $0x50] sm:$0xff] %v3271
        %3368 = vst [vmem:[%s260 + $0x58] sm:$0xff] %v3274
        %3369 = vst [vmem:[%s260 + $0x60] sm:$0xff] %v3279
        %3370 = vst [vmem:[%s260 + $0x68] sm:$0xff] %v3282
        %3371 = vst [vmem:[%s260 + $0x70] sm:$0xff] %v3287
        %3372 = vst [vmem:[%s260 + $0x78] sm:$0xff] %v3290
        %3373 = vst [vmem:[%s260 + $0x80] sm:$0xff] %v3295
        %3374 = vst [vmem:[%s260 + $0x88] sm:$0xff] %v3298
        %3375 = vst [vmem:[%s260 + $0x90] sm:$0xff] %v3303
        %3376 = vst [vmem:[%s260 + $0x98] sm:$0xff] %v3306
        %3377 = vst [vmem:[%s260 + $0xa0] sm:$0xff] %v3311
        %3378 = vst [vmem:[%s260 + $0xa8] sm:$0xff] %v3314
        %3379 = vst [vmem:[%s260 + $0xb0] sm:$0xff] %v3319
        %3380 = vst [vmem:[%s260 + $0xb8] sm:$0xff] %v3322
        %3381 = vst [vmem:[%s260 + $0xc0] sm:$0xff] %v3327
        %3382 = vst [vmem:[%s260 + $0xc8] sm:$0xff] %v3330
        %3383 = vst [vmem:[%s260 + $0xd0] sm:$0xff] %v3335
        %3384 = vst [vmem:[%s260 + $0xd8] sm:$0xff] %v3338
        %3385 = vst [vmem:[%s260 + $0xe0] sm:$0xff] %v3343
        %3386 = vst [vmem:[%s260 + $0xe8] sm:$0xff] %v3346
        %3387 = vst [vmem:[%s260 + $0xf0] sm:$0xff] %v3351
        %3388 = vst [vmem:[%s260 + $0xf8] sm:$0xff] %v3354
        %p3389 = scmp.eq.s32.totalorder %s28, 0
        // Predicated region
        $region33: #{tpu_custom_call.1} parent=31 // pred_check
          %p3390 = pneg %p3389
        $region34: #{tpu_custom_call.1} parent=31 // pred_check_branch
          %3392 = sbr.rel (%p3390) target = $region36
        $region35: #{tpu_custom_call.1} parent=31 // pred_region
          %3393 = vst [vmem:[%s267] sm:$0xff] 0.0
          %3394 = vst [vmem:[%s274] sm:$0xff] 0.0
        $region36: #{tpu_custom_call.1} parent=31 // pred_fallthru
          _
        %v3395 = vld [vmem:[%s267] sm:$0xff]
        %v3396 = vadd.f32 %v3231, %v3234
        %v3397 = vadd.f32 %v3396, %v3239
        %v3398 = vadd.f32 %v3397, %v3242
        %v3399 = vadd.f32 %v3398, %v3247
        %v3400 = vadd.f32 %v3399, %v3250
        %v3401 = vadd.f32 %v3400, %v3255
        %v3402 = vadd.f32 %v3401, %v3258
        %v3403 = vadd.f32 %v3402, %v3263
        %v3404 = vadd.f32 %v3403, %v3266
        %v3405 = vadd.f32 %v3404, %v3271
        %v3406 = vadd.f32 %v3405, %v3274
        %v3407 = vadd.f32 %v3406, %v3279
        %v3408 = vadd.f32 %v3407, %v3282
        %v3409 = vadd.f32 %v3408, %v3287
        %v3410 = vadd.f32 %v3409, %v3290
        %v3411 = vadd.f32 %v3410, %v3295
        %v3412 = vadd.f32 %v3411, %v3298
        %v3413 = vadd.f32 %v3412, %v3303
        %v3414 = vadd.f32 %v3413, %v3306
        %v3415 = vadd.f32 %v3414, %v3311
        %v3416 = vadd.f32 %v3415, %v3314
        %v3417 = vadd.f32 %v3416, %v3319
        %v3418 = vadd.f32 %v3417, %v3322
        %v3419 = vadd.f32 %v3418, %v3327
        %v3420 = vadd.f32 %v3419, %v3330
        %v3421 = vadd.f32 %v3420, %v3335
        %v3422 = vadd.f32 %v3421, %v3338
        %v3423 = vadd.f32 %v3422, %v3343
        %v3424 = vadd.f32 %v3423, %v3346
        %v3425 = vadd.f32 %v3424, %v3351
        %v3426 = vadd.f32 %v3425, %v3354
        %v3427 = vrot.slane %v3426, 4
        %v3428 = vadd.f32 %v3426, %v3427
        %v3429 = vrot.slane %v3428, 2
        %v3430 = vadd.f32 %v3428, %v3429
        %v3431 = vrot.slane %v3430, 1
        %v3432 = vadd.f32 %v3430, %v3431
        %v3433 = vadd.f32 %v3395, %v3432
        %3434 = vst [vmem:[%s267] sm:$0xff] %v3433
        %v3435 = vld [vmem:[%s274] sm:$0xff]
        %v3436 = vmul.f32 %v3231, %v3231
        %v3437 = vmul.f32 %v3234, %v3234
        %v3438 = vmul.f32 %v3239, %v3239
        %v3439 = vmul.f32 %v3242, %v3242
        %v3440 = vmul.f32 %v3247, %v3247
        %v3441 = vmul.f32 %v3250, %v3250
        %v3442 = vmul.f32 %v3255, %v3255
        %v3443 = vmul.f32 %v3258, %v3258
        %v3444 = vmul.f32 %v3263, %v3263
        %v3445 = vmul.f32 %v3266, %v3266
        %v3446 = vmul.f32 %v3271, %v3271
        %v3447 = vmul.f32 %v3274, %v3274
        %v3448 = vmul.f32 %v3279, %v3279
        %v3449 = vmul.f32 %v3282, %v3282
        %v3450 = vmul.f32 %v3287, %v3287
        %v3451 = vmul.f32 %v3290, %v3290
        %v3452 = vmul.f32 %v3295, %v3295
        %v3453 = vmul.f32 %v3298, %v3298
        %v3454 = vmul.f32 %v3303, %v3303
        %v3455 = vmul.f32 %v3306, %v3306
        %v3456 = vmul.f32 %v3311, %v3311
        %v3457 = vmul.f32 %v3314, %v3314
        %v3458 = vmul.f32 %v3319, %v3319
        %v3459 = vmul.f32 %v3322, %v3322
        %v3460 = vmul.f32 %v3327, %v3327
        %v3461 = vmul.f32 %v3330, %v3330
        %v3462 = vmul.f32 %v3335, %v3335
        %v3463 = vmul.f32 %v3338, %v3338
        %v3464 = vmul.f32 %v3343, %v3343
        %v3465 = vmul.f32 %v3346, %v3346
        %v3466 = vmul.f32 %v3351, %v3351
        %v3467 = vmul.f32 %v3354, %v3354
        %v3468 = vadd.f32 %v3436, %v3437
        %v3469 = vadd.f32 %v3468, %v3438
        %v3470 = vadd.f32 %v3469, %v3439
        %v3471 = vadd.f32 %v3470, %v3440
        %v3472 = vadd.f32 %v3471, %v3441
        %v3473 = vadd.f32 %v3472, %v3442
        %v3474 = vadd.f32 %v3473, %v3443
        %v3475 = vadd.f32 %v3474, %v3444
        %v3476 = vadd.f32 %v3475, %v3445
        %v3477 = vadd.f32 %v3476, %v3446
        %v3478 = vadd.f32 %v3477, %v3447
        %v3479 = vadd.f32 %v3478, %v3448
        %v3480 = vadd.f32 %v3479, %v3449
        %v3481 = vadd.f32 %v3480, %v3450
        %v3482 = vadd.f32 %v3481, %v3451
        %v3483 = vadd.f32 %v3482, %v3452
        %v3484 = vadd.f32 %v3483, %v3453
        %v3485 = vadd.f32 %v3484, %v3454
        %v3486 = vadd.f32 %v3485, %v3455
        %v3487 = vadd.f32 %v3486, %v3456
        %v3488 = vadd.f32 %v3487, %v3457
        %v3489 = vadd.f32 %v3488, %v3458
        %v3490 = vadd.f32 %v3489, %v3459
        %v3491 = vadd.f32 %v3490, %v3460
        %v3492 = vadd.f32 %v3491, %v3461
        %v3493 = vadd.f32 %v3492, %v3462
        %v3494 = vadd.f32 %v3493, %v3463
        %v3495 = vadd.f32 %v3494, %v3464
        %v3496 = vadd.f32 %v3495, %v3465
        %v3497 = vadd.f32 %v3496, %v3466
        %v3498 = vadd.f32 %v3497, %v3467
        %v3499 = vrot.slane %v3498, 4
        %v3500 = vadd.f32 %v3498, %v3499
        %v3501 = vrot.slane %v3500, 2
        %v3502 = vadd.f32 %v3500, %v3501
        %v3503 = vrot.slane %v3502, 1
        %v3504 = vadd.f32 %v3502, %v3503
        %v3505 = vadd.f32 %v3435, %v3504
        %3506 = vst [vmem:[%s274] sm:$0xff] %v3505
        %s3507 = sand.u32 %s122, 1
        %s3508 = scalar_lea.sflag [#allocation4], %s3507
        %s3509 = sand.u32 %s122, 1
        %s3510 = smul.addr %s3509, 256
        %s3511 = scalar_lea.vmem [#allocation3], %s3510
        %s3512 = sand.u32 %s23, 1
        %s3513 = scalar_lea.sflag [#allocation6], %s3512
        %s3514 = sand.u32 %s148, 1
        %s3515 = smul.addr %s3514, 8
        %s3516 = scalar_lea.vmem [#allocation5], %s3515
        %s3517 = sand.u32 %s23, 1
        %s3518 = scalar_lea.sflag [#allocation6], %s3517
        %s3519 = sand.u32 %s174, 1
        %s3520 = smul.addr %s3519, 8
        %s3521 = scalar_lea.vmem [#allocation7], %s3520
        // Predicated region
        $region37: #{tpu_custom_call.1} parent=31 // pred_check
          %p3522 = pneg %p132
        $region38: #{tpu_custom_call.1} parent=31 // pred_check_branch
          %3524 = sbr.rel (%p3522) target = $region40
        $region39: #{tpu_custom_call.1} parent=31 // pred_region
          %s3525 = sadd.s32 %s27, %s28
          %s3527 = ssub.s32 4096, 4096
          %3528 = vsyncadd %s3508, %s3527
          %s3529 = smul.addr %s3525, 32
          %s3530 = smul.addr %s3529, 128
          %s3531 = scalar_lea.hbm %s3, %s3530
          %s3532 = sshll.u32 %s3511, 4
          %s3533 = int_to_ptr.vmem [resolvable:$true] %s3532
          %3538 = dma.vmem_to_hbm [thread:$0]  %s3533, 4096, %s3531, %s3508, 128, 128, 8
        $region40: #{tpu_custom_call.1} parent=31 // pred_fallthru
          _
        // Predicated region
        $region41: #{tpu_custom_call.1} parent=31 // pred_check
          %p3539 = pneg %p158
        $region42: #{tpu_custom_call.1} parent=31 // pred_check_branch
          %3541 = sbr.rel (%p3539) target = $region44
        $region43: #{tpu_custom_call.1} parent=31 // pred_region
          %s3543 = ssub.s32 128, 128
          %3544 = vsyncadd %s3513, %s3543
          %s3545 = smul.addr %s27, 128
          %s3546 = scalar_lea.hbm %s4, %s3545
          %s3548 = sshll.u32 %s3516, 4
          %s3549 = int_to_ptr.vmem [resolvable:$true] %s3548
          %3551 = dma.vmem_to_hbm [thread:$0]  %s3549, 128, %s3546, %s3513
        $region44: #{tpu_custom_call.1} parent=31 // pred_fallthru
          _
        // Predicated region
        $region45: #{tpu_custom_call.1} parent=31 // pred_check
          %p3552 = pneg %p184
        $region46: #{tpu_custom_call.1} parent=31 // pred_check_branch
          %3554 = sbr.rel (%p3552) target = $region48
        $region47: #{tpu_custom_call.1} parent=31 // pred_region
          %s3556 = ssub.s32 128, 128
          %3557 = vsyncadd %s3518, %s3556
          %s3558 = smul.addr %s27, 128
          %s3559 = scalar_lea.hbm %s5, %s3558
          %s3561 = sshll.u32 %s3521, 4
          %s3562 = int_to_ptr.vmem [resolvable:$true] %s3561
          %3564 = dma.vmem_to_hbm [thread:$0]  %s3562, 128, %s3559, %s3518
        $region48: #{tpu_custom_call.1} parent=31 // pred_fallthru
          _
      $region32: #{tpu_custom_call.1} parent=5 // pred_fallthru
        _
      %p3565 = scmp.le.s32.totalorder 2, %s18
      // Predicated region
      $region49: #{tpu_custom_call.1} parent=5 // pred_check
        %p3566 = pneg %p3565
      $region50: #{tpu_custom_call.1} parent=5 // pred_check_branch
        %3568 = sbr.rel (%p3566) target = $region52
      $region51: #{tpu_custom_call.1} parent=5 // pred_region
        %s3569 = ssub.s32 %s18, 2
        // Predicated region
        $region53: #{tpu_custom_call.1} parent=51 // pred_check
          %p3570 = pneg %p138
        $region54: #{tpu_custom_call.1} parent=51 // pred_check_branch
          %3572 = sbr.rel (%p3570) target = $region56
        $region55: #{tpu_custom_call.1} parent=51 // pred_region
          %s3573 = sand.u32 %s123, 1
          %s3574 = scalar_lea.sflag [#allocation4], %s3573
          %s3575 = sand.u32 %s123, 1
          %s3576 = smul.addr %s3575, 256
          %s3577 = scalar_lea.vmem [#allocation3], %s3576
          %3578 = dma.done %s3574, 4096
        $region56: #{tpu_custom_call.1} parent=51 // pred_fallthru
          _
        // Predicated region
        $region57: #{tpu_custom_call.1} parent=51 // pred_check
          %p3579 = pneg %p164
        $region58: #{tpu_custom_call.1} parent=51 // pred_check_branch
          %3581 = sbr.rel (%p3579) target = $region60
        $region59: #{tpu_custom_call.1} parent=51 // pred_region
          %s3582 = sand.u32 %s24, 1
          %s3583 = scalar_lea.sflag [#allocation6], %s3582
          %s3584 = sand.u32 %s149, 1
          %s3585 = smul.addr %s3584, 8
          %s3586 = scalar_lea.vmem [#allocation5], %s3585
          %3587 = dma.done %s3583, 128
        $region60: #{tpu_custom_call.1} parent=51 // pred_fallthru
          _
        // Predicated region
        $region61: #{tpu_custom_call.1} parent=51 // pred_check
          %p3588 = pneg %p190
        $region62: #{tpu_custom_call.1} parent=51 // pred_check_branch
          %3590 = sbr.rel (%p3588) target = $region64
        $region63: #{tpu_custom_call.1} parent=51 // pred_region
          %s3591 = sand.u32 %s24, 1
          %s3592 = scalar_lea.sflag [#allocation6], %s3591
          %s3593 = sand.u32 %s175, 1
          %s3594 = smul.addr %s3593, 8
          %s3595 = scalar_lea.vmem [#allocation7], %s3594
          %3596 = dma.done %s3592, 128
        $region64: #{tpu_custom_call.1} parent=51 // pred_fallthru
          _
      $region52: #{tpu_custom_call.1} parent=5 // pred_fallthru
        _
    $region6: #{tpu_custom_call.1} parent=1 // loop_footer
      %s22 = sadd.s32 1, %s18
    $region7: #{tpu_custom_call.1} parent=1 // loop_footer_branch
      %17 = sbr.rel target = $region3
    $region8: #{tpu_custom_call.1} parent=1 // loop_exit
      _
    %3597 = vsyncpa [#allocation4], 1
    %s3598 = scalar_lea.sflag [#allocation4], 1
    %3599 = vsyncpa %s3598, 1
    %3600 = vsyncpa [#allocation6], 1
    %s3601 = scalar_lea.sflag [#allocation6], 1
    %3602 = vsyncpa %s3601, 1

</llo_original>
